<compile_context>
chip_gen: v7x
topology: tpu7x:2x2x1
jax: 0.10.0
libtpu: 0.0.40
codegen_flags: <defaults>
</compile_context>

<pallas_src>
import functools

import jax
import jax.numpy as jnp
from jax import lax
from jax.experimental import pallas as pl
from jax.experimental.pallas import tpu as pltpu

EPS = 1e-5
COMPUTE_DTYPE = jnp.bfloat16   # MXU operand / intermediate dtype; accumulation & epilogue f32
LANE = 128


# ----------------------------------------------------------------------------- #
# Small helpers
# ----------------------------------------------------------------------------- #
def _round_up(v, m):
    return (v + m - 1) // m * m


def _max_cout_tile():
    """128-wide N tiles on <=v5 MXUs, 256 on v6e/v7x."""
    try:
        kind = jax.devices()[0].device_kind.lower()
    except Exception:
        return 256
    if any(t in kind for t in ("v2", "v3", "v4", "v5")):
        return 128
    return 256


def _pick_th(oh, ow, up, target_m=512):
    """Largest output-row tile (multiple of the upsample factor, divisor of oh)
    keeping the flattened M = th*ow at or below ~512 rows (bounded accumulator)."""
    best = up
    th = up
    while th <= oh:
        if oh % th == 0 and th * ow <= target_m:
            best = th
        th += up
    return best


# ----------------------------------------------------------------------------- #
# Pallas kernel: [nearest row-upsample] + conv(kh x kw, stride 1, 'same')
#                + BN affine [+ residual add] [+ ReLU]
# ----------------------------------------------------------------------------- #
def _conv_bn_kernel(x_ref, w_ref, s_ref, b_ref, *rest,
                    kh, kw, up, th, ow, cin, relu, has_res):
    """One (batch image, output-row tile, cout tile) grid step.

    x_ref : (1, oh//up + 2*ph, ow + 2*pw, cin) bf16  -- rows at ORIGINAL resolution
            (zero row halo), columns already width-upsampled (+ zero column halo).
    w_ref : (kh, kw*cin, tco) bf16                   -- K-packed over the kw width taps
    s_ref : (1, tco) f32 BN scale,  b_ref : (1, tco) f32 BN bias
    rest  : [res_ref (1, th, ow, tco) bf16], o_ref (1, th, ow, tco) bf16
    """
    if has_res:
        res_ref, o_ref = rest
    else:
        (o_ref,) = rest
    tco = o_ref.shape[-1]
    ph = kh // 2

    # --- row window for this output tile (nearest upsample of rows done here, in VMEM) ---
    nrow = th // up + 2 * ph                                   # source rows needed
    q = pl.multiple_of(pl.program_id(1) * (th // up), th // up)
    win = x_ref[0, pl.ds(q, nrow)]                             # (nrow, ow + 2*pw, cin)
    if up > 1:
        win = jnp.repeat(win, up, axis=0)                      # leading-dim duplication only
        win = win[ph * (up - 1): ph * (up - 1) + th + 2 * ph]
    # win: (th + 2*ph, ow + 2*pw, cin)

    # --- K-pack the kw width taps into the contraction dim (kh matmuls at K = kw*cin) ---
    if kw > 1:
        y = jnp.concatenate([win[:, dj:dj + ow, :] for dj in range(kw)], axis=-1)
    else:
        y = win
    y2 = y.reshape((th + 2 * ph) * ow, kw * cin)

    acc = jnp.zeros((th * ow, tco), jnp.float32)
    for di in range(kh):                                       # contiguous sublane-range slices
        patch = y2[di * ow: di * ow + th * ow]
        acc = acc + jnp.dot(patch, w_ref[di], preferred_element_type=jnp.float32)

    out = acc * s_ref[...] + b_ref[...]                        # fused BN affine (f32)
    if has_res:
        out = out + res_ref[0].reshape(th * ow, tco).astype(jnp.float32)
    if relu:
        out = jnp.maximum(out, 0.0)
    o_ref[0] = out.reshape(th, ow, tco).astype(o_ref.dtype)


# ----------------------------------------------------------------------------- #
# pallas_call wrapper for one conv + BN (+ residual, + ReLU) layer
# ----------------------------------------------------------------------------- #
def _conv_layer(xin, cp, *, up, oh, ow, relu, residual=None):
    """xin: (n, oh//up + 2*(kh//2), ow + 2*(kw//2), cin) bf16.
    Returns (n, oh, ow, cout_p) bf16 with BN / residual / ReLU fused in the epilogue."""
    n = xin.shape[0]
    kh, kw, cin, cout_p = cp["kh"], cp["kw"], cp["cin"], cp["cout_p"]
    ph, pw = kh // 2, kw // 2
    assert xin.shape == (n, oh // up + 2 * ph, ow + 2 * pw, cin), xin.shape
    assert oh % up == 0 and ow % 8 == 0

    tco = min(cout_p, _max_cout_tile())
    th = _pick_th(oh, ow, up)
    grid = (n, oh // th, cout_p // tco)

    in_specs = [
        pl.BlockSpec((1,) + xin.shape[1:], lambda ni, ri, ci: (ni, 0, 0, 0)),
        pl.BlockSpec((kh, kw * cin, tco), lambda ni, ri, ci: (0, 0, ci)),
        pl.BlockSpec((1, tco), lambda ni, ri, ci: (0, ci)),
        pl.BlockSpec((1, tco), lambda ni, ri, ci: (0, ci)),
    ]
    inputs = [xin, cp["w"], cp["scale"], cp["bias"]]
    if residual is not None:
        assert residual.shape == (n, oh, ow, cout_p), residual.shape
        inputs.append(residual.astype(COMPUTE_DTYPE))
        in_specs.append(pl.BlockSpec((1, th, ow, tco), lambda ni, ri, ci: (ni, ri, 0, ci)))

    # Explicit scoped-VMEM budget: per-step blocks (x2 double buffering) + in-kernel temps.
    esz = jnp.dtype(COMPUTE_DTYPE).itemsize
    x_blk = xin.shape[1] * xin.shape[2] * cin * esz
    w_blk = kh * kw * cin * tco * esz
    o_blk = th * ow * tco * esz
    r_blk = o_blk if residual is not None else 0
    temps = 4 * (th + 2 * ph) * (ow + 2 * pw) * kw * cin * esz + 2 * th * ow * tco * 4
    vmem = 2 * (x_blk + w_blk + o_blk + r_blk + 2 * tco * 4) + temps + (4 << 20)
    vmem = int(min(max(vmem, 16 << 20), 64 << 20))

    flops = 2 * n * oh * ow * kh * kw * cin * cout_p
    bytes_acc = (xin.size + cp["w"].size + n * oh * ow * cout_p) * esz \
        + (cp["scale"].size + cp["bias"].size) * 4
    if residual is not None:
        bytes_acc += residual.size * esz

    kernel = functools.partial(
        _conv_bn_kernel, kh=kh, kw=kw, up=up, th=th, ow=ow, cin=cin,
        relu=relu, has_res=residual is not None)

    return pl.pallas_call(
        kernel,
        out_shape=jax.ShapeDtypeStruct((n, oh, ow, cout_p), COMPUTE_DTYPE),
        grid_spec=pltpu.PrefetchScalarGridSpec(
            num_scalar_prefetch=0,
            grid=grid,
            in_specs=in_specs,
            out_specs=pl.BlockSpec((1, th, ow, tco),
                                   lambda ni, ri, ci: (ni, ri, 0, ci))),
        compiler_params=pltpu.CompilerParams(
            dimension_semantics=("parallel", "parallel", "parallel"),
            vmem_limit_bytes=vmem),
        cost_estimate=pl.CostEstimate(
            flops=flops, transcendentals=0, bytes_accessed=int(bytes_acc)),
    )(*inputs)


# ----------------------------------------------------------------------------- #
# Parameter folding (done ONCE, not per forward)
# ----------------------------------------------------------------------------- #
def _fold_bn(bn):
    scale = bn["gamma"] / jnp.sqrt(bn["var"] + EPS)
    bias = bn["beta"] - bn["mean"] * scale
    return scale, bias


def _pack_conv_bn(w_oihw, bn):
    cout, cin, kh, kw = w_oihw.shape
    cout_p = _round_up(cout, LANE)
    wmat = jnp.transpose(w_oihw, (2, 3, 1, 0)).reshape(kh, kw * cin, cout)     # HW(IO) K-packed
    wmat = jnp.pad(wmat, ((0, 0), (0, 0), (0, cout_p - cout))).astype(COMPUTE_DTYPE)
    scale, bias = _fold_bn(bn)
    scale = jnp.pad(scale, (0, cout_p - cout)).reshape(1, cout_p).astype(jnp.float32)
    bias = jnp.pad(bias, (0, cout_p - cout)).reshape(1, cout_p).astype(jnp.float32)
    return dict(w=wmat, scale=scale, bias=bias, kh=kh, kw=kw,
                cin=cin, cout=cout, cout_p=cout_p)


def prepare_decoder_block_params(p):
    prep = {
        "scale": p["scale"],
        "conv1": _pack_conv_bn(p["conv1"], p["bn1"]),
        "conv2": _pack_conv_bn(p["conv2"], p["bn2"]),
    }
    prep["inplanes"] = prep["conv1"]["cout"]
    prep["planes"] = prep["conv2"]["cout"]
    if "up_conv" in p:
        prep["up"] = _pack_conv_bn(p["up_conv"], p["up_bn"])
    else:
        assert prep["planes"] == prep["inplanes"] and p["scale"] == 1, \
            "identity residual requires planes == inplanes and scale == 1"
    return prep


# ----------------------------------------------------------------------------- #
# DecoderBlock forward (Pallas) + parameter init
# ----------------------------------------------------------------------------- #
def decoder_block_forward(x_nchw, prep):
    """NCHW in -> NCHW out, matching DecoderBlock.forward (inference BN)."""
    s = prep["scale"]
    cin = prep["inplanes"]
    planes = prep["planes"]
    c1, c2 = prep["conv1"], prep["conv2"]

    x = jnp.transpose(x_nchw, (0, 2, 3, 1)).astype(COMPUTE_DTYPE)        # NHWC bf16
    n, h, w, _ = x.shape
    oh, ow = s * h, s * w

    # conv1 + bn1 + relu (3x3, stride 1, 'same')
    p1 = c1["kh"] // 2
    x1 = jnp.pad(x, ((0, 0), (p1, p1), (p1, p1), (0, 0)))
    o1 = _conv_layer(x1, c1, up=1, oh=h, ow=w, relu=True)                # (n,h,w,cp1) bf16

    # resize-conv input: real channels, width nearest-upsample, 1px halo -- one fused
    # XLA pad/repeat; the row upsample happens inside the conv2 kernel (never hits HBM).
    p2 = c2["kh"] // 2
    o1c = o1[..., :cin]
    if s > 1:
        o1c = jnp.repeat(o1c, s, axis=2)
    x2 = jnp.pad(o1c, ((0, 0), (p2, p2), (p2, p2), (0, 0)))

    # identity path
    if "up" in prep:   # upsample module = Interpolate(scale) + conv1x1 + BN
        xu = jnp.repeat(x, s, axis=2) if s > 1 else x
        identity = _conv_layer(xu, prep["up"], up=s, oh=oh, ow=ow, relu=False)
    else:
        identity = jnp.pad(x, ((0, 0), (0, 0), (0, 0), (0, c2["cout_p"] - cin)))

    # conv2 + bn2 + residual add + relu, all fused in one kernel epilogue
    out = _conv_layer(x2, c2, up=s, oh=oh, ow=ow, relu=True, residual=identity)

    out = out[..., :planes]
    return jnp.transpose(out, (0, 3, 1, 2)).astype(jnp.float32)


def _init_conv(key, cout, cin, kh, kw):
    fan_in = cin * kh * kw
    return jax.random.normal(key, (cout, cin, kh, kw), jnp.float32) * (2.0 / fan_in) ** 0.5


def _init_bn(key, c):
    k1, k2, k3, k4 = jax.random.split(key, 4)
    return dict(
        gamma=jax.random.uniform(k1, (c,), jnp.float32, 0.5, 1.5),
        beta=jax.random.normal(k2, (c,), jnp.float32) * 0.1,
        mean=jax.random.normal(k3, (c,), jnp.float32) * 0.1,
        var=jax.random.uniform(k4, (c,), jnp.float32, 0.5, 1.5),
    )


def init_decoder_block(key, inplanes, planes, scale=1, with_upsample=False):
    ks = jax.random.split(key, 6)
    p = {
        "scale": scale,
        "conv1": _init_conv(ks[0], inplanes, inplanes, 3, 3),
        "bn1": _init_bn(ks[1], inplanes),
        "conv2": _init_conv(ks[2], planes, inplanes, 3, 3),
        "bn2": _init_bn(ks[3], planes),
    }
    if with_upsample:
        p["up_conv"] = _init_conv(ks[4], planes, inplanes, 1, 1)
        p["up_bn"] = _init_bn(ks[5], planes)
    return p


# ----------------------------------------------------------------------------- #
# Pure-JAX reference (same precision policy: bf16 operands, f32 accumulation/epilogue)
# ----------------------------------------------------------------------------- #
def _ref_conv_bn(x_bf16, w_oihw, bn, *, relu):
    cout, cin, kh, kw = w_oihw.shape
    pad = kh // 2
    y = lax.conv_general_dilated(
        x_bf16,
        jnp.transpose(w_oihw, (2, 3, 1, 0)).astype(COMPUTE_DTYPE),
        window_strides=(1, 1), padding=[(pad, pad), (pad, pad)],
        dimension_numbers=("NHWC", "HWIO", "NHWC"),
        preferred_element_type=jnp.float32)
    scale, bias = _fold_bn(bn)
    y = y * scale + bias
    return jnp.maximum(y, 0.0) if relu else y


def _ref_upsample(x, s):
    if s == 1:
        return x
    return jnp.repeat(jnp.repeat(x, s, axis=1), s, axis=2)


def ref_decoder_block(x_nchw, p):
    s = p["scale"]
    x = jnp.transpose(x_nchw, (0, 2, 3, 1)).astype(COMPUTE_DTYPE)
    o1 = _ref_conv_bn(x, p["conv1"], p["bn1"], relu=True).astype(COMPUTE_DTYPE)
    o2 = _ref_conv_bn(_ref_upsample(o1, s), p["conv2"], p["bn2"], relu=False)
    if "up_conv" in p:
        idn = _ref_conv_bn(_ref_upsample(x, s), p["up_conv"], p["up_bn"],
                           relu=False).astype(COMPUTE_DTYPE)
    else:
        idn = x
    out = jnp.maximum(o2 + idn.astype(jnp.float32), 0.0).astype(COMPUTE_DTYPE)
    return jnp.transpose(out, (0, 3, 1, 2)).astype(jnp.float32)


# ----------------------------------------------------------------------------- #
if __name__ == "__main__":
    key = jax.random.PRNGKey(0)
    kp1, kp2, kx = jax.random.split(key, 3)

    B, C_IN, S = 2, 64, 16
    x = jax.random.normal(kx, (B, C_IN, S, S), jnp.float32)

    # Block A: scale=1, planes==inplanes, no upsample module (plain identity residual)
    block_a = init_decoder_block(kp1, inplanes=C_IN, planes=C_IN, scale=1,
                                 with_upsample=False)
    # Block B: scale=2, channel change in conv2, upsample = Interpolate + 1x1 conv + BN
    block_b = init_decoder_block(kp2, inplanes=C_IN, planes=32, scale=2,
                                 with_upsample=True)

    prep_a = prepare_decoder_block_params(block_a)
    prep_b = prepare_decoder_block_params(block_b)

    fwd_a = jax.jit(lambda inp: decoder_block_forward(inp, prep_a))
    fwd_b = jax.jit(lambda inp: decoder_block_forward(inp, prep_b))

    out_a = jax.block_until_ready(fwd_a(x))
    out_b = jax.block_until_ready(fwd_b(x))
    assert out_a.shape == (B, C_IN, S, S), out_a.shape
    assert out_b.shape == (B, 32, 2 * S, 2 * S), out_b.shape

    ref_a = jax.block_until_ready(jax.jit(lambda inp: ref_decoder_block(inp, block_a))(x))
    ref_b = jax.block_until_ready(jax.jit(lambda inp: ref_decoder_block(inp, block_b))(x))

    err_a = float(jnp.max(jnp.abs(out_a - ref_a)))
    err_b = float(jnp.max(jnp.abs(out_b - ref_b)))
    # bf16 MXU operands + bf16 intermediates in both paths -> compare at bf16-level tolerance
    assert jnp.allclose(out_a, ref_a, rtol=2e-2, atol=2e-2), err_a
    assert jnp.allclose(out_b, ref_b, rtol=2e-2, atol=2e-2), err_b

    # chained blocks: execution / shape sanity (16x16 -> 32x32, 64 -> 32 channels)
    out_ab = jax.block_until_ready(jax.jit(
        lambda inp: decoder_block_forward(decoder_block_forward(inp, prep_a),
                                          prep_b))(x))
    assert out_ab.shape == (B, 32, 2 * S, 2 * S), out_ab.shape

    print("KERNEL_OK")
</pallas_src>

<mosaic_0001>
module attributes {stable_mosaic.version = 11 : i64} {
  func.func @_conv_bn_kernel(%arg0: i32, %arg1: i32, %arg2: i32, %arg3: memref<1x18x18x64xbf16, #tpu.memory_space<vmem>>, %arg4: memref<3x192x128xbf16, #tpu.memory_space<vmem>>, %arg5: memref<1x128xf32, #tpu.memory_space<vmem>>, %arg6: memref<1x128xf32, #tpu.memory_space<vmem>>, %arg7: memref<1x16x16x128xbf16, #tpu.memory_space<vmem>>) attributes {dimension_semantics = [#tpu.dimension_semantics<parallel>, #tpu.dimension_semantics<parallel>, #tpu.dimension_semantics<parallel>], iteration_bounds = array<i64: 2, 1, 1>, scalar_prefetch = 0 : i64, scratch_operands = 0 : i64, tpu.core_type = #tpu.core_type<tc>, window_params = [{transform_indices = @transform_0, window_bounds = array<i64: 1, 18, 18, 64>}, {transform_indices = @transform_1, window_bounds = array<i64: 3, 192, 128>}, {transform_indices = @transform_2, window_bounds = array<i64: 1, 128>}, {transform_indices = @transform_3, window_bounds = array<i64: 1, 128>}, {transform_indices = @transform_4, window_bounds = array<i64: 1, 16, 16, 128>}]} {
    %c16_i32 = arith.constant 16 : i32
    %0 = arith.muli %arg1, %c16_i32 : i32
    %1 = tpu.assume_multiple %0, 16 : i32
    %c0 = arith.constant 0 : index
    %2 = arith.index_cast %1 : i32 to index
    %c0_0 = arith.constant 0 : index
    %c0_1 = arith.constant 0 : index
    %3 = vector.load %arg3[%c0, %2, %c0_0, %c0_1] : memref<1x18x18x64xbf16, #tpu.memory_space<vmem>>, vector<1x18x18x64xbf16>
    %4 = vector.shape_cast %3 : vector<1x18x18x64xbf16> to vector<18x18x64xbf16>
    %5 = vector.extract_strided_slice %4 {offsets = [0, 0, 0], sizes = [18, 16, 64], strides = [1, 1, 1]} : vector<18x18x64xbf16> to vector<18x16x64xbf16>
    %6 = vector.extract_strided_slice %4 {offsets = [0, 1, 0], sizes = [18, 16, 64], strides = [1, 1, 1]} : vector<18x18x64xbf16> to vector<18x16x64xbf16>
    %7 = vector.extract_strided_slice %4 {offsets = [0, 2, 0], sizes = [18, 16, 64], strides = [1, 1, 1]} : vector<18x18x64xbf16> to vector<18x16x64xbf16>
    %8 = tpu.concatenate %5, %6, %7 in 2 : vector<18x16x64xbf16>, vector<18x16x64xbf16>, vector<18x16x64xbf16> -> vector<18x16x192xbf16>
    %9 = vector.shape_cast %8 : vector<18x16x192xbf16> to vector<288x192xbf16>
    %cst = arith.constant 0.000000e+00 : f32
    %10 = vector.broadcast %cst : f32 to vector<256x128xf32>
    %11 = vector.extract_strided_slice %9 {offsets = [0, 0], sizes = [256, 192], strides = [1, 1]} : vector<288x192xbf16> to vector<256x192xbf16>
    %c0_2 = arith.constant 0 : index
    %c0_3 = arith.constant 0 : index
    %c0_4 = arith.constant 0 : index
    %12 = vector.load %arg4[%c0_2, %c0_3, %c0_4] : memref<3x192x128xbf16, #tpu.memory_space<vmem>>, vector<1x192x128xbf16>
    %13 = vector.shape_cast %12 : vector<1x192x128xbf16> to vector<192x128xbf16>
    %cst_5 = arith.constant dense<0.000000e+00> : vector<256x128xf32>
    %14 = tpu.matmul %11, %13, %cst_5 {dimension_numbers = #tpu.dot_dimension_numbers<[1], [0], [0], [1], [0, 0, 1, 1], [], []>} : vector<256x192xbf16>, vector<192x128xbf16>, vector<256x128xf32> -> vector<256x128xf32>
    %15 = arith.addf %10, %14 : vector<256x128xf32>
    %16 = vector.extract_strided_slice %9 {offsets = [16, 0], sizes = [256, 192], strides = [1, 1]} : vector<288x192xbf16> to vector<256x192xbf16>
    %c1 = arith.constant 1 : index
    %c0_6 = arith.constant 0 : index
    %c0_7 = arith.constant 0 : index
    %17 = vector.load %arg4[%c1, %c0_6, %c0_7] : memref<3x192x128xbf16, #tpu.memory_space<vmem>>, vector<1x192x128xbf16>
    %18 = vector.shape_cast %17 : vector<1x192x128xbf16> to vector<192x128xbf16>
    %cst_8 = arith.constant dense<0.000000e+00> : vector<256x128xf32>
    %19 = tpu.matmul %16, %18, %cst_8 {dimension_numbers = #tpu.dot_dimension_numbers<[1], [0], [0], [1], [0, 0, 1, 1], [], []>} : vector<256x192xbf16>, vector<192x128xbf16>, vector<256x128xf32> -> vector<256x128xf32>
    %20 = arith.addf %15, %19 : vector<256x128xf32>
    %21 = vector.extract_strided_slice %9 {offsets = [32, 0], sizes = [256, 192], strides = [1, 1]} : vector<288x192xbf16> to vector<256x192xbf16>
    %c2 = arith.constant 2 : index
    %c0_9 = arith.constant 0 : index
    %c0_10 = arith.constant 0 : index
    %22 = vector.load %arg4[%c2, %c0_9, %c0_10] : memref<3x192x128xbf16, #tpu.memory_space<vmem>>, vector<1x192x128xbf16>
    %23 = vector.shape_cast %22 : vector<1x192x128xbf16> to vector<192x128xbf16>
    %cst_11 = arith.constant dense<0.000000e+00> : vector<256x128xf32>
    %24 = tpu.matmul %21, %23, %cst_11 {dimension_numbers = #tpu.dot_dimension_numbers<[1], [0], [0], [1], [0, 0, 1, 1], [], []>} : vector<256x192xbf16>, vector<192x128xbf16>, vector<256x128xf32> -> vector<256x128xf32>
    %25 = arith.addf %20, %24 : vector<256x128xf32>
    %c0_12 = arith.constant 0 : index
    %c0_13 = arith.constant 0 : index
    %26 = vector.load %arg5[%c0_12, %c0_13] : memref<1x128xf32, #tpu.memory_space<vmem>>, vector<1x128xf32>
    %27 = vector.broadcast %26 : vector<1x128xf32> to vector<256x128xf32>
    %28 = arith.mulf %25, %27 : vector<256x128xf32>
    %c0_14 = arith.constant 0 : index
    %c0_15 = arith.constant 0 : index
    %29 = vector.load %arg6[%c0_14, %c0_15] : memref<1x128xf32, #tpu.memory_space<vmem>>, vector<1x128xf32>
    %30 = vector.broadcast %29 : vector<1x128xf32> to vector<256x128xf32>
    %31 = arith.addf %28, %30 : vector<256x128xf32>
    %cst_16 = arith.constant 0.000000e+00 : f32
    %32 = vector.broadcast %cst_16 : f32 to vector<256x128xf32>
    %33 = arith.maximumf %31, %32 : vector<256x128xf32>
    %34 = vector.shape_cast %33 : vector<256x128xf32> to vector<16x16x128xf32>
    %35 = arith.truncf %34 : vector<16x16x128xf32> to vector<16x16x128xbf16>
    %c0_17 = arith.constant 0 : index
    %c0_18 = arith.constant 0 : index
    %c0_19 = arith.constant 0 : index
    %c0_20 = arith.constant 0 : index
    %36 = vector.load %arg7[%c0_17, %c0_18, %c0_19, %c0_20] : memref<1x16x16x128xbf16, #tpu.memory_space<vmem>>, vector<1x16x16x128xbf16>
    %37 = vector.shape_cast %36 : vector<1x16x16x128xbf16> to vector<16x16x128xbf16>
    %38 = vector.shape_cast %35 : vector<16x16x128xbf16> to vector<1x16x16x128xbf16>
    tpu.vector_store %arg7[%c0_17, %c0_18, %c0_19, %c0_20], %38 {strides = array<i32>} : memref<1x16x16x128xbf16, #tpu.memory_space<vmem>>, vector<1x16x16x128xbf16>,
    return
  }
  func.func @transform_0(%arg0: i32, %arg1: i32, %arg2: i32) -> (i32, i32, i32, i32) {
    %c0_i32 = arith.constant 0 : i32
    %c0_i32_0 = arith.constant 0 : i32
    %c0_i32_1 = arith.constant 0 : i32
    %c0_i32_2 = arith.constant 0 : i32
    return %arg0, %c0_i32, %c0_i32_0, %c0_i32_1 : i32, i32, i32, i32
  }
  func.func @transform_1(%arg0: i32, %arg1: i32, %arg2: i32) -> (i32, i32, i32) {
    %c0_i32 = arith.constant 0 : i32
    %c0_i32_0 = arith.constant 0 : i32
    %c0_i32_1 = arith.constant 0 : i32
    return %c0_i32, %c0_i32_0, %arg2 : i32, i32, i32
  }
  func.func @transform_2(%arg0: i32, %arg1: i32, %arg2: i32) -> (i32, i32) {
    %c0_i32 = arith.constant 0 : i32
    %c0_i32_0 = arith.constant 0 : i32
    return %c0_i32, %arg2 : i32, i32
  }
  func.func @transform_3(%arg0: i32, %arg1: i32, %arg2: i32) -> (i32, i32) {
    %c0_i32 = arith.constant 0 : i32
    %c0_i32_0 = arith.constant 0 : i32
    return %c0_i32, %arg2 : i32, i32
  }
  func.func @transform_4(%arg0: i32, %arg1: i32, %arg2: i32) -> (i32, i32, i32, i32) {
    %c0_i32 = arith.constant 0 : i32
    %c0_i32_0 = arith.constant 0 : i32
    return %arg0, %arg1, %c0_i32, %arg2 : i32, i32, i32, i32
  }
}

module attributes {stable_mosaic.version = 11 : i64} {
  func.func @_conv_bn_kernel(%arg0: i32, %arg1: i32, %arg2: i32, %arg3: memref<1x18x18x64xbf16, #tpu.memory_space<vmem>>, %arg4: memref<3x192x128xbf16, #tpu.memory_space<vmem>>, %arg5: memref<1x128xf32, #tpu.memory_space<vmem>>, %arg6: memref<1x128xf32, #tpu.memory_space<vmem>>, %arg7: memref<1x16x16x128xbf16, #tpu.memory_space<vmem>>, %arg8: memref<1x16x16x128xbf16, #tpu.memory_space<vmem>>) attributes {dimension_semantics = [#tpu.dimension_semantics<parallel>, #tpu.dimension_semantics<parallel>, #tpu.dimension_semantics<parallel>], iteration_bounds = array<i64: 2, 1, 1>, scalar_prefetch = 0 : i64, scratch_operands = 0 : i64, tpu.core_type = #tpu.core_type<tc>, window_params = [{transform_indices = @transform_0, window_bounds = array<i64: 1, 18, 18, 64>}, {transform_indices = @transform_1, window_bounds = array<i64: 3, 192, 128>}, {transform_indices = @transform_2, window_bounds = array<i64: 1, 128>}, {transform_indices = @transform_3, window_bounds = array<i64: 1, 128>}, {transform_indices = @transform_4, window_bounds = array<i64: 1, 16, 16, 128>}, {transform_indices = @transform_5, window_bounds = array<i64: 1, 16, 16, 128>}]} {
    %c16_i32 = arith.constant 16 : i32
    %0 = arith.muli %arg1, %c16_i32 : i32
    %1 = tpu.assume_multiple %0, 16 : i32
    %c0 = arith.constant 0 : index
    %2 = arith.index_cast %1 : i32 to index
    %c0_0 = arith.constant 0 : index
    %c0_1 = arith.constant 0 : index
    %3 = vector.load %arg3[%c0, %2, %c0_0, %c0_1] : memref<1x18x18x64xbf16, #tpu.memory_space<vmem>>, vector<1x18x18x64xbf16>
    %4 = vector.shape_cast %3 : vector<1x18x18x64xbf16> to vector<18x18x64xbf16>
    %5 = vector.extract_strided_slice %4 {offsets = [0, 0, 0], sizes = [18, 16, 64], strides = [1, 1, 1]} : vector<18x18x64xbf16> to vector<18x16x64xbf16>
    %6 = vector.extract_strided_slice %4 {offsets = [0, 1, 0], sizes = [18, 16, 64], strides = [1, 1, 1]} : vector<18x18x64xbf16> to vector<18x16x64xbf16>
    %7 = vector.extract_strided_slice %4 {offsets = [0, 2, 0], sizes = [18, 16, 64], strides = [1, 1, 1]} : vector<18x18x64xbf16> to vector<18x16x64xbf16>
    %8 = tpu.concatenate %5, %6, %7 in 2 : vector<18x16x64xbf16>, vector<18x16x64xbf16>, vector<18x16x64xbf16> -> vector<18x16x192xbf16>
    %9 = vector.shape_cast %8 : vector<18x16x192xbf16> to vector<288x192xbf16>
    %cst = arith.constant 0.000000e+00 : f32
    %10 = vector.broadcast %cst : f32 to vector<256x128xf32>
    %11 = vector.extract_strided_slice %9 {offsets = [0, 0], sizes = [256, 192], strides = [1, 1]} : vector<288x192xbf16> to vector<256x192xbf16>
    %c0_2 = arith.constant 0 : index
    %c0_3 = arith.constant 0 : index
    %c0_4 = arith.constant 0 : index
    %12 = vector.load %arg4[%c0_2, %c0_3, %c0_4] : memref<3x192x128xbf16, #tpu.memory_space<vmem>>, vector<1x192x128xbf16>
    %13 = vector.shape_cast %12 : vector<1x192x128xbf16> to vector<192x128xbf16>
    %cst_5 = arith.constant dense<0.000000e+00> : vector<256x128xf32>
    %14 = tpu.matmul %11, %13, %cst_5 {dimension_numbers = #tpu.dot_dimension_numbers<[1], [0], [0], [1], [0, 0, 1, 1], [], []>} : vector<256x192xbf16>, vector<192x128xbf16>, vector<256x128xf32> -> vector<256x128xf32>
    %15 = arith.addf %10, %14 : vector<256x128xf32>
    %16 = vector.extract_strided_slice %9 {offsets = [16, 0], sizes = [256, 192], strides = [1, 1]} : vector<288x192xbf16> to vector<256x192xbf16>
    %c1 = arith.constant 1 : index
    %c0_6 = arith.constant 0 : index
    %c0_7 = arith.constant 0 : index
    %17 = vector.load %arg4[%c1, %c0_6, %c0_7] : memref<3x192x128xbf16, #tpu.memory_space<vmem>>, vector<1x192x128xbf16>
    %18 = vector.shape_cast %17 : vector<1x192x128xbf16> to vector<192x128xbf16>
    %cst_8 = arith.constant dense<0.000000e+00> : vector<256x128xf32>
    %19 = tpu.matmul %16, %18, %cst_8 {dimension_numbers = #tpu.dot_dimension_numbers<[1], [0], [0], [1], [0, 0, 1, 1], [], []>} : vector<256x192xbf16>, vector<192x128xbf16>, vector<256x128xf32> -> vector<256x128xf32>
    %20 = arith.addf %15, %19 : vector<256x128xf32>
    %21 = vector.extract_strided_slice %9 {offsets = [32, 0], sizes = [256, 192], strides = [1, 1]} : vector<288x192xbf16> to vector<256x192xbf16>
    %c2 = arith.constant 2 : index
    %c0_9 = arith.constant 0 : index
    %c0_10 = arith.constant 0 : index
    %22 = vector.load %arg4[%c2, %c0_9, %c0_10] : memref<3x192x128xbf16, #tpu.memory_space<vmem>>, vector<1x192x128xbf16>
    %23 = vector.shape_cast %22 : vector<1x192x128xbf16> to vector<192x128xbf16>
    %cst_11 = arith.constant dense<0.000000e+00> : vector<256x128xf32>
    %24 = tpu.matmul %21, %23, %cst_11 {dimension_numbers = #tpu.dot_dimension_numbers<[1], [0], [0], [1], [0, 0, 1, 1], [], []>} : vector<256x192xbf16>, vector<192x128xbf16>, vector<256x128xf32> -> vector<256x128xf32>
    %25 = arith.addf %20, %24 : vector<256x128xf32>
    %c0_12 = arith.constant 0 : index
    %c0_13 = arith.constant 0 : index
    %26 = vector.load %arg5[%c0_12, %c0_13] : memref<1x128xf32, #tpu.memory_space<vmem>>, vector<1x128xf32>
    %27 = vector.broadcast %26 : vector<1x128xf32> to vector<256x128xf32>
    %28 = arith.mulf %25, %27 : vector<256x128xf32>
    %c0_14 = arith.constant 0 : index
    %c0_15 = arith.constant 0 : index
    %29 = vector.load %arg6[%c0_14, %c0_15] : memref<1x128xf32, #tpu.memory_space<vmem>>, vector<1x128xf32>
    %30 = vector.broadcast %29 : vector<1x128xf32> to vector<256x128xf32>
    %31 = arith.addf %28, %30 : vector<256x128xf32>
    %c0_16 = arith.constant 0 : index
    %c0_17 = arith.constant 0 : index
    %c0_18 = arith.constant 0 : index
    %c0_19 = arith.constant 0 : index
    %32 = vector.load %arg7[%c0_16, %c0_17, %c0_18, %c0_19] : memref<1x16x16x128xbf16, #tpu.memory_space<vmem>>, vector<1x16x16x128xbf16>
    %33 = vector.shape_cast %32 : vector<1x16x16x128xbf16> to vector<16x16x128xbf16>
    %34 = vector.shape_cast %33 : vector<16x16x128xbf16> to vector<256x128xbf16>
    %35 = arith.extf %34 : vector<256x128xbf16> to vector<256x128xf32>
    %36 = arith.addf %31, %35 : vector<256x128xf32>
    %cst_20 = arith.constant 0.000000e+00 : f32
    %37 = vector.broadcast %cst_20 : f32 to vector<256x128xf32>
    %38 = arith.maximumf %36, %37 : vector<256x128xf32>
    %39 = vector.shape_cast %38 : vector<256x128xf32> to vector<16x16x128xf32>
    %40 = arith.truncf %39 : vector<16x16x128xf32> to vector<16x16x128xbf16>
    %c0_21 = arith.constant 0 : index
    %c0_22 = arith.constant 0 : index
    %c0_23 = arith.constant 0 : index
    %c0_24 = arith.constant 0 : index
    %41 = vector.load %arg8[%c0_21, %c0_22, %c0_23, %c0_24] : memref<1x16x16x128xbf16, #tpu.memory_space<vmem>>, vector<1x16x16x128xbf16>
    %42 = vector.shape_cast %41 : vector<1x16x16x128xbf16> to vector<16x16x128xbf16>
    %43 = vector.shape_cast %40 : vector<16x16x128xbf16> to vector<1x16x16x128xbf16>
    tpu.vector_store %arg8[%c0_21, %c0_22, %c0_23, %c0_24], %43 {strides = array<i32>} : memref<1x16x16x128xbf16, #tpu.memory_space<vmem>>, vector<1x16x16x128xbf16>,
    return
  }
  func.func @transform_0(%arg0: i32, %arg1: i32, %arg2: i32) -> (i32, i32, i32, i32) {
    %c0_i32 = arith.constant 0 : i32
    %c0_i32_0 = arith.constant 0 : i32
    %c0_i32_1 = arith.constant 0 : i32
    %c0_i32_2 = arith.constant 0 : i32
    return %arg0, %c0_i32, %c0_i32_0, %c0_i32_1 : i32, i32, i32, i32
  }
  func.func @transform_1(%arg0: i32, %arg1: i32, %arg2: i32) -> (i32, i32, i32) {
    %c0_i32 = arith.constant 0 : i32
    %c0_i32_0 = arith.constant 0 : i32
    %c0_i32_1 = arith.constant 0 : i32
    return %c0_i32, %c0_i32_0, %arg2 : i32, i32, i32
  }
  func.func @transform_2(%arg0: i32, %arg1: i32, %arg2: i32) -> (i32, i32) {
    %c0_i32 = arith.constant 0 : i32
    %c0_i32_0 = arith.constant 0 : i32
    return %c0_i32, %arg2 : i32, i32
  }
  func.func @transform_3(%arg0: i32, %arg1: i32, %arg2: i32) -> (i32, i32) {
    %c0_i32 = arith.constant 0 : i32
    %c0_i32_0 = arith.constant 0 : i32
    return %c0_i32, %arg2 : i32, i32
  }
  func.func @transform_4(%arg0: i32, %arg1: i32, %arg2: i32) -> (i32, i32, i32, i32) {
    %c0_i32 = arith.constant 0 : i32
    %c0_i32_0 = arith.constant 0 : i32
    return %arg0, %arg1, %c0_i32, %arg2 : i32, i32, i32, i32
  }
  func.func @transform_5(%arg0: i32, %arg1: i32, %arg2: i32) -> (i32, i32, i32, i32) {
    %c0_i32 = arith.constant 0 : i32
    %c0_i32_0 = arith.constant 0 : i32
    return %arg0, %arg1, %c0_i32, %arg2 : i32, i32, i32, i32
  }
}

</mosaic_0001>

<llo_original>
// kernel: _lambda_.2
$region0: #{_lambda_.2}
  #allocation0 [shape = 'u32[]', space=smem, size = 0x4, offset = 0x4, fixed_abs, tag = 'smem constant byte address 0x4 - core index']
  #allocation1 [shape = 'u32[144,128]{1,0:T(1,128)}', space=vmem, size = 0x12000, scoped, tag = 'internal scratch']
  %s0 = inlined_call_operand.vmem [shape: bf16[2,18,18,64], index: 0, kind: input, shape index: {}]
  %s1 = inlined_call_operand.vmem [shape: bf16[3,192,128], index: 1, kind: input, shape index: {}]
  %s2 = inlined_call_operand.vmem [shape: f32[1,128], index: 2, kind: input, shape index: {}]
  %s3 = inlined_call_operand.vmem [shape: f32[1,128], index: 3, kind: input, shape index: {}]
  %s4 = inlined_call_operand.vmem [shape: bf16[2,16,16,128], index: 4, kind: output, shape index: {}]
  %s5 = sld [smem:[#allocation0]]
  $region49: #{_lambda_.2} parent=0
    _
  %s7 = ssub.s32 1, %s5
  %s8 = scalar_select 0, %s7, %s5
  loop: start=0, step=1, limit=4
  $region2: #{_lambda_.2} parent=0 // loop_pre_header
    _
  $region3: #{_lambda_.2} parent=0 // loop_header
    %s10 = sphi 0, %s14
    %p11 = scmp.ge.s32.totalorder %s10, 4
    %s17 = sphi 0, %s36
    %s18 = sphi 0, %s32
    %s19 = sphi 0, %s28
    %s20 = sphi 0, %s17
    %s21 = sphi 0, %s18
    %s22 = sphi 0, %s19
    %s23 = sphi 0, %s20
    %s24 = sphi 0, %s21
    %s25 = sphi 0, %s22
    %s39 = sphi 0, %s41
    %s42 = sphi 0, %s39
    %s43 = sphi 0, %s42
    %s59 = sphi 0, %s43
    %s65 = sphi 0, %s67
    %s68 = sphi 0, %s65
    %s69 = sphi 0, %s68
    %s85 = sphi 0, %s69
    %s91 = sphi 0, %s93
    %s94 = sphi 0, %s91
    %s95 = sphi 0, %s94
    %s111 = sphi 0, %s95
    %s117 = sphi 0, %s119
    %s120 = sphi 0, %s117
    %s121 = sphi 0, %s120
    %s137 = sphi 0, %s121
    %s147 = sphi 0, %s149
    %s150 = sphi 0, %s147
    %s151 = sphi 0, %s150
    %s167 = sphi 0, %s151
  $region4: #{_lambda_.2} parent=0 // loop_header_branch
    %13 = sbr.rel (%p11) target = $region8
  $region5: #{_lambda_.2} parent=0 // loop_body
    %s15 = ssub.s32 %s10, 1
    %s16 = ssub.s32 %s10, 2
    %s26 = sadd.s32 1, %s19
    %p27 = scmp.ge.s32.totalorder %s26, 1
    %s28 = scalar_select %p27, 0, %s26
    %s29 = sadd.s32 1, %s18
    %s30 = scalar_select %p27, %s29, %s18
    %p31 = scmp.ge.s32.totalorder %s30, 1
    %s32 = scalar_select %p31, 0, %s30
    %s33 = sadd.s32 1, %s17
    %s34 = scalar_select %p31, %s33, %s17
    %p35 = scmp.ge.s32.totalorder %s34, 2
    %s36 = scalar_select %p35, 0, %s34
    %s37 = ssub.s32 %s17, %s36
    %p38 = scmp.eq.s32.totalorder %s37, 0
    %s40 = sadd.s32 %s39, 1
    %s41 = scalar_select %p38, %s39, %s40
    %p44 = pneg %p38
    %p45 = scmp.eq.s32.totalorder %s10, 1
    %p46 = por %p44, %p45
    %p47 = scmp.ne.s32.totalorder %s39, %s42
    %p48 = scmp.eq.s32.totalorder %s10, 0
    %p49 = por %p47, %p48
    %p50 = scmp.ne.s32.totalorder %s39, %s42
    %p51 = scmp.eq.s32.totalorder %s15, 1
    %p52 = por %p50, %p51
    %p53 = scmp.ne.s32.totalorder %s42, %s43
    %p54 = scmp.eq.s32.totalorder %s15, 0
    %p55 = por %p53, %p54
    %p56 = scmp.ne.s32.totalorder %s42, %s43
    %p57 = scmp.eq.s32.totalorder %s16, 1
    %p58 = por %p56, %p57
    %p60 = scmp.ne.s32.totalorder %s43, %s59
    %p61 = scmp.eq.s32.totalorder %s16, 0
    %p62 = por %p60, %p61
    %s63 = ssub.s32 %s19, %s28
    %p64 = scmp.eq.s32.totalorder %s63, 0
    %s66 = sadd.s32 %s65, 1
    %s67 = scalar_select %p64, %s65, %s66
    %p70 = pneg %p64
    %p71 = scmp.eq.s32.totalorder %s10, 1
    %p72 = por %p70, %p71
    %p73 = scmp.ne.s32.totalorder %s65, %s68
    %p74 = scmp.eq.s32.totalorder %s10, 0
    %p75 = por %p73, %p74
    %p76 = scmp.ne.s32.totalorder %s65, %s68
    %p77 = scmp.eq.s32.totalorder %s15, 1
    %p78 = por %p76, %p77
    %p79 = scmp.ne.s32.totalorder %s68, %s69
    %p80 = scmp.eq.s32.totalorder %s15, 0
    %p81 = por %p79, %p80
    %p82 = scmp.ne.s32.totalorder %s68, %s69
    %p83 = scmp.eq.s32.totalorder %s16, 1
    %p84 = por %p82, %p83
    %p86 = scmp.ne.s32.totalorder %s69, %s85
    %p87 = scmp.eq.s32.totalorder %s16, 0
    %p88 = por %p86, %p87
    %s89 = ssub.s32 %s19, %s28
    %p90 = scmp.eq.s32.totalorder %s89, 0
    %s92 = sadd.s32 %s91, 1
    %s93 = scalar_select %p90, %s91, %s92
    %p96 = pneg %p90
    %p97 = scmp.eq.s32.totalorder %s10, 1
    %p98 = por %p96, %p97
    %p99 = scmp.ne.s32.totalorder %s91, %s94
    %p100 = scmp.eq.s32.totalorder %s10, 0
    %p101 = por %p99, %p100
    %p102 = scmp.ne.s32.totalorder %s91, %s94
    %p103 = scmp.eq.s32.totalorder %s15, 1
    %p104 = por %p102, %p103
    %p105 = scmp.ne.s32.totalorder %s94, %s95
    %p106 = scmp.eq.s32.totalorder %s15, 0
    %p107 = por %p105, %p106
    %p108 = scmp.ne.s32.totalorder %s94, %s95
    %p109 = scmp.eq.s32.totalorder %s16, 1
    %p110 = por %p108, %p109
    %p112 = scmp.ne.s32.totalorder %s95, %s111
    %p113 = scmp.eq.s32.totalorder %s16, 0
    %p114 = por %p112, %p113
    %s115 = ssub.s32 %s19, %s28
    %p116 = scmp.eq.s32.totalorder %s115, 0
    %s118 = sadd.s32 %s117, 1
    %s119 = scalar_select %p116, %s117, %s118
    %p122 = pneg %p116
    %p123 = scmp.eq.s32.totalorder %s10, 1
    %p124 = por %p122, %p123
    %p125 = scmp.ne.s32.totalorder %s117, %s120
    %p126 = scmp.eq.s32.totalorder %s10, 0
    %p127 = por %p125, %p126
    %p128 = scmp.ne.s32.totalorder %s117, %s120
    %p129 = scmp.eq.s32.totalorder %s15, 1
    %p130 = por %p128, %p129
    %p131 = scmp.ne.s32.totalorder %s120, %s121
    %p132 = scmp.eq.s32.totalorder %s15, 0
    %p133 = por %p131, %p132
    %p134 = scmp.ne.s32.totalorder %s120, %s121
    %p135 = scmp.eq.s32.totalorder %s16, 1
    %p136 = por %p134, %p135
    %p138 = scmp.ne.s32.totalorder %s121, %s137
    %p139 = scmp.eq.s32.totalorder %s16, 0
    %p140 = por %p138, %p139
    %s141 = ssub.s32 %s17, %s36
    %s142 = ssub.s32 %s18, %s32
    %s143 = sor.u32 %s141, %s142
    %s144 = ssub.s32 %s19, %s28
    %s145 = sor.u32 %s143, %s144
    %p146 = scmp.eq.s32.totalorder %s145, 0
    %s148 = sadd.s32 %s147, 1
    %s149 = scalar_select %p146, %s147, %s148
    %p152 = pneg %p146
    %p153 = scmp.eq.s32.totalorder %s10, 1
    %p154 = por %p152, %p153
    %p155 = scmp.ne.s32.totalorder %s147, %s150
    %p156 = scmp.eq.s32.totalorder %s10, 0
    %p157 = por %p155, %p156
    %p158 = scmp.ne.s32.totalorder %s147, %s150
    %p159 = scmp.eq.s32.totalorder %s15, 1
    %p160 = por %p158, %p159
    %p161 = scmp.ne.s32.totalorder %s150, %s151
    %p162 = scmp.eq.s32.totalorder %s15, 0
    %p163 = por %p161, %p162
    %p164 = scmp.ne.s32.totalorder %s150, %s151
    %p165 = scmp.eq.s32.totalorder %s16, 1
    %p166 = por %p164, %p165
    %p168 = scmp.ne.s32.totalorder %s151, %s167
    %p169 = scmp.eq.s32.totalorder %s16, 0
    %p170 = por %p168, %p169
    %p171 = scmp.le.s32.totalorder 1, %s10
    %p172 = scmp.lt.s32.totalorder %s10, 3
    %p173 = pnand %p171, %p172
    %p174 = pneg %p173
    // Predicated region
    $region9: #{_lambda_.2} parent=5 // pred_check
      _
    $region10: #{_lambda_.2} parent=5 // pred_check_branch
      %176 = sbr.rel (%p173) target = $region12
    $region11: #{_lambda_.2} parent=5 // pred_region
      %s177 = ssub.s32 %s10, 1
      // Predicated region
      $region13: #{_lambda_.2} parent=11 // pred_check
        %p178 = pneg %p81
      $region14: #{_lambda_.2} parent=11 // pred_check_branch
        %180 = sbr.rel (%p178) target = $region16
      $region15: #{_lambda_.2} parent=11 // pred_region
        %p181 = scmp.lt.s32.totalorder %s22, 0
        %s182 = scalar_select %p181, %s22, 0
        %s183 = smul.addr %s182, 4
        %s184 = scalar_lea.vmem %s1, %s183
      $region16: #{_lambda_.2} parent=11 // pred_fallthru
        _
      // Predicated region
      $region17: #{_lambda_.2} parent=11 // pred_check
        %p185 = pneg %p107
      $region18: #{_lambda_.2} parent=11 // pred_check_branch
        %187 = sbr.rel (%p185) target = $region20
      $region19: #{_lambda_.2} parent=11 // pred_region
        %p188 = scmp.lt.s32.totalorder %s22, 0
        %s189 = scalar_select %p188, %s22, 0
        %s190 = scalar_lea.vmem %s2, %s189
      $region20: #{_lambda_.2} parent=11 // pred_fallthru
        _
      // Predicated region
      $region21: #{_lambda_.2} parent=11 // pred_check
        %p191 = pneg %p133
      $region22: #{_lambda_.2} parent=11 // pred_check_branch
        %193 = sbr.rel (%p191) target = $region24
      $region23: #{_lambda_.2} parent=11 // pred_region
        %p194 = scmp.lt.s32.totalorder %s22, 0
        %s195 = scalar_select %p194, %s22, 0
        %s196 = scalar_lea.vmem %s3, %s195
      $region24: #{_lambda_.2} parent=11 // pred_fallthru
        _
    $region12: #{_lambda_.2} parent=5 // pred_fallthru
      _
    %p197 = scmp.lt.s32.totalorder %s10, 2
    // Predicated region
    $region25: #{_lambda_.2} parent=5 // pred_check
      %p198 = pneg %p197
    $region26: #{_lambda_.2} parent=5 // pred_check_branch
      %200 = sbr.rel (%p198) target = $region28
    $region27: #{_lambda_.2} parent=5 // pred_region
      // Predicated region
      $region29: #{_lambda_.2} parent=27 // pred_check
        %p201 = pneg %p49
      $region30: #{_lambda_.2} parent=27 // pred_check_branch
        %203 = sbr.rel (%p201) target = $region32
      $region31: #{_lambda_.2} parent=27 // pred_region
        %p204 = scmp.lt.s32.totalorder %s17, 1
        %s205 = scalar_select %p204, %s17, 1
        %s206 = smul.addr %s205, 54
        %s207 = smul.addr %s206, 4
        %s208 = scalar_lea.vmem %s0, %s207
      $region32: #{_lambda_.2} parent=27 // pred_fallthru
        _
    $region28: #{_lambda_.2} parent=5 // pred_fallthru
      _
    %p209 = scmp.le.s32.totalorder 1, %s10
    %p210 = scmp.lt.s32.totalorder %s10, 3
    %p211 = pnand %p209, %p210
    %p212 = pneg %p211
    // Predicated region
    $region33: #{_lambda_.2} parent=5 // pred_check
      _
    $region34: #{_lambda_.2} parent=5 // pred_check_branch
      %214 = sbr.rel (%p211) target = $region36
    $region35: #{_lambda_.2} parent=5 // pred_region
      %s215 = ssub.s32 %s10, 1
      %p216 = scmp.lt.s32.totalorder %s20, 1
      %s217 = scalar_select %p216, %s20, 1
      %s218 = smul.addr %s217, 54
      %s219 = smul.addr %s218, 4
      %s220 = scalar_lea.vmem %s0, %s219
      %p221 = pneg %p55
      %p222 = pneg %p52
      %p223 = scmp.lt.s32.totalorder %s22, 0
      %s224 = scalar_select %p223, %s22, 0
      %s225 = smul.addr %s224, 4
      %s226 = scalar_lea.vmem %s1, %s225
      %p227 = pneg %p81
      %p228 = pneg %p78
      %p229 = scmp.lt.s32.totalorder %s22, 0
      %s230 = scalar_select %p229, %s22, 0
      %s231 = scalar_lea.vmem %s2, %s230
      %p232 = pneg %p107
      %p233 = pneg %p104
      %p234 = scmp.lt.s32.totalorder %s22, 0
      %s235 = scalar_select %p234, %s22, 0
      %s236 = scalar_lea.vmem %s3, %s235
      %p237 = pneg %p133
      %p238 = pneg %p130
      %p239 = pneg %p163
      %p240 = pneg %p160
      %s241 = smul.u32 16, %s21
      %p242 = scmp.lt.s32.totalorder %s20, 1
      %s243 = scalar_select %p242, %s20, 1
      %p244 = scmp.lt.s32.totalorder %s241, 15
      %s245 = scalar_select %p244, %s241, 15
      %p246 = scmp.lt.s32.totalorder %s22, 0
      %s247 = scalar_select %p246, %s22, 0
      %s248 = smul.addr %s245, 2
      %s249 = sadd.s32 %s247, %s248
      %s250 = smul.addr %s243, 32
      %s251 = sadd.s32 %s249, %s250
      %s252 = smul.addr %s251, 4
      %s253 = scalar_lea.vmem %s4, %s252
      %p254 = scmp.lt.s32.totalorder %s20, 1
      %s255 = scalar_select %p254, %s20, 1
      %s256 = smul.addr %s255, 54
      %s257 = smul.addr %s256, 4
      %s258 = scalar_lea.vmem %s0, %s257
      %p259 = scmp.lt.s32.totalorder %s22, 0
      %s260 = scalar_select %p259, %s22, 0
      %s261 = smul.addr %s260, 4
      %s262 = scalar_lea.vmem %s1, %s261
      %p263 = scmp.lt.s32.totalorder %s22, 0
      %s264 = scalar_select %p263, %s22, 0
      %s265 = scalar_lea.vmem %s2, %s264
      %p266 = scmp.lt.s32.totalorder %s22, 0
      %s267 = scalar_select %p266, %s22, 0
      %s268 = scalar_lea.vmem %s3, %s267
      %s269 = smul.u32 16, %s21
      %p270 = scmp.lt.s32.totalorder %s20, 1
      %s271 = scalar_select %p270, %s20, 1
      %p272 = scmp.lt.s32.totalorder %s269, 15
      %s273 = scalar_select %p272, %s269, 15
      %p274 = scmp.lt.s32.totalorder %s22, 0
      %s275 = scalar_select %p274, %s22, 0
      %s276 = smul.addr %s273, 2
      %s277 = sadd.s32 %s275, %s276
      %s278 = smul.addr %s271, 32
      %s279 = sadd.s32 %s277, %s278
      %s280 = smul.addr %s279, 4
      %s281 = scalar_lea.vmem %s4, %s280
      %s282 = smul.u32 16, %s21
      %s284 = smul.u32 %s21, 16
      %s285 = smul.u32 %s284, 3
      %s286 = smul.addr %s285, 4
      %s287 = scalar_lea.vmem %s258, %s286
      %v288 = vld [vmem:[%s287] sm:$0xf]
      %v289 = vld [vmem:[%s287 + $0x4] sm:$0xf]
      %v290 = vld [vmem:[%s287 + $0x8] sm:$0x1]
      %v291 = vld [vmem:[%s287 + $0xc] sm:$0xf]
      %v292 = vld [vmem:[%s287 + $0x10] sm:$0xf]
      %v293 = vld [vmem:[%s287 + $0x14] sm:$0x1]
      %v294 = vld [vmem:[%s287 + $0x18] sm:$0xf]
      %v295 = vld [vmem:[%s287 + $0x1c] sm:$0xf]
      %v296 = vld [vmem:[%s287 + $0x20] sm:$0x1]
      %v297 = vld [vmem:[%s287 + $0x24] sm:$0xf]
      %v298 = vld [vmem:[%s287 + $0x28] sm:$0xf]
      %v299 = vld [vmem:[%s287 + $0x2c] sm:$0x1]
      %v300 = vld [vmem:[%s287 + $0x30] sm:$0xf]
      %v301 = vld [vmem:[%s287 + $0x34] sm:$0xf]
      %v302 = vld [vmem:[%s287 + $0x38] sm:$0x1]
      %v303 = vld [vmem:[%s287 + $0x3c] sm:$0xf]
      %v304 = vld [vmem:[%s287 + $0x40] sm:$0xf]
      %v305 = vld [vmem:[%s287 + $0x44] sm:$0x1]
      %v306 = vld [vmem:[%s287 + $0x48] sm:$0xf]
      %v307 = vld [vmem:[%s287 + $0x4c] sm:$0xf]
      %v308 = vld [vmem:[%s287 + $0x50] sm:$0x1]
      %v309 = vld [vmem:[%s287 + $0x54] sm:$0xf]
      %v310 = vld [vmem:[%s287 + $0x58] sm:$0xf]
      %v311 = vld [vmem:[%s287 + $0x5c] sm:$0x1]
      %v312 = vld [vmem:[%s287 + $0x60] sm:$0xf]
      %v313 = vld [vmem:[%s287 + $0x64] sm:$0xf]
      %v314 = vld [vmem:[%s287 + $0x68] sm:$0x1]
      %v315 = vld [vmem:[%s287 + $0x6c] sm:$0xf]
      %v316 = vld [vmem:[%s287 + $0x70] sm:$0xf]
      %v317 = vld [vmem:[%s287 + $0x74] sm:$0x1]
      %v318 = vld [vmem:[%s287 + $0x78] sm:$0xf]
      %v319 = vld [vmem:[%s287 + $0x7c] sm:$0xf]
      %v320 = vld [vmem:[%s287 + $0x80] sm:$0x1]
      %v321 = vld [vmem:[%s287 + $0x84] sm:$0xf]
      %v322 = vld [vmem:[%s287 + $0x88] sm:$0xf]
      %v323 = vld [vmem:[%s287 + $0x8c] sm:$0x1]
      %v324 = vld [vmem:[%s287 + $0x90] sm:$0xf]
      %v325 = vld [vmem:[%s287 + $0x94] sm:$0xf]
      %v326 = vld [vmem:[%s287 + $0x98] sm:$0x1]
      %v327 = vld [vmem:[%s287 + $0x9c] sm:$0xf]
      %v328 = vld [vmem:[%s287 + $0xa0] sm:$0xf]
      %v329 = vld [vmem:[%s287 + $0xa4] sm:$0x1]
      %v330 = vld [vmem:[%s287 + $0xa8] sm:$0xf]
      %v331 = vld [vmem:[%s287 + $0xac] sm:$0xf]
      %v332 = vld [vmem:[%s287 + $0xb0] sm:$0x1]
      %v333 = vld [vmem:[%s287 + $0xb4] sm:$0xf]
      %v334 = vld [vmem:[%s287 + $0xb8] sm:$0xf]
      %v335 = vld [vmem:[%s287 + $0xbc] sm:$0x1]
      %v336 = vld [vmem:[%s287 + $0xc0] sm:$0xf]
      %v337 = vld [vmem:[%s287 + $0xc4] sm:$0xf]
      %v338 = vld [vmem:[%s287 + $0xc8] sm:$0x1]
      %v339 = vld [vmem:[%s287 + $0xcc] sm:$0xf]
      %v340 = vld [vmem:[%s287 + $0xd0] sm:$0xf]
      %v341 = vld [vmem:[%s287 + $0xd4] sm:$0x1]
      %v378 = vunpack.c.l.b16 %v288
      %v379 = vunpack.c.l.b16 %v289
      %v380 = vunpack.c.l.b16 %v291
      %v381 = vunpack.c.l.b16 %v292
      %v382 = vunpack.c.l.b16 %v294
      %v383 = vunpack.c.l.b16 %v295
      %v384 = vunpack.c.l.b16 %v297
      %v385 = vunpack.c.l.b16 %v298
      %v386 = vunpack.c.l.b16 %v300
      %v387 = vunpack.c.l.b16 %v301
      %v388 = vunpack.c.l.b16 %v303
      %v389 = vunpack.c.l.b16 %v304
      %v390 = vunpack.c.l.b16 %v306
      %v391 = vunpack.c.l.b16 %v307
      %v392 = vunpack.c.l.b16 %v309
      %v393 = vunpack.c.l.b16 %v310
      %v394 = vunpack.c.l.b16 %v312
      %v395 = vunpack.c.l.b16 %v313
      %v396 = vunpack.c.l.b16 %v315
      %v397 = vunpack.c.l.b16 %v316
      %v398 = vunpack.c.l.b16 %v318
      %v399 = vunpack.c.l.b16 %v319
      %v400 = vunpack.c.l.b16 %v321
      %v401 = vunpack.c.l.b16 %v322
      %v402 = vunpack.c.l.b16 %v324
      %v403 = vunpack.c.l.b16 %v325
      %v404 = vunpack.c.l.b16 %v327
      %v405 = vunpack.c.l.b16 %v328
      %v406 = vunpack.c.l.b16 %v330
      %v407 = vunpack.c.l.b16 %v331
      %v408 = vunpack.c.l.b16 %v333
      %v409 = vunpack.c.l.b16 %v334
      %v410 = vunpack.c.l.b16 %v336
      %v411 = vunpack.c.l.b16 %v337
      %v412 = vunpack.c.l.b16 %v339
      %v413 = vunpack.c.l.b16 %v340
      %v414 = vpack.c.b16 %v379, %v378
      %v415 = vpack.c.b16 %v381, %v380
      %v416 = vpack.c.b16 %v383, %v382
      %v417 = vpack.c.b16 %v385, %v384
      %v418 = vpack.c.b16 %v387, %v386
      %v419 = vpack.c.b16 %v389, %v388
      %v420 = vpack.c.b16 %v391, %v390
      %v421 = vpack.c.b16 %v393, %v392
      %v422 = vpack.c.b16 %v395, %v394
      %v423 = vpack.c.b16 %v397, %v396
      %v424 = vpack.c.b16 %v399, %v398
      %v425 = vpack.c.b16 %v401, %v400
      %v426 = vpack.c.b16 %v403, %v402
      %v427 = vpack.c.b16 %v405, %v404
      %v428 = vpack.c.b16 %v407, %v406
      %v429 = vpack.c.b16 %v409, %v408
      %v430 = vpack.c.b16 %v411, %v410
      %v431 = vpack.c.b16 %v413, %v412
      %v450 = vunpack.c.l.b16 %v290
      %v451 = vunpack.c.l.b16 %v293
      %v452 = vunpack.c.l.b16 %v296
      %v453 = vunpack.c.l.b16 %v299
      %v454 = vunpack.c.l.b16 %v302
      %v455 = vunpack.c.l.b16 %v305
      %v456 = vunpack.c.l.b16 %v308
      %v457 = vunpack.c.l.b16 %v311
      %v458 = vunpack.c.l.b16 %v314
      %v459 = vunpack.c.l.b16 %v317
      %v460 = vunpack.c.l.b16 %v320
      %v461 = vunpack.c.l.b16 %v323
      %v462 = vunpack.c.l.b16 %v326
      %v463 = vunpack.c.l.b16 %v329
      %v464 = vunpack.c.l.b16 %v332
      %v465 = vunpack.c.l.b16 %v335
      %v466 = vunpack.c.l.b16 %v338
      %v467 = vunpack.c.l.b16 %v341
      %v468 = vpack.c.b16 %v450, %v450
      %v469 = vpack.c.b16 %v451, %v451
      %v470 = vpack.c.b16 %v452, %v452
      %v471 = vpack.c.b16 %v453, %v453
      %v472 = vpack.c.b16 %v454, %v454
      %v473 = vpack.c.b16 %v455, %v455
      %v474 = vpack.c.b16 %v456, %v456
      %v475 = vpack.c.b16 %v457, %v457
      %v476 = vpack.c.b16 %v458, %v458
      %v477 = vpack.c.b16 %v459, %v459
      %v478 = vpack.c.b16 %v460, %v460
      %v479 = vpack.c.b16 %v461, %v461
      %v480 = vpack.c.b16 %v462, %v462
      %v481 = vpack.c.b16 %v463, %v463
      %v482 = vpack.c.b16 %v464, %v464
      %v483 = vpack.c.b16 %v465, %v465
      %v484 = vpack.c.b16 %v466, %v466
      %v485 = vpack.c.b16 %v467, %v467
      %vm486 = vsmask.f32 7424
      %v488 = vshrl.u32 %v414, 16
      %v490 = vshll.u32 %v414, 16
      %v492 = vrot.slane %v490, 1
      %v493 = vor.u32 %v488, %v492
      %v495 = vshll.u32 %v468, 16
      %v497 = vrot.slane %v495, 1
      %v498 = vsel %vm486, %v493, %v497
      %v500 = vshrl.u32 %v415, 16
      %v502 = vshll.u32 %v415, 16
      %v504 = vrot.slane %v502, 1
      %v505 = vor.u32 %v500, %v504
      %v507 = vshll.u32 %v469, 16
      %v509 = vrot.slane %v507, 1
      %v510 = vsel %vm486, %v505, %v509
      %v512 = vshrl.u32 %v416, 16
      %v514 = vshll.u32 %v416, 16
      %v516 = vrot.slane %v514, 1
      %v517 = vor.u32 %v512, %v516
      %v519 = vshll.u32 %v470, 16
      %v521 = vrot.slane %v519, 1
      %v522 = vsel %vm486, %v517, %v521
      %v524 = vshrl.u32 %v417, 16
      %v526 = vshll.u32 %v417, 16
      %v528 = vrot.slane %v526, 1
      %v529 = vor.u32 %v524, %v528
      %v531 = vshll.u32 %v471, 16
      %v533 = vrot.slane %v531, 1
      %v534 = vsel %vm486, %v529, %v533
      %v536 = vshrl.u32 %v418, 16
      %v538 = vshll.u32 %v418, 16
      %v540 = vrot.slane %v538, 1
      %v541 = vor.u32 %v536, %v540
      %v543 = vshll.u32 %v472, 16
      %v545 = vrot.slane %v543, 1
      %v546 = vsel %vm486, %v541, %v545
      %v548 = vshrl.u32 %v419, 16
      %v550 = vshll.u32 %v419, 16
      %v552 = vrot.slane %v550, 1
      %v553 = vor.u32 %v548, %v552
      %v555 = vshll.u32 %v473, 16
      %v557 = vrot.slane %v555, 1
      %v558 = vsel %vm486, %v553, %v557
      %v560 = vshrl.u32 %v420, 16
      %v562 = vshll.u32 %v420, 16
      %v564 = vrot.slane %v562, 1
      %v565 = vor.u32 %v560, %v564
      %v567 = vshll.u32 %v474, 16
      %v569 = vrot.slane %v567, 1
      %v570 = vsel %vm486, %v565, %v569
      %v572 = vshrl.u32 %v421, 16
      %v574 = vshll.u32 %v421, 16
      %v576 = vrot.slane %v574, 1
      %v577 = vor.u32 %v572, %v576
      %v579 = vshll.u32 %v475, 16
      %v581 = vrot.slane %v579, 1
      %v582 = vsel %vm486, %v577, %v581
      %v584 = vshrl.u32 %v422, 16
      %v586 = vshll.u32 %v422, 16
      %v588 = vrot.slane %v586, 1
      %v589 = vor.u32 %v584, %v588
      %v591 = vshll.u32 %v476, 16
      %v593 = vrot.slane %v591, 1
      %v594 = vsel %vm486, %v589, %v593
      %v596 = vshrl.u32 %v423, 16
      %v598 = vshll.u32 %v423, 16
      %v600 = vrot.slane %v598, 1
      %v601 = vor.u32 %v596, %v600
      %v603 = vshll.u32 %v477, 16
      %v605 = vrot.slane %v603, 1
      %v606 = vsel %vm486, %v601, %v605
      %v608 = vshrl.u32 %v424, 16
      %v610 = vshll.u32 %v424, 16
      %v612 = vrot.slane %v610, 1
      %v613 = vor.u32 %v608, %v612
      %v615 = vshll.u32 %v478, 16
      %v617 = vrot.slane %v615, 1
      %v618 = vsel %vm486, %v613, %v617
      %v620 = vshrl.u32 %v425, 16
      %v622 = vshll.u32 %v425, 16
      %v624 = vrot.slane %v622, 1
      %v625 = vor.u32 %v620, %v624
      %v627 = vshll.u32 %v479, 16
      %v629 = vrot.slane %v627, 1
      %v630 = vsel %vm486, %v625, %v629
      %v632 = vshrl.u32 %v426, 16
      %v634 = vshll.u32 %v426, 16
      %v636 = vrot.slane %v634, 1
      %v637 = vor.u32 %v632, %v636
      %v639 = vshll.u32 %v480, 16
      %v641 = vrot.slane %v639, 1
      %v642 = vsel %vm486, %v637, %v641
      %v644 = vshrl.u32 %v427, 16
      %v646 = vshll.u32 %v427, 16
      %v648 = vrot.slane %v646, 1
      %v649 = vor.u32 %v644, %v648
      %v651 = vshll.u32 %v481, 16
      %v653 = vrot.slane %v651, 1
      %v654 = vsel %vm486, %v649, %v653
      %v656 = vshrl.u32 %v428, 16
      %v658 = vshll.u32 %v428, 16
      %v660 = vrot.slane %v658, 1
      %v661 = vor.u32 %v656, %v660
      %v663 = vshll.u32 %v482, 16
      %v665 = vrot.slane %v663, 1
      %v666 = vsel %vm486, %v661, %v665
      %v668 = vshrl.u32 %v429, 16
      %v670 = vshll.u32 %v429, 16
      %v672 = vrot.slane %v670, 1
      %v673 = vor.u32 %v668, %v672
      %v675 = vshll.u32 %v483, 16
      %v677 = vrot.slane %v675, 1
      %v678 = vsel %vm486, %v673, %v677
      %v680 = vshrl.u32 %v430, 16
      %v682 = vshll.u32 %v430, 16
      %v684 = vrot.slane %v682, 1
      %v685 = vor.u32 %v680, %v684
      %v687 = vshll.u32 %v484, 16
      %v689 = vrot.slane %v687, 1
      %v690 = vsel %vm486, %v685, %v689
      %v692 = vshrl.u32 %v431, 16
      %v694 = vshll.u32 %v431, 16
      %v696 = vrot.slane %v694, 1
      %v697 = vor.u32 %v692, %v696
      %v699 = vshll.u32 %v485, 16
      %v701 = vrot.slane %v699, 1
      %v702 = vsel %vm486, %v697, %v701
      %703 = vrot.lane.b32.xlu0 %v498, 64
      %v704 = vpop.permute.xlu0 %703
      %705 = vrot.lane.b32.xlu0 %v510, 64
      %v706 = vpop.permute.xlu0 %705
      %707 = vrot.lane.b32.xlu0 %v522, 64
      %v708 = vpop.permute.xlu0 %707
      %709 = vrot.lane.b32.xlu0 %v534, 64
      %v710 = vpop.permute.xlu0 %709
      %711 = vrot.lane.b32.xlu0 %v546, 64
      %v712 = vpop.permute.xlu0 %711
      %713 = vrot.lane.b32.xlu0 %v558, 64
      %v714 = vpop.permute.xlu0 %713
      %715 = vrot.lane.b32.xlu0 %v570, 64
      %v716 = vpop.permute.xlu0 %715
      %717 = vrot.lane.b32.xlu0 %v582, 64
      %v718 = vpop.permute.xlu0 %717
      %719 = vrot.lane.b32.xlu0 %v594, 64
      %v720 = vpop.permute.xlu0 %719
      %721 = vrot.lane.b32.xlu0 %v606, 64
      %v722 = vpop.permute.xlu0 %721
      %723 = vrot.lane.b32.xlu0 %v618, 64
      %v724 = vpop.permute.xlu0 %723
      %725 = vrot.lane.b32.xlu0 %v630, 64
      %v726 = vpop.permute.xlu0 %725
      %727 = vrot.lane.b32.xlu0 %v642, 64
      %v728 = vpop.permute.xlu0 %727
      %729 = vrot.lane.b32.xlu0 %v654, 64
      %v730 = vpop.permute.xlu0 %729
      %731 = vrot.lane.b32.xlu0 %v666, 64
      %v732 = vpop.permute.xlu0 %731
      %733 = vrot.lane.b32.xlu0 %v678, 64
      %v734 = vpop.permute.xlu0 %733
      %735 = vrot.lane.b32.xlu0 %v690, 64
      %v736 = vpop.permute.xlu0 %735
      %737 = vrot.lane.b32.xlu0 %v702, 64
      %v738 = vpop.permute.xlu0 %737
      %vm739 = vcmask 1046528
      %v740 = vrot.slane %v414, 1
      %v741 = vrot.slane %v468, 1
      %v742 = vsel %vm739, %v740, %v741
      %v743 = vrot.slane %v415, 1
      %v744 = vrot.slane %v469, 1
      %v745 = vsel %vm739, %v743, %v744
      %v746 = vrot.slane %v416, 1
      %v747 = vrot.slane %v470, 1
      %v748 = vsel %vm739, %v746, %v747
      %v749 = vrot.slane %v417, 1
      %v750 = vrot.slane %v471, 1
      %v751 = vsel %vm739, %v749, %v750
      %v752 = vrot.slane %v418, 1
      %v753 = vrot.slane %v472, 1
      %v754 = vsel %vm739, %v752, %v753
      %v755 = vrot.slane %v419, 1
      %v756 = vrot.slane %v473, 1
      %v757 = vsel %vm739, %v755, %v756
      %v758 = vrot.slane %v420, 1
      %v759 = vrot.slane %v474, 1
      %v760 = vsel %vm739, %v758, %v759
      %v761 = vrot.slane %v421, 1
      %v762 = vrot.slane %v475, 1
      %v763 = vsel %vm739, %v761, %v762
      %v764 = vrot.slane %v422, 1
      %v765 = vrot.slane %v476, 1
      %v766 = vsel %vm739, %v764, %v765
      %v767 = vrot.slane %v423, 1
      %v768 = vrot.slane %v477, 1
      %v769 = vsel %vm739, %v767, %v768
      %v770 = vrot.slane %v424, 1
      %v771 = vrot.slane %v478, 1
      %v772 = vsel %vm739, %v770, %v771
      %v773 = vrot.slane %v425, 1
      %v774 = vrot.slane %v479, 1
      %v775 = vsel %vm739, %v773, %v774
      %v776 = vrot.slane %v426, 1
      %v777 = vrot.slane %v480, 1
      %v778 = vsel %vm739, %v776, %v777
      %v779 = vrot.slane %v427, 1
      %v780 = vrot.slane %v481, 1
      %v781 = vsel %vm739, %v779, %v780
      %v782 = vrot.slane %v428, 1
      %v783 = vrot.slane %v482, 1
      %v784 = vsel %vm739, %v782, %v783
      %v785 = vrot.slane %v429, 1
      %v786 = vrot.slane %v483, 1
      %v787 = vsel %vm739, %v785, %v786
      %v788 = vrot.slane %v430, 1
      %v789 = vrot.slane %v484, 1
      %v790 = vsel %vm739, %v788, %v789
      %v791 = vrot.slane %v431, 1
      %v792 = vrot.slane %v485, 1
      %v793 = vsel %vm739, %v791, %v792
      %vm794 = vcmask 523264
      %v796 = vsel %vm794, %v414, %v704
      %v799 = vsel %vm794, %v415, %v706
      %v802 = vsel %vm794, %v416, %v708
      %v805 = vsel %vm794, %v417, %v710
      %v808 = vsel %vm794, %v418, %v712
      %v811 = vsel %vm794, %v419, %v714
      %v814 = vsel %vm794, %v420, %v716
      %v817 = vsel %vm794, %v421, %v718
      %v820 = vsel %vm794, %v422, %v720
      %v823 = vsel %vm794, %v423, %v722
      %v826 = vsel %vm794, %v424, %v724
      %v829 = vsel %vm794, %v425, %v726
      %v832 = vsel %vm794, %v426, %v728
      %v835 = vsel %vm794, %v427, %v730
      %v838 = vsel %vm794, %v428, %v732
      %v841 = vsel %vm794, %v429, %v734
      %v844 = vsel %vm794, %v430, %v736
      %v847 = vsel %vm794, %v431, %v738
      %v849 = vld [vmem:[%s262] sm:$0xf]
      %v850 = vld [vmem:[%s262 + $0x4] sm:$0xf]
      %v851 = vld [vmem:[%s262 + $0x8] sm:$0xf]
      %v852 = vld [vmem:[%s262 + $0xc] sm:$0xf]
      %v853 = vld [vmem:[%s262 + $0x10] sm:$0xf]
      %v854 = vld [vmem:[%s262 + $0x14] sm:$0xf]
      %v855 = vld [vmem:[%s262 + $0x18] sm:$0xf]
      %v856 = vld [vmem:[%s262 + $0x1c] sm:$0xf]
      %v857 = vld [vmem:[%s262 + $0x20] sm:$0xf]
      %v858 = vld [vmem:[%s262 + $0x24] sm:$0xf]
      %v859 = vld [vmem:[%s262 + $0x28] sm:$0xf]
      %v860 = vld [vmem:[%s262 + $0x2c] sm:$0xf]
      %v861 = vld [vmem:[%s262 + $0x30] sm:$0xf]
      %v862 = vld [vmem:[%s262 + $0x34] sm:$0xf]
      %v863 = vld [vmem:[%s262 + $0x38] sm:$0xf]
      %v864 = vld [vmem:[%s262 + $0x3c] sm:$0xf]
      %v865 = vld [vmem:[%s262 + $0x40] sm:$0xf]
      %v866 = vld [vmem:[%s262 + $0x44] sm:$0xf]
      %v867 = vld [vmem:[%s262 + $0x48] sm:$0xf]
      %v868 = vld [vmem:[%s262 + $0x4c] sm:$0xf]
      %v869 = vld [vmem:[%s262 + $0x50] sm:$0xf]
      %v870 = vld [vmem:[%s262 + $0x54] sm:$0xf]
      %v871 = vld [vmem:[%s262 + $0x58] sm:$0xf]
      %v872 = vld [vmem:[%s262 + $0x5c] sm:$0xf]
      %s873 = scalar_lea.vmem %s262, 96
      %v874 = vld [vmem:[%s873] sm:$0xf]
      %v875 = vld [vmem:[%s873 + $0x4] sm:$0xf]
      %v876 = vld [vmem:[%s873 + $0x8] sm:$0xf]
      %v877 = vld [vmem:[%s873 + $0xc] sm:$0xf]
      %v878 = vld [vmem:[%s873 + $0x10] sm:$0xf]
      %v879 = vld [vmem:[%s873 + $0x14] sm:$0xf]
      %v880 = vld [vmem:[%s873 + $0x18] sm:$0xf]
      %v881 = vld [vmem:[%s873 + $0x1c] sm:$0xf]
      %v882 = vld [vmem:[%s873 + $0x20] sm:$0xf]
      %v883 = vld [vmem:[%s873 + $0x24] sm:$0xf]
      %v884 = vld [vmem:[%s873 + $0x28] sm:$0xf]
      %v885 = vld [vmem:[%s873 + $0x2c] sm:$0xf]
      %v886 = vld [vmem:[%s873 + $0x30] sm:$0xf]
      %v887 = vld [vmem:[%s873 + $0x34] sm:$0xf]
      %v888 = vld [vmem:[%s873 + $0x38] sm:$0xf]
      %v889 = vld [vmem:[%s873 + $0x3c] sm:$0xf]
      %v890 = vld [vmem:[%s873 + $0x40] sm:$0xf]
      %v891 = vld [vmem:[%s873 + $0x44] sm:$0xf]
      %v892 = vld [vmem:[%s873 + $0x48] sm:$0xf]
      %v893 = vld [vmem:[%s873 + $0x4c] sm:$0xf]
      %v894 = vld [vmem:[%s873 + $0x50] sm:$0xf]
      %v895 = vld [vmem:[%s873 + $0x54] sm:$0xf]
      %v896 = vld [vmem:[%s873 + $0x58] sm:$0xf]
      %v897 = vld [vmem:[%s873 + $0x5c] sm:$0xf]
      %v922 = vunpack.c.l.b16 %v874
      %v923 = vunpack.c.l.b16 %v875
      %v924 = vunpack.c.l.b16 %v876
      %v925 = vunpack.c.l.b16 %v877
      %v926 = vunpack.c.l.b16 %v878
      %v927 = vunpack.c.l.b16 %v879
      %v928 = vunpack.c.l.b16 %v880
      %v929 = vunpack.c.l.b16 %v881
      %v930 = vunpack.c.l.b16 %v882
      %v931 = vunpack.c.l.b16 %v883
      %v932 = vunpack.c.l.b16 %v884
      %v933 = vunpack.c.l.b16 %v885
      %v934 = vunpack.c.l.b16 %v886
      %v935 = vunpack.c.l.b16 %v887
      %v936 = vunpack.c.l.b16 %v888
      %v937 = vunpack.c.l.b16 %v889
      %v938 = vunpack.c.l.b16 %v890
      %v939 = vunpack.c.l.b16 %v891
      %v940 = vunpack.c.l.b16 %v892
      %v941 = vunpack.c.l.b16 %v893
      %v942 = vunpack.c.l.b16 %v894
      %v943 = vunpack.c.l.b16 %v895
      %v944 = vunpack.c.l.b16 %v896
      %v945 = vunpack.c.l.b16 %v897
      %v946 = vpack.c.b16 %v923, %v922
      %v947 = vpack.c.b16 %v925, %v924
      %v948 = vpack.c.b16 %v927, %v926
      %v949 = vpack.c.b16 %v929, %v928
      %v950 = vpack.c.b16 %v931, %v930
      %v951 = vpack.c.b16 %v933, %v932
      %v952 = vpack.c.b16 %v935, %v934
      %v953 = vpack.c.b16 %v937, %v936
      %v954 = vpack.c.b16 %v939, %v938
      %v955 = vpack.c.b16 %v941, %v940
      %v956 = vpack.c.b16 %v943, %v942
      %v957 = vpack.c.b16 %v945, %v944
      %v971 = vsel %vm794, %v745, 0
      %v974 = vsel %vm794, %v748, 0
      %v977 = vsel %vm794, %v751, 0
      %v980 = vsel %vm794, %v754, 0
      %v983 = vsel %vm794, %v757, 0
      %v986 = vsel %vm794, %v760, 0
      %v989 = vsel %vm794, %v763, 0
      %v992 = vsel %vm794, %v766, 0
      %v995 = vsel %vm794, %v769, 0
      %v998 = vsel %vm794, %v772, 0
      %v1001 = vsel %vm794, %v775, 0
      %v1004 = vsel %vm794, %v778, 0
      %v1007 = vsel %vm794, %v781, 0
      %v1010 = vsel %vm794, %v784, 0
      %v1013 = vsel %vm794, %v787, 0
      %v1016 = vsel %vm794, %v790, 0
      %1018 = vmatprep.subr.bf16.mxu0 0
      %1019 = vmatpush1.bf16.msra.mxu0 %v946
      %1020 = vmatprep.subr.bf16.mxu0 0
      %1021 = vmatpush1.bf16.msra.mxu0 %v947
      %1022 = vmatprep.subr.bf16.mxu0 0
      %1023 = vmatpush1.bf16.msra.mxu0 %v948
      %1024 = vmatprep.subr.bf16.mxu0 0
      %1025 = vmatpush1.bf16.msra.mxu0 %v949
      %1026 = vmatprep.subr.bf16.mxu0 0
      %1027 = vmatpush1.bf16.msra.mxu0 %v950
      %1028 = vmatprep.subr.bf16.mxu0 0
      %1029 = vmatpush1.bf16.msra.mxu0 %v951
      %1030 = vmatprep.subr.bf16.mxu0 0
      %1031 = vmatpush1.bf16.msra.mxu0 %v952
      %1032 = vmatprep.subr.bf16.mxu0 0
      %1033 = vmatpush1.bf16.msra.mxu0 %v953
      %1034 = vmatprep.subr.bf16.mxu0 0
      %1035 = vmatpush1.bf16.msra.mxu0 %v954
      %1036 = vmatprep.subr.bf16.mxu0 0
      %1037 = vmatpush1.bf16.msra.mxu0 %v955
      %1038 = vmatprep.subr.bf16.mxu0 0
      %1039 = vmatpush1.bf16.msra.mxu0 %v956
      %1040 = vmatprep.subr.bf16.mxu0 0
      %1041 = vmatpush1.bf16.msra.mxu0 %v957
      %1042 = vmatprep.subr.bf16.mxu0 0
      %1043 = vmatpush1.bf16.msra.mxu0 0
      %1044 = vmatprep.subr.bf16.mxu0 0
      %1045 = vmatpush1.bf16.msra.mxu0 0
      %1046 = vmatprep.subr.bf16.mxu0 0
      %1047 = vmatpush1.bf16.msra.mxu0 0
      %1048 = vmatprep.subr.bf16.mxu0 0
      %1049 = vmatpush1.bf16.msra.mxu0 0
      %1050 = vmatprep.mubr.bf16.mxu0 %v971
      %1051 = vmatmul.mubr.bf16.gmra.mrb[0].mxu0 %v799
      %v1052 = vpop.f32.mrb[0].mxu0
      %v1053 = vadd.f32 0.0, %v1052
      %v1054 = vpop.f32.mrb[0].mxu0
      %v1055 = vpop.f32.mrb[0].mxu0
      %v1056 = vadd.f32 0.0, %v1055
      %v1057 = vpop.f32.mrb[0].mxu0
      %1058 = vmatprep.mubr.bf16.mxu0 %v974
      %1059 = vmatmul.mubr.bf16.gmra.mrb[0].mxu0 %v802
      %v1060 = vpop.f32.mrb[0].mxu0
      %v1061 = vadd.f32 0.0, %v1060
      %v1062 = vpop.f32.mrb[0].mxu0
      %v1063 = vpop.f32.mrb[0].mxu0
      %v1064 = vadd.f32 0.0, %v1063
      %v1065 = vpop.f32.mrb[0].mxu0
      %1066 = vmatprep.mubr.bf16.mxu0 %v977
      %1067 = vmatmul.mubr.bf16.gmra.mrb[0].mxu0 %v805
      %v1068 = vpop.f32.mrb[0].mxu0
      %v1069 = vadd.f32 0.0, %v1068
      %v1070 = vpop.f32.mrb[0].mxu0
      %v1071 = vpop.f32.mrb[0].mxu0
      %v1072 = vadd.f32 0.0, %v1071
      %v1073 = vpop.f32.mrb[0].mxu0
      %1074 = vmatprep.mubr.bf16.mxu0 %v980
      %1075 = vmatmul.mubr.bf16.gmra.mrb[0].mxu0 %v808
      %v1076 = vpop.f32.mrb[0].mxu0
      %v1077 = vadd.f32 0.0, %v1076
      %v1078 = vpop.f32.mrb[0].mxu0
      %v1079 = vpop.f32.mrb[0].mxu0
      %v1080 = vadd.f32 0.0, %v1079
      %v1081 = vpop.f32.mrb[0].mxu0
      %1082 = vmatprep.mubr.bf16.mxu0 %v983
      %1083 = vmatmul.mubr.bf16.gmra.mrb[0].mxu0 %v811
      %v1084 = vpop.f32.mrb[0].mxu0
      %v1085 = vadd.f32 0.0, %v1084
      %v1086 = vpop.f32.mrb[0].mxu0
      %v1087 = vpop.f32.mrb[0].mxu0
      %v1088 = vadd.f32 0.0, %v1087
      %v1089 = vpop.f32.mrb[0].mxu0
      %1090 = vmatprep.mubr.bf16.mxu0 %v986
      %1091 = vmatmul.mubr.bf16.gmra.mrb[0].mxu0 %v814
      %v1092 = vpop.f32.mrb[0].mxu0
      %v1093 = vadd.f32 0.0, %v1092
      %v1094 = vpop.f32.mrb[0].mxu0
      %v1095 = vpop.f32.mrb[0].mxu0
      %v1096 = vadd.f32 0.0, %v1095
      %v1097 = vpop.f32.mrb[0].mxu0
      %1098 = vmatprep.mubr.bf16.mxu0 %v989
      %1099 = vmatmul.mubr.bf16.gmra.mrb[0].mxu0 %v817
      %v1100 = vpop.f32.mrb[0].mxu0
      %v1101 = vadd.f32 0.0, %v1100
      %v1102 = vpop.f32.mrb[0].mxu0
      %v1103 = vpop.f32.mrb[0].mxu0
      %v1104 = vadd.f32 0.0, %v1103
      %v1105 = vpop.f32.mrb[0].mxu0
      %1106 = vmatprep.mubr.bf16.mxu0 %v992
      %1107 = vmatmul.mubr.bf16.gmra.mrb[0].mxu0 %v820
      %v1108 = vpop.f32.mrb[0].mxu0
      %v1109 = vadd.f32 0.0, %v1108
      %v1110 = vpop.f32.mrb[0].mxu0
      %v1111 = vpop.f32.mrb[0].mxu0
      %v1112 = vadd.f32 0.0, %v1111
      %v1113 = vpop.f32.mrb[0].mxu0
      %1114 = vmatprep.mubr.bf16.mxu0 %v995
      %1115 = vmatmul.mubr.bf16.gmra.mrb[0].mxu0 %v823
      %v1116 = vpop.f32.mrb[0].mxu0
      %v1117 = vadd.f32 0.0, %v1116
      %v1118 = vpop.f32.mrb[0].mxu0
      %v1119 = vpop.f32.mrb[0].mxu0
      %v1120 = vadd.f32 0.0, %v1119
      %v1121 = vpop.f32.mrb[0].mxu0
      %1122 = vmatprep.mubr.bf16.mxu0 %v998
      %1123 = vmatmul.mubr.bf16.gmra.mrb[0].mxu0 %v826
      %v1124 = vpop.f32.mrb[0].mxu0
      %v1125 = vadd.f32 0.0, %v1124
      %v1126 = vpop.f32.mrb[0].mxu0
      %v1127 = vpop.f32.mrb[0].mxu0
      %v1128 = vadd.f32 0.0, %v1127
      %v1129 = vpop.f32.mrb[0].mxu0
      %1130 = vmatprep.mubr.bf16.mxu0 %v1001
      %1131 = vmatmul.mubr.bf16.gmra.mrb[0].mxu0 %v829
      %v1132 = vpop.f32.mrb[0].mxu0
      %v1133 = vadd.f32 0.0, %v1132
      %v1134 = vpop.f32.mrb[0].mxu0
      %v1135 = vpop.f32.mrb[0].mxu0
      %v1136 = vadd.f32 0.0, %v1135
      %v1137 = vpop.f32.mrb[0].mxu0
      %1138 = vmatprep.mubr.bf16.mxu0 %v1004
      %1139 = vmatmul.mubr.bf16.gmra.mrb[0].mxu0 %v832
      %v1140 = vpop.f32.mrb[0].mxu0
      %v1141 = vadd.f32 0.0, %v1140
      %v1142 = vpop.f32.mrb[0].mxu0
      %v1143 = vpop.f32.mrb[0].mxu0
      %v1144 = vadd.f32 0.0, %v1143
      %v1145 = vpop.f32.mrb[0].mxu0
      %1146 = vmatprep.mubr.bf16.mxu0 %v1007
      %1147 = vmatmul.mubr.bf16.gmra.mrb[0].mxu0 %v835
      %v1148 = vpop.f32.mrb[0].mxu0
      %v1149 = vadd.f32 0.0, %v1148
      %v1150 = vpop.f32.mrb[0].mxu0
      %v1151 = vpop.f32.mrb[0].mxu0
      %v1152 = vadd.f32 0.0, %v1151
      %v1153 = vpop.f32.mrb[0].mxu0
      %1154 = vmatprep.mubr.bf16.mxu0 %v1010
      %1155 = vmatmul.mubr.bf16.gmra.mrb[0].mxu0 %v838
      %v1156 = vpop.f32.mrb[0].mxu0
      %v1157 = vadd.f32 0.0, %v1156
      %v1158 = vpop.f32.mrb[0].mxu0
      %v1159 = vpop.f32.mrb[0].mxu0
      %v1160 = vadd.f32 0.0, %v1159
      %v1161 = vpop.f32.mrb[0].mxu0
      %1162 = vmatprep.mubr.bf16.mxu0 %v1013
      %1163 = vmatmul.mubr.bf16.gmra.mrb[0].mxu0 %v841
      %v1164 = vpop.f32.mrb[0].mxu0
      %v1165 = vadd.f32 0.0, %v1164
      %v1166 = vpop.f32.mrb[0].mxu0
      %v1167 = vpop.f32.mrb[0].mxu0
      %v1168 = vadd.f32 0.0, %v1167
      %v1169 = vpop.f32.mrb[0].mxu0
      %1170 = vmatprep.mubr.bf16.mxu0 %v1016
      %1171 = vmatmul.mubr.bf16.gmra.mrb[0].mxu0 %v844
      %v1172 = vpop.f32.mrb[0].mxu0
      %v1173 = vadd.f32 0.0, %v1172
      %v1174 = vpop.f32.mrb[0].mxu0
      %v1175 = vpop.f32.mrb[0].mxu0
      %v1176 = vadd.f32 0.0, %v1175
      %v1177 = vpop.f32.mrb[0].mxu0
      %1178 = vdwg.mxu0
      %v1203 = vunpack.c.l.b16 %v849
      %v1204 = vunpack.c.l.b16 %v850
      %v1205 = vunpack.c.l.b16 %v851
      %v1206 = vunpack.c.l.b16 %v852
      %v1207 = vunpack.c.l.b16 %v853
      %v1208 = vunpack.c.l.b16 %v854
      %v1209 = vunpack.c.l.b16 %v855
      %v1210 = vunpack.c.l.b16 %v856
      %v1211 = vunpack.c.l.b16 %v857
      %v1212 = vunpack.c.l.b16 %v858
      %v1213 = vunpack.c.l.b16 %v859
      %v1214 = vunpack.c.l.b16 %v860
      %v1215 = vunpack.c.l.b16 %v861
      %v1216 = vunpack.c.l.b16 %v862
      %v1217 = vunpack.c.l.b16 %v863
      %v1218 = vunpack.c.l.b16 %v864
      %v1219 = vunpack.c.l.b16 %v865
      %v1220 = vunpack.c.l.b16 %v866
      %v1221 = vunpack.c.l.b16 %v867
      %v1222 = vunpack.c.l.b16 %v868
      %v1223 = vunpack.c.l.b16 %v869
      %v1224 = vunpack.c.l.b16 %v870
      %v1225 = vunpack.c.l.b16 %v871
      %v1226 = vunpack.c.l.b16 %v872
      %v1227 = vpack.c.b16 %v1204, %v1203
      %v1228 = vpack.c.b16 %v1206, %v1205
      %v1229 = vpack.c.b16 %v1208, %v1207
      %v1230 = vpack.c.b16 %v1210, %v1209
      %v1231 = vpack.c.b16 %v1212, %v1211
      %v1232 = vpack.c.b16 %v1214, %v1213
      %v1233 = vpack.c.b16 %v1216, %v1215
      %v1234 = vpack.c.b16 %v1218, %v1217
      %v1235 = vpack.c.b16 %v1220, %v1219
      %v1236 = vpack.c.b16 %v1222, %v1221
      %v1237 = vpack.c.b16 %v1224, %v1223
      %v1238 = vpack.c.b16 %v1226, %v1225
      %v1252 = vsel %vm794, %v742, 0
      %1254 = vmatprep.subr.bf16.mxu0 0
      %1255 = vmatpush1.bf16.msra.mxu0 %v1227
      %1256 = vmatprep.subr.bf16.mxu0 0
      %1257 = vmatpush1.bf16.msra.mxu0 %v1228
      %1258 = vmatprep.subr.bf16.mxu0 0
      %1259 = vmatpush1.bf16.msra.mxu0 %v1229
      %1260 = vmatprep.subr.bf16.mxu0 0
      %1261 = vmatpush1.bf16.msra.mxu0 %v1230
      %1262 = vmatprep.subr.bf16.mxu0 0
      %1263 = vmatpush1.bf16.msra.mxu0 %v1231
      %1264 = vmatprep.subr.bf16.mxu0 0
      %1265 = vmatpush1.bf16.msra.mxu0 %v1232
      %1266 = vmatprep.subr.bf16.mxu0 0
      %1267 = vmatpush1.bf16.msra.mxu0 %v1233
      %1268 = vmatprep.subr.bf16.mxu0 0
      %1269 = vmatpush1.bf16.msra.mxu0 %v1234
      %1270 = vmatprep.subr.bf16.mxu0 0
      %1271 = vmatpush1.bf16.msra.mxu0 %v1235
      %1272 = vmatprep.subr.bf16.mxu0 0
      %1273 = vmatpush1.bf16.msra.mxu0 %v1236
      %1274 = vmatprep.subr.bf16.mxu0 0
      %1275 = vmatpush1.bf16.msra.mxu0 %v1237
      %1276 = vmatprep.subr.bf16.mxu0 0
      %1277 = vmatpush1.bf16.msra.mxu0 %v1238
      %1278 = vmatprep.subr.bf16.mxu0 0
      %1279 = vmatpush1.bf16.msra.mxu0 0
      %1280 = vmatprep.subr.bf16.mxu0 0
      %1281 = vmatpush1.bf16.msra.mxu0 0
      %1282 = vmatprep.subr.bf16.mxu0 0
      %1283 = vmatpush1.bf16.msra.mxu0 0
      %1284 = vmatprep.subr.bf16.mxu0 0
      %1285 = vmatpush1.bf16.msra.mxu0 0
      %1286 = vmatprep.mubr.bf16.mxu0 %v1252
      %1287 = vmatmul.mubr.bf16.gmra.mrb[0].mxu0 %v796
      %v1288 = vpop.f32.mrb[0].mxu0
      %v1289 = vadd.f32 %v1053, %v1288
      %v1290 = vpop.f32.mrb[0].mxu0
      %v1291 = vpop.f32.mrb[0].mxu0
      %v1292 = vadd.f32 %v1056, %v1291
      %v1293 = vpop.f32.mrb[0].mxu0
      %1294 = vmatprep.mubr.bf16.mxu0 %v971
      %1295 = vmatmul.mubr.bf16.gmra.mrb[0].mxu0 %v799
      %v1296 = vpop.f32.mrb[0].mxu0
      %v1297 = vadd.f32 %v1061, %v1296
      %v1298 = vpop.f32.mrb[0].mxu0
      %v1299 = vpop.f32.mrb[0].mxu0
      %v1300 = vadd.f32 %v1064, %v1299
      %v1301 = vpop.f32.mrb[0].mxu0
      %1302 = vmatprep.mubr.bf16.mxu0 %v974
      %1303 = vmatmul.mubr.bf16.gmra.mrb[0].mxu0 %v802
      %v1304 = vpop.f32.mrb[0].mxu0
      %v1305 = vadd.f32 %v1069, %v1304
      %v1306 = vpop.f32.mrb[0].mxu0
      %v1307 = vpop.f32.mrb[0].mxu0
      %v1308 = vadd.f32 %v1072, %v1307
      %v1309 = vpop.f32.mrb[0].mxu0
      %1310 = vmatprep.mubr.bf16.mxu0 %v977
      %1311 = vmatmul.mubr.bf16.gmra.mrb[0].mxu0 %v805
      %v1312 = vpop.f32.mrb[0].mxu0
      %v1313 = vadd.f32 %v1077, %v1312
      %v1314 = vpop.f32.mrb[0].mxu0
      %v1315 = vpop.f32.mrb[0].mxu0
      %v1316 = vadd.f32 %v1080, %v1315
      %v1317 = vpop.f32.mrb[0].mxu0
      %1318 = vmatprep.mubr.bf16.mxu0 %v980
      %1319 = vmatmul.mubr.bf16.gmra.mrb[0].mxu0 %v808
      %v1320 = vpop.f32.mrb[0].mxu0
      %v1321 = vadd.f32 %v1085, %v1320
      %v1322 = vpop.f32.mrb[0].mxu0
      %v1323 = vpop.f32.mrb[0].mxu0
      %v1324 = vadd.f32 %v1088, %v1323
      %v1325 = vpop.f32.mrb[0].mxu0
      %1326 = vmatprep.mubr.bf16.mxu0 %v983
      %1327 = vmatmul.mubr.bf16.gmra.mrb[0].mxu0 %v811
      %v1328 = vpop.f32.mrb[0].mxu0
      %v1329 = vadd.f32 %v1093, %v1328
      %v1330 = vpop.f32.mrb[0].mxu0
      %v1331 = vpop.f32.mrb[0].mxu0
      %v1332 = vadd.f32 %v1096, %v1331
      %v1333 = vpop.f32.mrb[0].mxu0
      %1334 = vmatprep.mubr.bf16.mxu0 %v986
      %1335 = vmatmul.mubr.bf16.gmra.mrb[0].mxu0 %v814
      %v1336 = vpop.f32.mrb[0].mxu0
      %v1337 = vadd.f32 %v1101, %v1336
      %v1338 = vpop.f32.mrb[0].mxu0
      %v1339 = vpop.f32.mrb[0].mxu0
      %v1340 = vadd.f32 %v1104, %v1339
      %v1341 = vpop.f32.mrb[0].mxu0
      %1342 = vmatprep.mubr.bf16.mxu0 %v989
      %1343 = vmatmul.mubr.bf16.gmra.mrb[0].mxu0 %v817
      %v1344 = vpop.f32.mrb[0].mxu0
      %v1345 = vadd.f32 %v1109, %v1344
      %v1346 = vpop.f32.mrb[0].mxu0
      %v1347 = vpop.f32.mrb[0].mxu0
      %v1348 = vadd.f32 %v1112, %v1347
      %v1349 = vpop.f32.mrb[0].mxu0
      %1350 = vmatprep.mubr.bf16.mxu0 %v992
      %1351 = vmatmul.mubr.bf16.gmra.mrb[0].mxu0 %v820
      %v1352 = vpop.f32.mrb[0].mxu0
      %v1353 = vadd.f32 %v1117, %v1352
      %v1354 = vpop.f32.mrb[0].mxu0
      %v1355 = vpop.f32.mrb[0].mxu0
      %v1356 = vadd.f32 %v1120, %v1355
      %v1357 = vpop.f32.mrb[0].mxu0
      %1358 = vmatprep.mubr.bf16.mxu0 %v995
      %1359 = vmatmul.mubr.bf16.gmra.mrb[0].mxu0 %v823
      %v1360 = vpop.f32.mrb[0].mxu0
      %v1361 = vadd.f32 %v1125, %v1360
      %v1362 = vpop.f32.mrb[0].mxu0
      %v1363 = vpop.f32.mrb[0].mxu0
      %v1364 = vadd.f32 %v1128, %v1363
      %v1365 = vpop.f32.mrb[0].mxu0
      %1366 = vmatprep.mubr.bf16.mxu0 %v998
      %1367 = vmatmul.mubr.bf16.gmra.mrb[0].mxu0 %v826
      %v1368 = vpop.f32.mrb[0].mxu0
      %v1369 = vadd.f32 %v1133, %v1368
      %v1370 = vpop.f32.mrb[0].mxu0
      %v1371 = vpop.f32.mrb[0].mxu0
      %v1372 = vadd.f32 %v1136, %v1371
      %v1373 = vpop.f32.mrb[0].mxu0
      %1374 = vmatprep.mubr.bf16.mxu0 %v1001
      %1375 = vmatmul.mubr.bf16.gmra.mrb[0].mxu0 %v829
      %v1376 = vpop.f32.mrb[0].mxu0
      %v1377 = vadd.f32 %v1141, %v1376
      %v1378 = vpop.f32.mrb[0].mxu0
      %v1379 = vpop.f32.mrb[0].mxu0
      %v1380 = vadd.f32 %v1144, %v1379
      %v1381 = vpop.f32.mrb[0].mxu0
      %1382 = vmatprep.mubr.bf16.mxu0 %v1004
      %1383 = vmatmul.mubr.bf16.gmra.mrb[0].mxu0 %v832
      %v1384 = vpop.f32.mrb[0].mxu0
      %v1385 = vadd.f32 %v1149, %v1384
      %v1386 = vpop.f32.mrb[0].mxu0
      %v1387 = vpop.f32.mrb[0].mxu0
      %v1388 = vadd.f32 %v1152, %v1387
      %v1389 = vpop.f32.mrb[0].mxu0
      %1390 = vmatprep.mubr.bf16.mxu0 %v1007
      %1391 = vmatmul.mubr.bf16.gmra.mrb[0].mxu0 %v835
      %v1392 = vpop.f32.mrb[0].mxu0
      %v1393 = vadd.f32 %v1157, %v1392
      %v1394 = vpop.f32.mrb[0].mxu0
      %v1395 = vpop.f32.mrb[0].mxu0
      %v1396 = vadd.f32 %v1160, %v1395
      %v1397 = vpop.f32.mrb[0].mxu0
      %1398 = vmatprep.mubr.bf16.mxu0 %v1010
      %1399 = vmatmul.mubr.bf16.gmra.mrb[0].mxu0 %v838
      %v1400 = vpop.f32.mrb[0].mxu0
      %v1401 = vadd.f32 %v1165, %v1400
      %v1402 = vpop.f32.mrb[0].mxu0
      %v1403 = vpop.f32.mrb[0].mxu0
      %v1404 = vadd.f32 %v1168, %v1403
      %v1405 = vpop.f32.mrb[0].mxu0
      %1406 = vmatprep.mubr.bf16.mxu0 %v1013
      %1407 = vmatmul.mubr.bf16.gmra.mrb[0].mxu0 %v841
      %v1408 = vpop.f32.mrb[0].mxu0
      %v1409 = vadd.f32 %v1173, %v1408
      %v1410 = vpop.f32.mrb[0].mxu0
      %v1411 = vpop.f32.mrb[0].mxu0
      %v1412 = vadd.f32 %v1176, %v1411
      %v1413 = vpop.f32.mrb[0].mxu0
      %1414 = vdwg.mxu0
      %s1415 = scalar_lea.vmem %s262, 192
      %v1416 = vld [vmem:[%s1415] sm:$0xf]
      %v1417 = vld [vmem:[%s1415 + $0x4] sm:$0xf]
      %v1418 = vld [vmem:[%s1415 + $0x8] sm:$0xf]
      %v1419 = vld [vmem:[%s1415 + $0xc] sm:$0xf]
      %v1420 = vld [vmem:[%s1415 + $0x10] sm:$0xf]
      %v1421 = vld [vmem:[%s1415 + $0x14] sm:$0xf]
      %v1422 = vld [vmem:[%s1415 + $0x18] sm:$0xf]
      %v1423 = vld [vmem:[%s1415 + $0x1c] sm:$0xf]
      %v1424 = vld [vmem:[%s1415 + $0x20] sm:$0xf]
      %v1425 = vld [vmem:[%s1415 + $0x24] sm:$0xf]
      %v1426 = vld [vmem:[%s1415 + $0x28] sm:$0xf]
      %v1427 = vld [vmem:[%s1415 + $0x2c] sm:$0xf]
      %v1428 = vld [vmem:[%s1415 + $0x30] sm:$0xf]
      %v1429 = vld [vmem:[%s1415 + $0x34] sm:$0xf]
      %v1430 = vld [vmem:[%s1415 + $0x38] sm:$0xf]
      %v1431 = vld [vmem:[%s1415 + $0x3c] sm:$0xf]
      %v1432 = vld [vmem:[%s1415 + $0x40] sm:$0xf]
      %v1433 = vld [vmem:[%s1415 + $0x44] sm:$0xf]
      %v1434 = vld [vmem:[%s1415 + $0x48] sm:$0xf]
      %v1435 = vld [vmem:[%s1415 + $0x4c] sm:$0xf]
      %v1436 = vld [vmem:[%s1415 + $0x50] sm:$0xf]
      %v1437 = vld [vmem:[%s1415 + $0x54] sm:$0xf]
      %v1438 = vld [vmem:[%s1415 + $0x58] sm:$0xf]
      %v1439 = vld [vmem:[%s1415 + $0x5c] sm:$0xf]
      %v1464 = vunpack.c.l.b16 %v1416
      %v1465 = vunpack.c.l.b16 %v1417
      %v1466 = vunpack.c.l.b16 %v1418
      %v1467 = vunpack.c.l.b16 %v1419
      %v1468 = vunpack.c.l.b16 %v1420
      %v1469 = vunpack.c.l.b16 %v1421
      %v1470 = vunpack.c.l.b16 %v1422
      %v1471 = vunpack.c.l.b16 %v1423
      %v1472 = vunpack.c.l.b16 %v1424
      %v1473 = vunpack.c.l.b16 %v1425
      %v1474 = vunpack.c.l.b16 %v1426
      %v1475 = vunpack.c.l.b16 %v1427
      %v1476 = vunpack.c.l.b16 %v1428
      %v1477 = vunpack.c.l.b16 %v1429
      %v1478 = vunpack.c.l.b16 %v1430
      %v1479 = vunpack.c.l.b16 %v1431
      %v1480 = vunpack.c.l.b16 %v1432
      %v1481 = vunpack.c.l.b16 %v1433
      %v1482 = vunpack.c.l.b16 %v1434
      %v1483 = vunpack.c.l.b16 %v1435
      %v1484 = vunpack.c.l.b16 %v1436
      %v1485 = vunpack.c.l.b16 %v1437
      %v1486 = vunpack.c.l.b16 %v1438
      %v1487 = vunpack.c.l.b16 %v1439
      %v1488 = vpack.c.b16 %v1465, %v1464
      %v1489 = vpack.c.b16 %v1467, %v1466
      %v1490 = vpack.c.b16 %v1469, %v1468
      %v1491 = vpack.c.b16 %v1471, %v1470
      %v1492 = vpack.c.b16 %v1473, %v1472
      %v1493 = vpack.c.b16 %v1475, %v1474
      %v1494 = vpack.c.b16 %v1477, %v1476
      %v1495 = vpack.c.b16 %v1479, %v1478
      %v1496 = vpack.c.b16 %v1481, %v1480
      %v1497 = vpack.c.b16 %v1483, %v1482
      %v1498 = vpack.c.b16 %v1485, %v1484
      %v1499 = vpack.c.b16 %v1487, %v1486
      %v1513 = vsel %vm794, %v793, 0
      %1515 = vmatprep.subr.bf16.mxu0 0
      %1516 = vmatpush1.bf16.msra.mxu0 %v1488
      %1517 = vmatprep.subr.bf16.mxu0 0
      %1518 = vmatpush1.bf16.msra.mxu0 %v1489
      %1519 = vmatprep.subr.bf16.mxu0 0
      %1520 = vmatpush1.bf16.msra.mxu0 %v1490
      %1521 = vmatprep.subr.bf16.mxu0 0
      %1522 = vmatpush1.bf16.msra.mxu0 %v1491
      %1523 = vmatprep.subr.bf16.mxu0 0
      %1524 = vmatpush1.bf16.msra.mxu0 %v1492
      %1525 = vmatprep.subr.bf16.mxu0 0
      %1526 = vmatpush1.bf16.msra.mxu0 %v1493
      %1527 = vmatprep.subr.bf16.mxu0 0
      %1528 = vmatpush1.bf16.msra.mxu0 %v1494
      %1529 = vmatprep.subr.bf16.mxu0 0
      %1530 = vmatpush1.bf16.msra.mxu0 %v1495
      %1531 = vmatprep.subr.bf16.mxu0 0
      %1532 = vmatpush1.bf16.msra.mxu0 %v1496
      %1533 = vmatprep.subr.bf16.mxu0 0
      %1534 = vmatpush1.bf16.msra.mxu0 %v1497
      %1535 = vmatprep.subr.bf16.mxu0 0
      %1536 = vmatpush1.bf16.msra.mxu0 %v1498
      %1537 = vmatprep.subr.bf16.mxu0 0
      %1538 = vmatpush1.bf16.msra.mxu0 %v1499
      %1539 = vmatprep.subr.bf16.mxu0 0
      %1540 = vmatpush1.bf16.msra.mxu0 0
      %1541 = vmatprep.subr.bf16.mxu0 0
      %1542 = vmatpush1.bf16.msra.mxu0 0
      %1543 = vmatprep.subr.bf16.mxu0 0
      %1544 = vmatpush1.bf16.msra.mxu0 0
      %1545 = vmatprep.subr.bf16.mxu0 0
      %1546 = vmatpush1.bf16.msra.mxu0 0
      %1547 = vmatprep.mubr.bf16.mxu0 %v974
      %1548 = vmatmul.mubr.bf16.gmra.mrb[0].mxu0 %v802
      %v1549 = vpop.f32.mrb[0].mxu0
      %v1550 = vadd.f32 0.0, %v1549
      %v1551 = vpop.f32.mrb[0].mxu0
      %v1552 = vpop.f32.mrb[0].mxu0
      %v1553 = vadd.f32 0.0, %v1552
      %v1554 = vpop.f32.mrb[0].mxu0
      %1555 = vmatprep.mubr.bf16.mxu0 %v977
      %1556 = vmatmul.mubr.bf16.gmra.mrb[0].mxu0 %v805
      %v1557 = vpop.f32.mrb[0].mxu0
      %v1558 = vadd.f32 0.0, %v1557
      %v1559 = vpop.f32.mrb[0].mxu0
      %v1560 = vpop.f32.mrb[0].mxu0
      %v1561 = vadd.f32 0.0, %v1560
      %v1562 = vpop.f32.mrb[0].mxu0
      %1563 = vmatprep.mubr.bf16.mxu0 %v980
      %1564 = vmatmul.mubr.bf16.gmra.mrb[0].mxu0 %v808
      %v1565 = vpop.f32.mrb[0].mxu0
      %v1566 = vadd.f32 0.0, %v1565
      %v1567 = vpop.f32.mrb[0].mxu0
      %v1568 = vpop.f32.mrb[0].mxu0
      %v1569 = vadd.f32 0.0, %v1568
      %v1570 = vpop.f32.mrb[0].mxu0
      %1571 = vmatprep.mubr.bf16.mxu0 %v983
      %1572 = vmatmul.mubr.bf16.gmra.mrb[0].mxu0 %v811
      %v1573 = vpop.f32.mrb[0].mxu0
      %v1574 = vadd.f32 0.0, %v1573
      %v1575 = vpop.f32.mrb[0].mxu0
      %v1576 = vpop.f32.mrb[0].mxu0
      %v1577 = vadd.f32 0.0, %v1576
      %v1578 = vpop.f32.mrb[0].mxu0
      %1579 = vmatprep.mubr.bf16.mxu0 %v986
      %1580 = vmatmul.mubr.bf16.gmra.mrb[0].mxu0 %v814
      %v1581 = vpop.f32.mrb[0].mxu0
      %v1582 = vadd.f32 0.0, %v1581
      %v1583 = vpop.f32.mrb[0].mxu0
      %v1584 = vpop.f32.mrb[0].mxu0
      %v1585 = vadd.f32 0.0, %v1584
      %v1586 = vpop.f32.mrb[0].mxu0
      %1587 = vmatprep.mubr.bf16.mxu0 %v989
      %1588 = vmatmul.mubr.bf16.gmra.mrb[0].mxu0 %v817
      %v1589 = vpop.f32.mrb[0].mxu0
      %v1590 = vadd.f32 0.0, %v1589
      %v1591 = vpop.f32.mrb[0].mxu0
      %v1592 = vpop.f32.mrb[0].mxu0
      %v1593 = vadd.f32 0.0, %v1592
      %v1594 = vpop.f32.mrb[0].mxu0
      %1595 = vmatprep.mubr.bf16.mxu0 %v992
      %1596 = vmatmul.mubr.bf16.gmra.mrb[0].mxu0 %v820
      %v1597 = vpop.f32.mrb[0].mxu0
      %v1598 = vadd.f32 0.0, %v1597
      %v1599 = vpop.f32.mrb[0].mxu0
      %v1600 = vpop.f32.mrb[0].mxu0
      %v1601 = vadd.f32 0.0, %v1600
      %v1602 = vpop.f32.mrb[0].mxu0
      %1603 = vmatprep.mubr.bf16.mxu0 %v995
      %1604 = vmatmul.mubr.bf16.gmra.mrb[0].mxu0 %v823
      %v1605 = vpop.f32.mrb[0].mxu0
      %v1606 = vadd.f32 0.0, %v1605
      %v1607 = vpop.f32.mrb[0].mxu0
      %v1608 = vpop.f32.mrb[0].mxu0
      %v1609 = vadd.f32 0.0, %v1608
      %v1610 = vpop.f32.mrb[0].mxu0
      %1611 = vmatprep.mubr.bf16.mxu0 %v998
      %1612 = vmatmul.mubr.bf16.gmra.mrb[0].mxu0 %v826
      %v1613 = vpop.f32.mrb[0].mxu0
      %v1614 = vadd.f32 0.0, %v1613
      %v1615 = vpop.f32.mrb[0].mxu0
      %v1616 = vpop.f32.mrb[0].mxu0
      %v1617 = vadd.f32 0.0, %v1616
      %v1618 = vpop.f32.mrb[0].mxu0
      %1619 = vmatprep.mubr.bf16.mxu0 %v1001
      %1620 = vmatmul.mubr.bf16.gmra.mrb[0].mxu0 %v829
      %v1621 = vpop.f32.mrb[0].mxu0
      %v1622 = vadd.f32 0.0, %v1621
      %v1623 = vpop.f32.mrb[0].mxu0
      %v1624 = vpop.f32.mrb[0].mxu0
      %v1625 = vadd.f32 0.0, %v1624
      %v1626 = vpop.f32.mrb[0].mxu0
      %1627 = vmatprep.mubr.bf16.mxu0 %v1004
      %1628 = vmatmul.mubr.bf16.gmra.mrb[0].mxu0 %v832
      %v1629 = vpop.f32.mrb[0].mxu0
      %v1630 = vadd.f32 0.0, %v1629
      %v1631 = vpop.f32.mrb[0].mxu0
      %v1632 = vpop.f32.mrb[0].mxu0
      %v1633 = vadd.f32 0.0, %v1632
      %v1634 = vpop.f32.mrb[0].mxu0
      %1635 = vmatprep.mubr.bf16.mxu0 %v1007
      %1636 = vmatmul.mubr.bf16.gmra.mrb[0].mxu0 %v835
      %v1637 = vpop.f32.mrb[0].mxu0
      %v1638 = vadd.f32 0.0, %v1637
      %v1639 = vpop.f32.mrb[0].mxu0
      %v1640 = vpop.f32.mrb[0].mxu0
      %v1641 = vadd.f32 0.0, %v1640
      %v1642 = vpop.f32.mrb[0].mxu0
      %1643 = vmatprep.mubr.bf16.mxu0 %v1010
      %1644 = vmatmul.mubr.bf16.gmra.mrb[0].mxu0 %v838
      %v1645 = vpop.f32.mrb[0].mxu0
      %v1646 = vadd.f32 0.0, %v1645
      %v1647 = vpop.f32.mrb[0].mxu0
      %v1648 = vpop.f32.mrb[0].mxu0
      %v1649 = vadd.f32 0.0, %v1648
      %v1650 = vpop.f32.mrb[0].mxu0
      %1651 = vmatprep.mubr.bf16.mxu0 %v1013
      %1652 = vmatmul.mubr.bf16.gmra.mrb[0].mxu0 %v841
      %v1653 = vpop.f32.mrb[0].mxu0
      %v1654 = vadd.f32 0.0, %v1653
      %v1655 = vpop.f32.mrb[0].mxu0
      %v1656 = vpop.f32.mrb[0].mxu0
      %v1657 = vadd.f32 0.0, %v1656
      %v1658 = vpop.f32.mrb[0].mxu0
      %1659 = vmatprep.mubr.bf16.mxu0 %v1016
      %1660 = vmatmul.mubr.bf16.gmra.mrb[0].mxu0 %v844
      %v1661 = vpop.f32.mrb[0].mxu0
      %v1662 = vadd.f32 0.0, %v1661
      %v1663 = vpop.f32.mrb[0].mxu0
      %v1664 = vpop.f32.mrb[0].mxu0
      %v1665 = vadd.f32 0.0, %v1664
      %v1666 = vpop.f32.mrb[0].mxu0
      %1667 = vmatprep.mubr.bf16.mxu0 %v1513
      %1668 = vmatmul.mubr.bf16.gmra.mrb[0].mxu0 %v847
      %v1669 = vpop.f32.mrb[0].mxu0
      %v1670 = vadd.f32 0.0, %v1669
      %v1671 = vpop.f32.mrb[0].mxu0
      %v1672 = vpop.f32.mrb[0].mxu0
      %v1673 = vadd.f32 0.0, %v1672
      %v1674 = vpop.f32.mrb[0].mxu0
      %1675 = vdwg.mxu0
      %v1676 = vadd.f32 %v1289, %v1550
      %v1677 = vadd.f32 %v1292, %v1553
      %v1678 = vadd.f32 %v1297, %v1558
      %v1679 = vadd.f32 %v1300, %v1561
      %v1680 = vadd.f32 %v1305, %v1566
      %v1681 = vadd.f32 %v1308, %v1569
      %v1682 = vadd.f32 %v1313, %v1574
      %v1683 = vadd.f32 %v1316, %v1577
      %v1684 = vadd.f32 %v1321, %v1582
      %v1685 = vadd.f32 %v1324, %v1585
      %v1686 = vadd.f32 %v1329, %v1590
      %v1687 = vadd.f32 %v1332, %v1593
      %v1688 = vadd.f32 %v1337, %v1598
      %v1689 = vadd.f32 %v1340, %v1601
      %v1690 = vadd.f32 %v1345, %v1606
      %v1691 = vadd.f32 %v1348, %v1609
      %v1692 = vadd.f32 %v1353, %v1614
      %v1693 = vadd.f32 %v1356, %v1617
      %v1694 = vadd.f32 %v1361, %v1622
      %v1695 = vadd.f32 %v1364, %v1625
      %v1696 = vadd.f32 %v1369, %v1630
      %v1697 = vadd.f32 %v1372, %v1633
      %v1698 = vadd.f32 %v1377, %v1638
      %v1699 = vadd.f32 %v1380, %v1641
      %v1700 = vadd.f32 %v1385, %v1646
      %v1701 = vadd.f32 %v1388, %v1649
      %v1702 = vadd.f32 %v1393, %v1654
      %v1703 = vadd.f32 %v1396, %v1657
      %v1704 = vadd.f32 %v1401, %v1662
      %v1705 = vadd.f32 %v1404, %v1665
      %v1706 = vadd.f32 %v1409, %v1670
      %v1707 = vadd.f32 %v1412, %v1673
      %v1708 = vld [vmem:[%s265] sm:$0x1]
      %v1710 = vlaneseq
      %v1711 = vshrl.u32 %v1710, 7
      %v1712 = vsub.s32 0, %v1711
      %v1713 = vrot.slane %v1708, %v1712
      %v1715 = vmul.f32 %v1676, %v1713
      %v1716 = vmul.f32 %v1677, %v1713
      %v1717 = vmul.f32 %v1678, %v1713
      %v1718 = vmul.f32 %v1679, %v1713
      %v1719 = vmul.f32 %v1680, %v1713
      %v1720 = vmul.f32 %v1681, %v1713
      %v1721 = vmul.f32 %v1682, %v1713
      %v1722 = vmul.f32 %v1683, %v1713
      %v1723 = vmul.f32 %v1684, %v1713
      %v1724 = vmul.f32 %v1685, %v1713
      %v1725 = vmul.f32 %v1686, %v1713
      %v1726 = vmul.f32 %v1687, %v1713
      %v1727 = vmul.f32 %v1688, %v1713
      %v1728 = vmul.f32 %v1689, %v1713
      %v1729 = vmul.f32 %v1690, %v1713
      %v1730 = vmul.f32 %v1691, %v1713
      %v1731 = vmul.f32 %v1692, %v1713
      %v1732 = vmul.f32 %v1693, %v1713
      %v1733 = vmul.f32 %v1694, %v1713
      %v1734 = vmul.f32 %v1695, %v1713
      %v1735 = vmul.f32 %v1696, %v1713
      %v1736 = vmul.f32 %v1697, %v1713
      %v1737 = vmul.f32 %v1698, %v1713
      %v1738 = vmul.f32 %v1699, %v1713
      %v1739 = vmul.f32 %v1700, %v1713
      %v1740 = vmul.f32 %v1701, %v1713
      %v1741 = vmul.f32 %v1702, %v1713
      %v1742 = vmul.f32 %v1703, %v1713
      %v1743 = vmul.f32 %v1704, %v1713
      %v1744 = vmul.f32 %v1705, %v1713
      %v1745 = vmul.f32 %v1706, %v1713
      %v1746 = vmul.f32 %v1707, %v1713
      %v1747 = vld [vmem:[%s268] sm:$0x1]
      %v1749 = vlaneseq
      %v1750 = vshrl.u32 %v1749, 7
      %v1751 = vsub.s32 0, %v1750
      %v1752 = vrot.slane %v1747, %v1751
      %v1754 = vadd.f32 %v1715, %v1752
      %v1755 = vadd.f32 %v1716, %v1752
      %v1756 = vadd.f32 %v1717, %v1752
      %v1757 = vadd.f32 %v1718, %v1752
      %v1758 = vadd.f32 %v1719, %v1752
      %v1759 = vadd.f32 %v1720, %v1752
      %v1760 = vadd.f32 %v1721, %v1752
      %v1761 = vadd.f32 %v1722, %v1752
      %v1762 = vadd.f32 %v1723, %v1752
      %v1763 = vadd.f32 %v1724, %v1752
      %v1764 = vadd.f32 %v1725, %v1752
      %v1765 = vadd.f32 %v1726, %v1752
      %v1766 = vadd.f32 %v1727, %v1752
      %v1767 = vadd.f32 %v1728, %v1752
      %v1768 = vadd.f32 %v1729, %v1752
      %v1769 = vadd.f32 %v1730, %v1752
      %v1770 = vadd.f32 %v1731, %v1752
      %v1771 = vadd.f32 %v1732, %v1752
      %v1772 = vadd.f32 %v1733, %v1752
      %v1773 = vadd.f32 %v1734, %v1752
      %v1774 = vadd.f32 %v1735, %v1752
      %v1775 = vadd.f32 %v1736, %v1752
      %v1776 = vadd.f32 %v1737, %v1752
      %v1777 = vadd.f32 %v1738, %v1752
      %v1778 = vadd.f32 %v1739, %v1752
      %v1779 = vadd.f32 %v1740, %v1752
      %v1780 = vadd.f32 %v1741, %v1752
      %v1781 = vadd.f32 %v1742, %v1752
      %v1782 = vadd.f32 %v1743, %v1752
      %v1783 = vadd.f32 %v1744, %v1752
      %v1784 = vadd.f32 %v1745, %v1752
      %v1785 = vadd.f32 %v1746, %v1752
      %v1786 = vmax.f32 %v1754, 0.0
      %v1787 = vmax.f32 %v1755, 0.0
      %v1788 = vmax.f32 %v1756, 0.0
      %v1789 = vmax.f32 %v1757, 0.0
      %v1790 = vmax.f32 %v1758, 0.0
      %v1791 = vmax.f32 %v1759, 0.0
      %v1792 = vmax.f32 %v1760, 0.0
      %v1793 = vmax.f32 %v1761, 0.0
      %v1794 = vmax.f32 %v1762, 0.0
      %v1795 = vmax.f32 %v1763, 0.0
      %v1796 = vmax.f32 %v1764, 0.0
      %v1797 = vmax.f32 %v1765, 0.0
      %v1798 = vmax.f32 %v1766, 0.0
      %v1799 = vmax.f32 %v1767, 0.0
      %v1800 = vmax.f32 %v1768, 0.0
      %v1801 = vmax.f32 %v1769, 0.0
      %v1802 = vmax.f32 %v1770, 0.0
      %v1803 = vmax.f32 %v1771, 0.0
      %v1804 = vmax.f32 %v1772, 0.0
      %v1805 = vmax.f32 %v1773, 0.0
      %v1806 = vmax.f32 %v1774, 0.0
      %v1807 = vmax.f32 %v1775, 0.0
      %v1808 = vmax.f32 %v1776, 0.0
      %v1809 = vmax.f32 %v1777, 0.0
      %v1810 = vmax.f32 %v1778, 0.0
      %v1811 = vmax.f32 %v1779, 0.0
      %v1812 = vmax.f32 %v1780, 0.0
      %v1813 = vmax.f32 %v1781, 0.0
      %v1814 = vmax.f32 %v1782, 0.0
      %v1815 = vmax.f32 %v1783, 0.0
      %v1816 = vmax.f32 %v1784, 0.0
      %v1817 = vmax.f32 %v1785, 0.0
      %v1818 = vpack.c.bf16 %v1787, %v1786
      %v1819 = vpack.c.bf16 %v1789, %v1788
      %v1820 = vpack.c.bf16 %v1791, %v1790
      %v1821 = vpack.c.bf16 %v1793, %v1792
      %v1822 = vpack.c.bf16 %v1795, %v1794
      %v1823 = vpack.c.bf16 %v1797, %v1796
      %v1824 = vpack.c.bf16 %v1799, %v1798
      %v1825 = vpack.c.bf16 %v1801, %v1800
      %v1826 = vpack.c.bf16 %v1803, %v1802
      %v1827 = vpack.c.bf16 %v1805, %v1804
      %v1828 = vpack.c.bf16 %v1807, %v1806
      %v1829 = vpack.c.bf16 %v1809, %v1808
      %v1830 = vpack.c.bf16 %v1811, %v1810
      %v1831 = vpack.c.bf16 %v1813, %v1812
      %v1832 = vpack.c.bf16 %v1815, %v1814
      %v1833 = vpack.c.bf16 %v1817, %v1816
      %v1850 = vunpack.c.l.b16 %v1818
      %v1851 = vunpack.c.h.b16 %v1818
      %v1852 = vunpack.c.l.b16 %v1819
      %v1853 = vunpack.c.h.b16 %v1819
      %v1854 = vunpack.c.l.b16 %v1820
      %v1855 = vunpack.c.h.b16 %v1820
      %v1856 = vunpack.c.l.b16 %v1821
      %v1857 = vunpack.c.h.b16 %v1821
      %v1858 = vunpack.c.l.b16 %v1822
      %v1859 = vunpack.c.h.b16 %v1822
      %v1860 = vunpack.c.l.b16 %v1823
      %v1861 = vunpack.c.h.b16 %v1823
      %v1862 = vunpack.c.l.b16 %v1824
      %v1863 = vunpack.c.h.b16 %v1824
      %v1864 = vunpack.c.l.b16 %v1825
      %v1865 = vunpack.c.h.b16 %v1825
      %v1866 = vunpack.c.l.b16 %v1826
      %v1867 = vunpack.c.h.b16 %v1826
      %v1868 = vunpack.c.l.b16 %v1827
      %v1869 = vunpack.c.h.b16 %v1827
      %v1870 = vunpack.c.l.b16 %v1828
      %v1871 = vunpack.c.h.b16 %v1828
      %v1872 = vunpack.c.l.b16 %v1829
      %v1873 = vunpack.c.h.b16 %v1829
      %v1874 = vunpack.c.l.b16 %v1830
      %v1875 = vunpack.c.h.b16 %v1830
      %v1876 = vunpack.c.l.b16 %v1831
      %v1877 = vunpack.c.h.b16 %v1831
      %v1878 = vunpack.c.l.b16 %v1832
      %v1879 = vunpack.c.h.b16 %v1832
      %v1880 = vunpack.c.l.b16 %v1833
      %v1881 = vunpack.c.h.b16 %v1833
      %v1882 = vpack.c.b16 %v1850, %v1850
      %v1883 = vpack.c.b16 %v1851, %v1851
      %v1884 = vpack.c.b16 %v1852, %v1852
      %v1885 = vpack.c.b16 %v1853, %v1853
      %v1886 = vpack.c.b16 %v1854, %v1854
      %v1887 = vpack.c.b16 %v1855, %v1855
      %v1888 = vpack.c.b16 %v1856, %v1856
      %v1889 = vpack.c.b16 %v1857, %v1857
      %v1890 = vpack.c.b16 %v1858, %v1858
      %v1891 = vpack.c.b16 %v1859, %v1859
      %v1892 = vpack.c.b16 %v1860, %v1860
      %v1893 = vpack.c.b16 %v1861, %v1861
      %v1894 = vpack.c.b16 %v1862, %v1862
      %v1895 = vpack.c.b16 %v1863, %v1863
      %v1896 = vpack.c.b16 %v1864, %v1864
      %v1897 = vpack.c.b16 %v1865, %v1865
      %v1898 = vpack.c.b16 %v1866, %v1866
      %v1899 = vpack.c.b16 %v1867, %v1867
      %v1900 = vpack.c.b16 %v1868, %v1868
      %v1901 = vpack.c.b16 %v1869, %v1869
      %v1902 = vpack.c.b16 %v1870, %v1870
      %v1903 = vpack.c.b16 %v1871, %v1871
      %v1904 = vpack.c.b16 %v1872, %v1872
      %v1905 = vpack.c.b16 %v1873, %v1873
      %v1906 = vpack.c.b16 %v1874, %v1874
      %v1907 = vpack.c.b16 %v1875, %v1875
      %v1908 = vpack.c.b16 %v1876, %v1876
      %v1909 = vpack.c.b16 %v1877, %v1877
      %v1910 = vpack.c.b16 %v1878, %v1878
      %v1911 = vpack.c.b16 %v1879, %v1879
      %v1912 = vpack.c.b16 %v1880, %v1880
      %v1913 = vpack.c.b16 %v1881, %v1881
      %1946 = vst [vmem:[%s281] sm:$0xf] %v1882
      %1947 = vst [vmem:[%s281 + $0x4] sm:$0xf] %v1883
      %1948 = vst [vmem:[%s281 + $0x8] sm:$0xf] %v1884
      %1949 = vst [vmem:[%s281 + $0xc] sm:$0xf] %v1885
      %1950 = vst [vmem:[%s281 + $0x10] sm:$0xf] %v1886
      %1951 = vst [vmem:[%s281 + $0x14] sm:$0xf] %v1887
      %1952 = vst [vmem:[%s281 + $0x18] sm:$0xf] %v1888
      %1953 = vst [vmem:[%s281 + $0x1c] sm:$0xf] %v1889
      %1954 = vst [vmem:[%s281 + $0x20] sm:$0xf] %v1890
      %1955 = vst [vmem:[%s281 + $0x24] sm:$0xf] %v1891
      %1956 = vst [vmem:[%s281 + $0x28] sm:$0xf] %v1892
      %1957 = vst [vmem:[%s281 + $0x2c] sm:$0xf] %v1893
      %1958 = vst [vmem:[%s281 + $0x30] sm:$0xf] %v1894
      %1959 = vst [vmem:[%s281 + $0x34] sm:$0xf] %v1895
      %1960 = vst [vmem:[%s281 + $0x38] sm:$0xf] %v1896
      %1961 = vst [vmem:[%s281 + $0x3c] sm:$0xf] %v1897
      %1962 = vst [vmem:[%s281 + $0x40] sm:$0xf] %v1898
      %1963 = vst [vmem:[%s281 + $0x44] sm:$0xf] %v1899
      %1964 = vst [vmem:[%s281 + $0x48] sm:$0xf] %v1900
      %1965 = vst [vmem:[%s281 + $0x4c] sm:$0xf] %v1901
      %1966 = vst [vmem:[%s281 + $0x50] sm:$0xf] %v1902
      %1967 = vst [vmem:[%s281 + $0x54] sm:$0xf] %v1903
      %1968 = vst [vmem:[%s281 + $0x58] sm:$0xf] %v1904
      %1969 = vst [vmem:[%s281 + $0x5c] sm:$0xf] %v1905
      %1970 = vst [vmem:[%s281 + $0x60] sm:$0xf] %v1906
      %1971 = vst [vmem:[%s281 + $0x64] sm:$0xf] %v1907
      %1972 = vst [vmem:[%s281 + $0x68] sm:$0xf] %v1908
      %1973 = vst [vmem:[%s281 + $0x6c] sm:$0xf] %v1909
      %1974 = vst [vmem:[%s281 + $0x70] sm:$0xf] %v1910
      %1975 = vst [vmem:[%s281 + $0x74] sm:$0xf] %v1911
      %1976 = vst [vmem:[%s281 + $0x78] sm:$0xf] %v1912
      %1977 = vst [vmem:[%s281 + $0x7c] sm:$0xf] %v1913
      %s1978 = smul.u32 16, %s21
      %p1979 = scmp.lt.s32.totalorder %s20, 1
      %s1980 = scalar_select %p1979, %s20, 1
      %p1981 = scmp.lt.s32.totalorder %s1978, 15
      %s1982 = scalar_select %p1981, %s1978, 15
      %p1983 = scmp.lt.s32.totalorder %s22, 0
      %s1984 = scalar_select %p1983, %s22, 0
      %s1985 = smul.addr %s1982, 2
      %s1986 = sadd.s32 %s1984, %s1985
      %s1987 = smul.addr %s1980, 32
      %s1988 = sadd.s32 %s1986, %s1987
      %s1989 = smul.addr %s1988, 4
      %s1990 = scalar_lea.vmem %s4, %s1989
      // Predicated region
      $region37: #{_lambda_.2} parent=35 // pred_check
        %p1991 = pneg %p160
      $region38: #{_lambda_.2} parent=35 // pred_check_branch
        %1993 = sbr.rel (%p1991) target = $region40
      $region39: #{_lambda_.2} parent=35 // pred_region
        %s1994 = smul.u32 16, %s21
      $region40: #{_lambda_.2} parent=35 // pred_fallthru
        _
    $region36: #{_lambda_.2} parent=5 // pred_fallthru
      _
    %p1995 = scmp.le.s32.totalorder 2, %s10
    // Predicated region
    $region41: #{_lambda_.2} parent=5 // pred_check
      %p1996 = pneg %p1995
    $region42: #{_lambda_.2} parent=5 // pred_check_branch
      %1998 = sbr.rel (%p1996) target = $region44
    $region43: #{_lambda_.2} parent=5 // pred_region
      %s1999 = ssub.s32 %s10, 2
      // Predicated region
      $region45: #{_lambda_.2} parent=43 // pred_check
        %p2000 = pneg %p166
      $region46: #{_lambda_.2} parent=43 // pred_check_branch
        %2002 = sbr.rel (%p2000) target = $region48
      $region47: #{_lambda_.2} parent=43 // pred_region
        %s2003 = smul.u32 16, %s24
        %p2004 = scmp.lt.s32.totalorder %s23, 1
        %s2005 = scalar_select %p2004, %s23, 1
        %p2006 = scmp.lt.s32.totalorder %s2003, 15
        %s2007 = scalar_select %p2006, %s2003, 15
        %p2008 = scmp.lt.s32.totalorder %s25, 0
        %s2009 = scalar_select %p2008, %s25, 0
        %s2010 = smul.addr %s2007, 2
        %s2011 = sadd.s32 %s2009, %s2010
        %s2012 = smul.addr %s2005, 32
        %s2013 = sadd.s32 %s2011, %s2012
        %s2014 = smul.addr %s2013, 4
        %s2015 = scalar_lea.vmem %s4, %s2014
      $region48: #{_lambda_.2} parent=43 // pred_fallthru
        _
    $region44: #{_lambda_.2} parent=5 // pred_fallthru
      _
  $region6: #{_lambda_.2} parent=0 // loop_footer
    %s14 = sadd.s32 1, %s10
  $region7: #{_lambda_.2} parent=0 // loop_footer_branch
    %9 = sbr.rel target = $region3
  $region8: #{_lambda_.2} parent=0 // loop_exit
    _

// kernel: _lambda_.3
$region0: #{_lambda_.3}
  #allocation0 [shape = 'u32[]', space=smem, size = 0x4, offset = 0x4, fixed_abs, tag = 'smem constant byte address 0x4 - core index']
  #allocation1 [shape = 'u32[144,128]{1,0:T(1,128)}', space=vmem, size = 0x12000, scoped, tag = 'internal scratch']
  %s0 = inlined_call_operand.vmem [shape: bf16[2,18,18,64], index: 0, kind: input, shape index: {}]
  %s1 = inlined_call_operand.vmem [shape: bf16[3,192,128], index: 1, kind: input, shape index: {}]
  %s2 = inlined_call_operand.vmem [shape: f32[1,128], index: 2, kind: input, shape index: {}]
  %s3 = inlined_call_operand.vmem [shape: f32[1,128], index: 3, kind: input, shape index: {}]
  %s4 = inlined_call_operand.vmem [shape: bf16[2,16,16,128], index: 4, kind: input, shape index: {}]
  %s5 = inlined_call_operand.vmem [shape: bf16[2,16,16,128], index: 5, kind: output, shape index: {}]
  %s6 = sld [smem:[#allocation0]]
  $region53: #{_lambda_.3} parent=0
    _
  %s8 = ssub.s32 1, %s6
  %s9 = scalar_select 0, %s8, %s6
  loop: start=0, step=1, limit=4
  $region2: #{_lambda_.3} parent=0 // loop_pre_header
    _
  $region3: #{_lambda_.3} parent=0 // loop_header
    %s11 = sphi 0, %s15
    %p12 = scmp.ge.s32.totalorder %s11, 4
    %s18 = sphi 0, %s37
    %s19 = sphi 0, %s33
    %s20 = sphi 0, %s29
    %s21 = sphi 0, %s18
    %s22 = sphi 0, %s19
    %s23 = sphi 0, %s20
    %s24 = sphi 0, %s21
    %s25 = sphi 0, %s22
    %s26 = sphi 0, %s23
    %s40 = sphi 0, %s42
    %s43 = sphi 0, %s40
    %s44 = sphi 0, %s43
    %s60 = sphi 0, %s44
    %s66 = sphi 0, %s68
    %s69 = sphi 0, %s66
    %s70 = sphi 0, %s69
    %s86 = sphi 0, %s70
    %s92 = sphi 0, %s94
    %s95 = sphi 0, %s92
    %s96 = sphi 0, %s95
    %s112 = sphi 0, %s96
    %s118 = sphi 0, %s120
    %s121 = sphi 0, %s118
    %s122 = sphi 0, %s121
    %s138 = sphi 0, %s122
    %s148 = sphi 0, %s150
    %s151 = sphi 0, %s148
    %s152 = sphi 0, %s151
    %s168 = sphi 0, %s152
    %s178 = sphi 0, %s180
    %s181 = sphi 0, %s178
    %s182 = sphi 0, %s181
    %s198 = sphi 0, %s182
  $region4: #{_lambda_.3} parent=0 // loop_header_branch
    %14 = sbr.rel (%p12) target = $region8
  $region5: #{_lambda_.3} parent=0 // loop_body
    %s16 = ssub.s32 %s11, 1
    %s17 = ssub.s32 %s11, 2
    %s27 = sadd.s32 1, %s20
    %p28 = scmp.ge.s32.totalorder %s27, 1
    %s29 = scalar_select %p28, 0, %s27
    %s30 = sadd.s32 1, %s19
    %s31 = scalar_select %p28, %s30, %s19
    %p32 = scmp.ge.s32.totalorder %s31, 1
    %s33 = scalar_select %p32, 0, %s31
    %s34 = sadd.s32 1, %s18
    %s35 = scalar_select %p32, %s34, %s18
    %p36 = scmp.ge.s32.totalorder %s35, 2
    %s37 = scalar_select %p36, 0, %s35
    %s38 = ssub.s32 %s18, %s37
    %p39 = scmp.eq.s32.totalorder %s38, 0
    %s41 = sadd.s32 %s40, 1
    %s42 = scalar_select %p39, %s40, %s41
    %p45 = pneg %p39
    %p46 = scmp.eq.s32.totalorder %s11, 1
    %p47 = por %p45, %p46
    %p48 = scmp.ne.s32.totalorder %s40, %s43
    %p49 = scmp.eq.s32.totalorder %s11, 0
    %p50 = por %p48, %p49
    %p51 = scmp.ne.s32.totalorder %s40, %s43
    %p52 = scmp.eq.s32.totalorder %s16, 1
    %p53 = por %p51, %p52
    %p54 = scmp.ne.s32.totalorder %s43, %s44
    %p55 = scmp.eq.s32.totalorder %s16, 0
    %p56 = por %p54, %p55
    %p57 = scmp.ne.s32.totalorder %s43, %s44
    %p58 = scmp.eq.s32.totalorder %s17, 1
    %p59 = por %p57, %p58
    %p61 = scmp.ne.s32.totalorder %s44, %s60
    %p62 = scmp.eq.s32.totalorder %s17, 0
    %p63 = por %p61, %p62
    %s64 = ssub.s32 %s20, %s29
    %p65 = scmp.eq.s32.totalorder %s64, 0
    %s67 = sadd.s32 %s66, 1
    %s68 = scalar_select %p65, %s66, %s67
    %p71 = pneg %p65
    %p72 = scmp.eq.s32.totalorder %s11, 1
    %p73 = por %p71, %p72
    %p74 = scmp.ne.s32.totalorder %s66, %s69
    %p75 = scmp.eq.s32.totalorder %s11, 0
    %p76 = por %p74, %p75
    %p77 = scmp.ne.s32.totalorder %s66, %s69
    %p78 = scmp.eq.s32.totalorder %s16, 1
    %p79 = por %p77, %p78
    %p80 = scmp.ne.s32.totalorder %s69, %s70
    %p81 = scmp.eq.s32.totalorder %s16, 0
    %p82 = por %p80, %p81
    %p83 = scmp.ne.s32.totalorder %s69, %s70
    %p84 = scmp.eq.s32.totalorder %s17, 1
    %p85 = por %p83, %p84
    %p87 = scmp.ne.s32.totalorder %s70, %s86
    %p88 = scmp.eq.s32.totalorder %s17, 0
    %p89 = por %p87, %p88
    %s90 = ssub.s32 %s20, %s29
    %p91 = scmp.eq.s32.totalorder %s90, 0
    %s93 = sadd.s32 %s92, 1
    %s94 = scalar_select %p91, %s92, %s93
    %p97 = pneg %p91
    %p98 = scmp.eq.s32.totalorder %s11, 1
    %p99 = por %p97, %p98
    %p100 = scmp.ne.s32.totalorder %s92, %s95
    %p101 = scmp.eq.s32.totalorder %s11, 0
    %p102 = por %p100, %p101
    %p103 = scmp.ne.s32.totalorder %s92, %s95
    %p104 = scmp.eq.s32.totalorder %s16, 1
    %p105 = por %p103, %p104
    %p106 = scmp.ne.s32.totalorder %s95, %s96
    %p107 = scmp.eq.s32.totalorder %s16, 0
    %p108 = por %p106, %p107
    %p109 = scmp.ne.s32.totalorder %s95, %s96
    %p110 = scmp.eq.s32.totalorder %s17, 1
    %p111 = por %p109, %p110
    %p113 = scmp.ne.s32.totalorder %s96, %s112
    %p114 = scmp.eq.s32.totalorder %s17, 0
    %p115 = por %p113, %p114
    %s116 = ssub.s32 %s20, %s29
    %p117 = scmp.eq.s32.totalorder %s116, 0
    %s119 = sadd.s32 %s118, 1
    %s120 = scalar_select %p117, %s118, %s119
    %p123 = pneg %p117
    %p124 = scmp.eq.s32.totalorder %s11, 1
    %p125 = por %p123, %p124
    %p126 = scmp.ne.s32.totalorder %s118, %s121
    %p127 = scmp.eq.s32.totalorder %s11, 0
    %p128 = por %p126, %p127
    %p129 = scmp.ne.s32.totalorder %s118, %s121
    %p130 = scmp.eq.s32.totalorder %s16, 1
    %p131 = por %p129, %p130
    %p132 = scmp.ne.s32.totalorder %s121, %s122
    %p133 = scmp.eq.s32.totalorder %s16, 0
    %p134 = por %p132, %p133
    %p135 = scmp.ne.s32.totalorder %s121, %s122
    %p136 = scmp.eq.s32.totalorder %s17, 1
    %p137 = por %p135, %p136
    %p139 = scmp.ne.s32.totalorder %s122, %s138
    %p140 = scmp.eq.s32.totalorder %s17, 0
    %p141 = por %p139, %p140
    %s142 = ssub.s32 %s18, %s37
    %s143 = ssub.s32 %s19, %s33
    %s144 = sor.u32 %s142, %s143
    %s145 = ssub.s32 %s20, %s29
    %s146 = sor.u32 %s144, %s145
    %p147 = scmp.eq.s32.totalorder %s146, 0
    %s149 = sadd.s32 %s148, 1
    %s150 = scalar_select %p147, %s148, %s149
    %p153 = pneg %p147
    %p154 = scmp.eq.s32.totalorder %s11, 1
    %p155 = por %p153, %p154
    %p156 = scmp.ne.s32.totalorder %s148, %s151
    %p157 = scmp.eq.s32.totalorder %s11, 0
    %p158 = por %p156, %p157
    %p159 = scmp.ne.s32.totalorder %s148, %s151
    %p160 = scmp.eq.s32.totalorder %s16, 1
    %p161 = por %p159, %p160
    %p162 = scmp.ne.s32.totalorder %s151, %s152
    %p163 = scmp.eq.s32.totalorder %s16, 0
    %p164 = por %p162, %p163
    %p165 = scmp.ne.s32.totalorder %s151, %s152
    %p166 = scmp.eq.s32.totalorder %s17, 1
    %p167 = por %p165, %p166
    %p169 = scmp.ne.s32.totalorder %s152, %s168
    %p170 = scmp.eq.s32.totalorder %s17, 0
    %p171 = por %p169, %p170
    %s172 = ssub.s32 %s18, %s37
    %s173 = ssub.s32 %s19, %s33
    %s174 = sor.u32 %s172, %s173
    %s175 = ssub.s32 %s20, %s29
    %s176 = sor.u32 %s174, %s175
    %p177 = scmp.eq.s32.totalorder %s176, 0
    %s179 = sadd.s32 %s178, 1
    %s180 = scalar_select %p177, %s178, %s179
    %p183 = pneg %p177
    %p184 = scmp.eq.s32.totalorder %s11, 1
    %p185 = por %p183, %p184
    %p186 = scmp.ne.s32.totalorder %s178, %s181
    %p187 = scmp.eq.s32.totalorder %s11, 0
    %p188 = por %p186, %p187
    %p189 = scmp.ne.s32.totalorder %s178, %s181
    %p190 = scmp.eq.s32.totalorder %s16, 1
    %p191 = por %p189, %p190
    %p192 = scmp.ne.s32.totalorder %s181, %s182
    %p193 = scmp.eq.s32.totalorder %s16, 0
    %p194 = por %p192, %p193
    %p195 = scmp.ne.s32.totalorder %s181, %s182
    %p196 = scmp.eq.s32.totalorder %s17, 1
    %p197 = por %p195, %p196
    %p199 = scmp.ne.s32.totalorder %s182, %s198
    %p200 = scmp.eq.s32.totalorder %s17, 0
    %p201 = por %p199, %p200
    %p202 = scmp.le.s32.totalorder 1, %s11
    %p203 = scmp.lt.s32.totalorder %s11, 3
    %p204 = pnand %p202, %p203
    %p205 = pneg %p204
    // Predicated region
    $region9: #{_lambda_.3} parent=5 // pred_check
      _
    $region10: #{_lambda_.3} parent=5 // pred_check_branch
      %207 = sbr.rel (%p204) target = $region12
    $region11: #{_lambda_.3} parent=5 // pred_region
      %s208 = ssub.s32 %s11, 1
      // Predicated region
      $region13: #{_lambda_.3} parent=11 // pred_check
        %p209 = pneg %p82
      $region14: #{_lambda_.3} parent=11 // pred_check_branch
        %211 = sbr.rel (%p209) target = $region16
      $region15: #{_lambda_.3} parent=11 // pred_region
        %p212 = scmp.lt.s32.totalorder %s23, 0
        %s213 = scalar_select %p212, %s23, 0
        %s214 = smul.addr %s213, 4
        %s215 = scalar_lea.vmem %s1, %s214
      $region16: #{_lambda_.3} parent=11 // pred_fallthru
        _
      // Predicated region
      $region17: #{_lambda_.3} parent=11 // pred_check
        %p216 = pneg %p108
      $region18: #{_lambda_.3} parent=11 // pred_check_branch
        %218 = sbr.rel (%p216) target = $region20
      $region19: #{_lambda_.3} parent=11 // pred_region
        %p219 = scmp.lt.s32.totalorder %s23, 0
        %s220 = scalar_select %p219, %s23, 0
        %s221 = scalar_lea.vmem %s2, %s220
      $region20: #{_lambda_.3} parent=11 // pred_fallthru
        _
      // Predicated region
      $region21: #{_lambda_.3} parent=11 // pred_check
        %p222 = pneg %p134
      $region22: #{_lambda_.3} parent=11 // pred_check_branch
        %224 = sbr.rel (%p222) target = $region24
      $region23: #{_lambda_.3} parent=11 // pred_region
        %p225 = scmp.lt.s32.totalorder %s23, 0
        %s226 = scalar_select %p225, %s23, 0
        %s227 = scalar_lea.vmem %s3, %s226
      $region24: #{_lambda_.3} parent=11 // pred_fallthru
        _
    $region12: #{_lambda_.3} parent=5 // pred_fallthru
      _
    %p228 = scmp.lt.s32.totalorder %s11, 2
    // Predicated region
    $region25: #{_lambda_.3} parent=5 // pred_check
      %p229 = pneg %p228
    $region26: #{_lambda_.3} parent=5 // pred_check_branch
      %231 = sbr.rel (%p229) target = $region28
    $region27: #{_lambda_.3} parent=5 // pred_region
      // Predicated region
      $region29: #{_lambda_.3} parent=27 // pred_check
        %p232 = pneg %p50
      $region30: #{_lambda_.3} parent=27 // pred_check_branch
        %234 = sbr.rel (%p232) target = $region32
      $region31: #{_lambda_.3} parent=27 // pred_region
        %p235 = scmp.lt.s32.totalorder %s18, 1
        %s236 = scalar_select %p235, %s18, 1
        %s237 = smul.addr %s236, 54
        %s238 = smul.addr %s237, 4
        %s239 = scalar_lea.vmem %s0, %s238
      $region32: #{_lambda_.3} parent=27 // pred_fallthru
        _
      // Predicated region
      $region33: #{_lambda_.3} parent=27 // pred_check
        %p240 = pneg %p158
      $region34: #{_lambda_.3} parent=27 // pred_check_branch
        %242 = sbr.rel (%p240) target = $region36
      $region35: #{_lambda_.3} parent=27 // pred_region
        %s243 = smul.u32 16, %s19
        %p244 = scmp.lt.s32.totalorder %s18, 1
        %s245 = scalar_select %p244, %s18, 1
        %p246 = scmp.lt.s32.totalorder %s243, 15
        %s247 = scalar_select %p246, %s243, 15
        %p248 = scmp.lt.s32.totalorder %s20, 0
        %s249 = scalar_select %p248, %s20, 0
        %s250 = smul.addr %s247, 2
        %s251 = sadd.s32 %s249, %s250
        %s252 = smul.addr %s245, 32
        %s253 = sadd.s32 %s251, %s252
        %s254 = smul.addr %s253, 4
        %s255 = scalar_lea.vmem %s4, %s254
        %s256 = smul.u32 16, %s19
      $region36: #{_lambda_.3} parent=27 // pred_fallthru
        _
    $region28: #{_lambda_.3} parent=5 // pred_fallthru
      _
    %p257 = scmp.le.s32.totalorder 1, %s11
    %p258 = scmp.lt.s32.totalorder %s11, 3
    %p259 = pnand %p257, %p258
    %p260 = pneg %p259
    // Predicated region
    $region37: #{_lambda_.3} parent=5 // pred_check
      _
    $region38: #{_lambda_.3} parent=5 // pred_check_branch
      %262 = sbr.rel (%p259) target = $region40
    $region39: #{_lambda_.3} parent=5 // pred_region
      %s263 = ssub.s32 %s11, 1
      %p264 = scmp.lt.s32.totalorder %s21, 1
      %s265 = scalar_select %p264, %s21, 1
      %s266 = smul.addr %s265, 54
      %s267 = smul.addr %s266, 4
      %s268 = scalar_lea.vmem %s0, %s267
      %p269 = pneg %p56
      %p270 = pneg %p53
      %p271 = scmp.lt.s32.totalorder %s23, 0
      %s272 = scalar_select %p271, %s23, 0
      %s273 = smul.addr %s272, 4
      %s274 = scalar_lea.vmem %s1, %s273
      %p275 = pneg %p82
      %p276 = pneg %p79
      %p277 = scmp.lt.s32.totalorder %s23, 0
      %s278 = scalar_select %p277, %s23, 0
      %s279 = scalar_lea.vmem %s2, %s278
      %p280 = pneg %p108
      %p281 = pneg %p105
      %p282 = scmp.lt.s32.totalorder %s23, 0
      %s283 = scalar_select %p282, %s23, 0
      %s284 = scalar_lea.vmem %s3, %s283
      %p285 = pneg %p134
      %p286 = pneg %p131
      %s287 = smul.u32 16, %s22
      %p288 = scmp.lt.s32.totalorder %s21, 1
      %s289 = scalar_select %p288, %s21, 1
      %p290 = scmp.lt.s32.totalorder %s287, 15
      %s291 = scalar_select %p290, %s287, 15
      %p292 = scmp.lt.s32.totalorder %s23, 0
      %s293 = scalar_select %p292, %s23, 0
      %s294 = smul.addr %s291, 2
      %s295 = sadd.s32 %s293, %s294
      %s296 = smul.addr %s289, 32
      %s297 = sadd.s32 %s295, %s296
      %s298 = smul.addr %s297, 4
      %s299 = scalar_lea.vmem %s4, %s298
      %p300 = pneg %p164
      %p301 = pneg %p161
      %p302 = pneg %p194
      %p303 = pneg %p191
      %s304 = smul.u32 16, %s22
      %p305 = scmp.lt.s32.totalorder %s21, 1
      %s306 = scalar_select %p305, %s21, 1
      %p307 = scmp.lt.s32.totalorder %s304, 15
      %s308 = scalar_select %p307, %s304, 15
      %p309 = scmp.lt.s32.totalorder %s23, 0
      %s310 = scalar_select %p309, %s23, 0
      %s311 = smul.addr %s308, 2
      %s312 = sadd.s32 %s310, %s311
      %s313 = smul.addr %s306, 32
      %s314 = sadd.s32 %s312, %s313
      %s315 = smul.addr %s314, 4
      %s316 = scalar_lea.vmem %s5, %s315
      %p317 = scmp.lt.s32.totalorder %s21, 1
      %s318 = scalar_select %p317, %s21, 1
      %s319 = smul.addr %s318, 54
      %s320 = smul.addr %s319, 4
      %s321 = scalar_lea.vmem %s0, %s320
      %p322 = scmp.lt.s32.totalorder %s23, 0
      %s323 = scalar_select %p322, %s23, 0
      %s324 = smul.addr %s323, 4
      %s325 = scalar_lea.vmem %s1, %s324
      %p326 = scmp.lt.s32.totalorder %s23, 0
      %s327 = scalar_select %p326, %s23, 0
      %s328 = scalar_lea.vmem %s2, %s327
      %p329 = scmp.lt.s32.totalorder %s23, 0
      %s330 = scalar_select %p329, %s23, 0
      %s331 = scalar_lea.vmem %s3, %s330
      %s332 = smul.u32 16, %s22
      %p333 = scmp.lt.s32.totalorder %s21, 1
      %s334 = scalar_select %p333, %s21, 1
      %p335 = scmp.lt.s32.totalorder %s332, 15
      %s336 = scalar_select %p335, %s332, 15
      %p337 = scmp.lt.s32.totalorder %s23, 0
      %s338 = scalar_select %p337, %s23, 0
      %s339 = smul.addr %s336, 2
      %s340 = sadd.s32 %s338, %s339
      %s341 = smul.addr %s334, 32
      %s342 = sadd.s32 %s340, %s341
      %s343 = smul.addr %s342, 4
      %s344 = scalar_lea.vmem %s4, %s343
      %s345 = smul.u32 16, %s22
      %s346 = smul.u32 16, %s22
      %p347 = scmp.lt.s32.totalorder %s21, 1
      %s348 = scalar_select %p347, %s21, 1
      %p349 = scmp.lt.s32.totalorder %s346, 15
      %s350 = scalar_select %p349, %s346, 15
      %p351 = scmp.lt.s32.totalorder %s23, 0
      %s352 = scalar_select %p351, %s23, 0
      %s353 = smul.addr %s350, 2
      %s354 = sadd.s32 %s352, %s353
      %s355 = smul.addr %s348, 32
      %s356 = sadd.s32 %s354, %s355
      %s357 = smul.addr %s356, 4
      %s358 = scalar_lea.vmem %s5, %s357
      %s359 = smul.u32 16, %s22
      %s361 = smul.u32 %s22, 16
      %s362 = smul.u32 %s361, 3
      %s363 = smul.addr %s362, 4
      %s364 = scalar_lea.vmem %s321, %s363
      %v365 = vld [vmem:[%s364] sm:$0xf]
      %v366 = vld [vmem:[%s364 + $0x4] sm:$0xf]
      %v367 = vld [vmem:[%s364 + $0x8] sm:$0x1]
      %v368 = vld [vmem:[%s364 + $0xc] sm:$0xf]
      %v369 = vld [vmem:[%s364 + $0x10] sm:$0xf]
      %v370 = vld [vmem:[%s364 + $0x14] sm:$0x1]
      %v371 = vld [vmem:[%s364 + $0x18] sm:$0xf]
      %v372 = vld [vmem:[%s364 + $0x1c] sm:$0xf]
      %v373 = vld [vmem:[%s364 + $0x20] sm:$0x1]
      %v374 = vld [vmem:[%s364 + $0x24] sm:$0xf]
      %v375 = vld [vmem:[%s364 + $0x28] sm:$0xf]
      %v376 = vld [vmem:[%s364 + $0x2c] sm:$0x1]
      %v377 = vld [vmem:[%s364 + $0x30] sm:$0xf]
      %v378 = vld [vmem:[%s364 + $0x34] sm:$0xf]
      %v379 = vld [vmem:[%s364 + $0x38] sm:$0x1]
      %v380 = vld [vmem:[%s364 + $0x3c] sm:$0xf]
      %v381 = vld [vmem:[%s364 + $0x40] sm:$0xf]
      %v382 = vld [vmem:[%s364 + $0x44] sm:$0x1]
      %v383 = vld [vmem:[%s364 + $0x48] sm:$0xf]
      %v384 = vld [vmem:[%s364 + $0x4c] sm:$0xf]
      %v385 = vld [vmem:[%s364 + $0x50] sm:$0x1]
      %v386 = vld [vmem:[%s364 + $0x54] sm:$0xf]
      %v387 = vld [vmem:[%s364 + $0x58] sm:$0xf]
      %v388 = vld [vmem:[%s364 + $0x5c] sm:$0x1]
      %v389 = vld [vmem:[%s364 + $0x60] sm:$0xf]
      %v390 = vld [vmem:[%s364 + $0x64] sm:$0xf]
      %v391 = vld [vmem:[%s364 + $0x68] sm:$0x1]
      %v392 = vld [vmem:[%s364 + $0x6c] sm:$0xf]
      %v393 = vld [vmem:[%s364 + $0x70] sm:$0xf]
      %v394 = vld [vmem:[%s364 + $0x74] sm:$0x1]
      %v395 = vld [vmem:[%s364 + $0x78] sm:$0xf]
      %v396 = vld [vmem:[%s364 + $0x7c] sm:$0xf]
      %v397 = vld [vmem:[%s364 + $0x80] sm:$0x1]
      %v398 = vld [vmem:[%s364 + $0x84] sm:$0xf]
      %v399 = vld [vmem:[%s364 + $0x88] sm:$0xf]
      %v400 = vld [vmem:[%s364 + $0x8c] sm:$0x1]
      %v401 = vld [vmem:[%s364 + $0x90] sm:$0xf]
      %v402 = vld [vmem:[%s364 + $0x94] sm:$0xf]
      %v403 = vld [vmem:[%s364 + $0x98] sm:$0x1]
      %v404 = vld [vmem:[%s364 + $0x9c] sm:$0xf]
      %v405 = vld [vmem:[%s364 + $0xa0] sm:$0xf]
      %v406 = vld [vmem:[%s364 + $0xa4] sm:$0x1]
      %v407 = vld [vmem:[%s364 + $0xa8] sm:$0xf]
      %v408 = vld [vmem:[%s364 + $0xac] sm:$0xf]
      %v409 = vld [vmem:[%s364 + $0xb0] sm:$0x1]
      %v410 = vld [vmem:[%s364 + $0xb4] sm:$0xf]
      %v411 = vld [vmem:[%s364 + $0xb8] sm:$0xf]
      %v412 = vld [vmem:[%s364 + $0xbc] sm:$0x1]
      %v413 = vld [vmem:[%s364 + $0xc0] sm:$0xf]
      %v414 = vld [vmem:[%s364 + $0xc4] sm:$0xf]
      %v415 = vld [vmem:[%s364 + $0xc8] sm:$0x1]
      %v416 = vld [vmem:[%s364 + $0xcc] sm:$0xf]
      %v417 = vld [vmem:[%s364 + $0xd0] sm:$0xf]
      %v418 = vld [vmem:[%s364 + $0xd4] sm:$0x1]
      %v455 = vunpack.c.l.b16 %v365
      %v456 = vunpack.c.l.b16 %v366
      %v457 = vunpack.c.l.b16 %v368
      %v458 = vunpack.c.l.b16 %v369
      %v459 = vunpack.c.l.b16 %v371
      %v460 = vunpack.c.l.b16 %v372
      %v461 = vunpack.c.l.b16 %v374
      %v462 = vunpack.c.l.b16 %v375
      %v463 = vunpack.c.l.b16 %v377
      %v464 = vunpack.c.l.b16 %v378
      %v465 = vunpack.c.l.b16 %v380
      %v466 = vunpack.c.l.b16 %v381
      %v467 = vunpack.c.l.b16 %v383
      %v468 = vunpack.c.l.b16 %v384
      %v469 = vunpack.c.l.b16 %v386
      %v470 = vunpack.c.l.b16 %v387
      %v471 = vunpack.c.l.b16 %v389
      %v472 = vunpack.c.l.b16 %v390
      %v473 = vunpack.c.l.b16 %v392
      %v474 = vunpack.c.l.b16 %v393
      %v475 = vunpack.c.l.b16 %v395
      %v476 = vunpack.c.l.b16 %v396
      %v477 = vunpack.c.l.b16 %v398
      %v478 = vunpack.c.l.b16 %v399
      %v479 = vunpack.c.l.b16 %v401
      %v480 = vunpack.c.l.b16 %v402
      %v481 = vunpack.c.l.b16 %v404
      %v482 = vunpack.c.l.b16 %v405
      %v483 = vunpack.c.l.b16 %v407
      %v484 = vunpack.c.l.b16 %v408
      %v485 = vunpack.c.l.b16 %v410
      %v486 = vunpack.c.l.b16 %v411
      %v487 = vunpack.c.l.b16 %v413
      %v488 = vunpack.c.l.b16 %v414
      %v489 = vunpack.c.l.b16 %v416
      %v490 = vunpack.c.l.b16 %v417
      %v491 = vpack.c.b16 %v456, %v455
      %v492 = vpack.c.b16 %v458, %v457
      %v493 = vpack.c.b16 %v460, %v459
      %v494 = vpack.c.b16 %v462, %v461
      %v495 = vpack.c.b16 %v464, %v463
      %v496 = vpack.c.b16 %v466, %v465
      %v497 = vpack.c.b16 %v468, %v467
      %v498 = vpack.c.b16 %v470, %v469
      %v499 = vpack.c.b16 %v472, %v471
      %v500 = vpack.c.b16 %v474, %v473
      %v501 = vpack.c.b16 %v476, %v475
      %v502 = vpack.c.b16 %v478, %v477
      %v503 = vpack.c.b16 %v480, %v479
      %v504 = vpack.c.b16 %v482, %v481
      %v505 = vpack.c.b16 %v484, %v483
      %v506 = vpack.c.b16 %v486, %v485
      %v507 = vpack.c.b16 %v488, %v487
      %v508 = vpack.c.b16 %v490, %v489
      %v527 = vunpack.c.l.b16 %v367
      %v528 = vunpack.c.l.b16 %v370
      %v529 = vunpack.c.l.b16 %v373
      %v530 = vunpack.c.l.b16 %v376
      %v531 = vunpack.c.l.b16 %v379
      %v532 = vunpack.c.l.b16 %v382
      %v533 = vunpack.c.l.b16 %v385
      %v534 = vunpack.c.l.b16 %v388
      %v535 = vunpack.c.l.b16 %v391
      %v536 = vunpack.c.l.b16 %v394
      %v537 = vunpack.c.l.b16 %v397
      %v538 = vunpack.c.l.b16 %v400
      %v539 = vunpack.c.l.b16 %v403
      %v540 = vunpack.c.l.b16 %v406
      %v541 = vunpack.c.l.b16 %v409
      %v542 = vunpack.c.l.b16 %v412
      %v543 = vunpack.c.l.b16 %v415
      %v544 = vunpack.c.l.b16 %v418
      %v545 = vpack.c.b16 %v527, %v527
      %v546 = vpack.c.b16 %v528, %v528
      %v547 = vpack.c.b16 %v529, %v529
      %v548 = vpack.c.b16 %v530, %v530
      %v549 = vpack.c.b16 %v531, %v531
      %v550 = vpack.c.b16 %v532, %v532
      %v551 = vpack.c.b16 %v533, %v533
      %v552 = vpack.c.b16 %v534, %v534
      %v553 = vpack.c.b16 %v535, %v535
      %v554 = vpack.c.b16 %v536, %v536
      %v555 = vpack.c.b16 %v537, %v537
      %v556 = vpack.c.b16 %v538, %v538
      %v557 = vpack.c.b16 %v539, %v539
      %v558 = vpack.c.b16 %v540, %v540
      %v559 = vpack.c.b16 %v541, %v541
      %v560 = vpack.c.b16 %v542, %v542
      %v561 = vpack.c.b16 %v543, %v543
      %v562 = vpack.c.b16 %v544, %v544
      %vm563 = vsmask.f32 7424
      %v565 = vshrl.u32 %v491, 16
      %v567 = vshll.u32 %v491, 16
      %v569 = vrot.slane %v567, 1
      %v570 = vor.u32 %v565, %v569
      %v572 = vshll.u32 %v545, 16
      %v574 = vrot.slane %v572, 1
      %v575 = vsel %vm563, %v570, %v574
      %v577 = vshrl.u32 %v492, 16
      %v579 = vshll.u32 %v492, 16
      %v581 = vrot.slane %v579, 1
      %v582 = vor.u32 %v577, %v581
      %v584 = vshll.u32 %v546, 16
      %v586 = vrot.slane %v584, 1
      %v587 = vsel %vm563, %v582, %v586
      %v589 = vshrl.u32 %v493, 16
      %v591 = vshll.u32 %v493, 16
      %v593 = vrot.slane %v591, 1
      %v594 = vor.u32 %v589, %v593
      %v596 = vshll.u32 %v547, 16
      %v598 = vrot.slane %v596, 1
      %v599 = vsel %vm563, %v594, %v598
      %v601 = vshrl.u32 %v494, 16
      %v603 = vshll.u32 %v494, 16
      %v605 = vrot.slane %v603, 1
      %v606 = vor.u32 %v601, %v605
      %v608 = vshll.u32 %v548, 16
      %v610 = vrot.slane %v608, 1
      %v611 = vsel %vm563, %v606, %v610
      %v613 = vshrl.u32 %v495, 16
      %v615 = vshll.u32 %v495, 16
      %v617 = vrot.slane %v615, 1
      %v618 = vor.u32 %v613, %v617
      %v620 = vshll.u32 %v549, 16
      %v622 = vrot.slane %v620, 1
      %v623 = vsel %vm563, %v618, %v622
      %v625 = vshrl.u32 %v496, 16
      %v627 = vshll.u32 %v496, 16
      %v629 = vrot.slane %v627, 1
      %v630 = vor.u32 %v625, %v629
      %v632 = vshll.u32 %v550, 16
      %v634 = vrot.slane %v632, 1
      %v635 = vsel %vm563, %v630, %v634
      %v637 = vshrl.u32 %v497, 16
      %v639 = vshll.u32 %v497, 16
      %v641 = vrot.slane %v639, 1
      %v642 = vor.u32 %v637, %v641
      %v644 = vshll.u32 %v551, 16
      %v646 = vrot.slane %v644, 1
      %v647 = vsel %vm563, %v642, %v646
      %v649 = vshrl.u32 %v498, 16
      %v651 = vshll.u32 %v498, 16
      %v653 = vrot.slane %v651, 1
      %v654 = vor.u32 %v649, %v653
      %v656 = vshll.u32 %v552, 16
      %v658 = vrot.slane %v656, 1
      %v659 = vsel %vm563, %v654, %v658
      %v661 = vshrl.u32 %v499, 16
      %v663 = vshll.u32 %v499, 16
      %v665 = vrot.slane %v663, 1
      %v666 = vor.u32 %v661, %v665
      %v668 = vshll.u32 %v553, 16
      %v670 = vrot.slane %v668, 1
      %v671 = vsel %vm563, %v666, %v670
      %v673 = vshrl.u32 %v500, 16
      %v675 = vshll.u32 %v500, 16
      %v677 = vrot.slane %v675, 1
      %v678 = vor.u32 %v673, %v677
      %v680 = vshll.u32 %v554, 16
      %v682 = vrot.slane %v680, 1
      %v683 = vsel %vm563, %v678, %v682
      %v685 = vshrl.u32 %v501, 16
      %v687 = vshll.u32 %v501, 16
      %v689 = vrot.slane %v687, 1
      %v690 = vor.u32 %v685, %v689
      %v692 = vshll.u32 %v555, 16
      %v694 = vrot.slane %v692, 1
      %v695 = vsel %vm563, %v690, %v694
      %v697 = vshrl.u32 %v502, 16
      %v699 = vshll.u32 %v502, 16
      %v701 = vrot.slane %v699, 1
      %v702 = vor.u32 %v697, %v701
      %v704 = vshll.u32 %v556, 16
      %v706 = vrot.slane %v704, 1
      %v707 = vsel %vm563, %v702, %v706
      %v709 = vshrl.u32 %v503, 16
      %v711 = vshll.u32 %v503, 16
      %v713 = vrot.slane %v711, 1
      %v714 = vor.u32 %v709, %v713
      %v716 = vshll.u32 %v557, 16
      %v718 = vrot.slane %v716, 1
      %v719 = vsel %vm563, %v714, %v718
      %v721 = vshrl.u32 %v504, 16
      %v723 = vshll.u32 %v504, 16
      %v725 = vrot.slane %v723, 1
      %v726 = vor.u32 %v721, %v725
      %v728 = vshll.u32 %v558, 16
      %v730 = vrot.slane %v728, 1
      %v731 = vsel %vm563, %v726, %v730
      %v733 = vshrl.u32 %v505, 16
      %v735 = vshll.u32 %v505, 16
      %v737 = vrot.slane %v735, 1
      %v738 = vor.u32 %v733, %v737
      %v740 = vshll.u32 %v559, 16
      %v742 = vrot.slane %v740, 1
      %v743 = vsel %vm563, %v738, %v742
      %v745 = vshrl.u32 %v506, 16
      %v747 = vshll.u32 %v506, 16
      %v749 = vrot.slane %v747, 1
      %v750 = vor.u32 %v745, %v749
      %v752 = vshll.u32 %v560, 16
      %v754 = vrot.slane %v752, 1
      %v755 = vsel %vm563, %v750, %v754
      %v757 = vshrl.u32 %v507, 16
      %v759 = vshll.u32 %v507, 16
      %v761 = vrot.slane %v759, 1
      %v762 = vor.u32 %v757, %v761
      %v764 = vshll.u32 %v561, 16
      %v766 = vrot.slane %v764, 1
      %v767 = vsel %vm563, %v762, %v766
      %v769 = vshrl.u32 %v508, 16
      %v771 = vshll.u32 %v508, 16
      %v773 = vrot.slane %v771, 1
      %v774 = vor.u32 %v769, %v773
      %v776 = vshll.u32 %v562, 16
      %v778 = vrot.slane %v776, 1
      %v779 = vsel %vm563, %v774, %v778
      %780 = vrot.lane.b32.xlu0 %v575, 64
      %v781 = vpop.permute.xlu0 %780
      %782 = vrot.lane.b32.xlu0 %v587, 64
      %v783 = vpop.permute.xlu0 %782
      %784 = vrot.lane.b32.xlu0 %v599, 64
      %v785 = vpop.permute.xlu0 %784
      %786 = vrot.lane.b32.xlu0 %v611, 64
      %v787 = vpop.permute.xlu0 %786
      %788 = vrot.lane.b32.xlu0 %v623, 64
      %v789 = vpop.permute.xlu0 %788
      %790 = vrot.lane.b32.xlu0 %v635, 64
      %v791 = vpop.permute.xlu0 %790
      %792 = vrot.lane.b32.xlu0 %v647, 64
      %v793 = vpop.permute.xlu0 %792
      %794 = vrot.lane.b32.xlu0 %v659, 64
      %v795 = vpop.permute.xlu0 %794
      %796 = vrot.lane.b32.xlu0 %v671, 64
      %v797 = vpop.permute.xlu0 %796
      %798 = vrot.lane.b32.xlu0 %v683, 64
      %v799 = vpop.permute.xlu0 %798
      %800 = vrot.lane.b32.xlu0 %v695, 64
      %v801 = vpop.permute.xlu0 %800
      %802 = vrot.lane.b32.xlu0 %v707, 64
      %v803 = vpop.permute.xlu0 %802
      %804 = vrot.lane.b32.xlu0 %v719, 64
      %v805 = vpop.permute.xlu0 %804
      %806 = vrot.lane.b32.xlu0 %v731, 64
      %v807 = vpop.permute.xlu0 %806
      %808 = vrot.lane.b32.xlu0 %v743, 64
      %v809 = vpop.permute.xlu0 %808
      %810 = vrot.lane.b32.xlu0 %v755, 64
      %v811 = vpop.permute.xlu0 %810
      %812 = vrot.lane.b32.xlu0 %v767, 64
      %v813 = vpop.permute.xlu0 %812
      %814 = vrot.lane.b32.xlu0 %v779, 64
      %v815 = vpop.permute.xlu0 %814
      %vm816 = vcmask 1046528
      %v817 = vrot.slane %v491, 1
      %v818 = vrot.slane %v545, 1
      %v819 = vsel %vm816, %v817, %v818
      %v820 = vrot.slane %v492, 1
      %v821 = vrot.slane %v546, 1
      %v822 = vsel %vm816, %v820, %v821
      %v823 = vrot.slane %v493, 1
      %v824 = vrot.slane %v547, 1
      %v825 = vsel %vm816, %v823, %v824
      %v826 = vrot.slane %v494, 1
      %v827 = vrot.slane %v548, 1
      %v828 = vsel %vm816, %v826, %v827
      %v829 = vrot.slane %v495, 1
      %v830 = vrot.slane %v549, 1
      %v831 = vsel %vm816, %v829, %v830
      %v832 = vrot.slane %v496, 1
      %v833 = vrot.slane %v550, 1
      %v834 = vsel %vm816, %v832, %v833
      %v835 = vrot.slane %v497, 1
      %v836 = vrot.slane %v551, 1
      %v837 = vsel %vm816, %v835, %v836
      %v838 = vrot.slane %v498, 1
      %v839 = vrot.slane %v552, 1
      %v840 = vsel %vm816, %v838, %v839
      %v841 = vrot.slane %v499, 1
      %v842 = vrot.slane %v553, 1
      %v843 = vsel %vm816, %v841, %v842
      %v844 = vrot.slane %v500, 1
      %v845 = vrot.slane %v554, 1
      %v846 = vsel %vm816, %v844, %v845
      %v847 = vrot.slane %v501, 1
      %v848 = vrot.slane %v555, 1
      %v849 = vsel %vm816, %v847, %v848
      %v850 = vrot.slane %v502, 1
      %v851 = vrot.slane %v556, 1
      %v852 = vsel %vm816, %v850, %v851
      %v853 = vrot.slane %v503, 1
      %v854 = vrot.slane %v557, 1
      %v855 = vsel %vm816, %v853, %v854
      %v856 = vrot.slane %v504, 1
      %v857 = vrot.slane %v558, 1
      %v858 = vsel %vm816, %v856, %v857
      %v859 = vrot.slane %v505, 1
      %v860 = vrot.slane %v559, 1
      %v861 = vsel %vm816, %v859, %v860
      %v862 = vrot.slane %v506, 1
      %v863 = vrot.slane %v560, 1
      %v864 = vsel %vm816, %v862, %v863
      %v865 = vrot.slane %v507, 1
      %v866 = vrot.slane %v561, 1
      %v867 = vsel %vm816, %v865, %v866
      %v868 = vrot.slane %v508, 1
      %v869 = vrot.slane %v562, 1
      %v870 = vsel %vm816, %v868, %v869
      %vm871 = vcmask 523264
      %v873 = vsel %vm871, %v491, %v781
      %v876 = vsel %vm871, %v492, %v783
      %v879 = vsel %vm871, %v493, %v785
      %v882 = vsel %vm871, %v494, %v787
      %v885 = vsel %vm871, %v495, %v789
      %v888 = vsel %vm871, %v496, %v791
      %v891 = vsel %vm871, %v497, %v793
      %v894 = vsel %vm871, %v498, %v795
      %v897 = vsel %vm871, %v499, %v797
      %v900 = vsel %vm871, %v500, %v799
      %v903 = vsel %vm871, %v501, %v801
      %v906 = vsel %vm871, %v502, %v803
      %v909 = vsel %vm871, %v503, %v805
      %v912 = vsel %vm871, %v504, %v807
      %v915 = vsel %vm871, %v505, %v809
      %v918 = vsel %vm871, %v506, %v811
      %v921 = vsel %vm871, %v507, %v813
      %v924 = vsel %vm871, %v508, %v815
      %v926 = vld [vmem:[%s325] sm:$0xf]
      %v927 = vld [vmem:[%s325 + $0x4] sm:$0xf]
      %v928 = vld [vmem:[%s325 + $0x8] sm:$0xf]
      %v929 = vld [vmem:[%s325 + $0xc] sm:$0xf]
      %v930 = vld [vmem:[%s325 + $0x10] sm:$0xf]
      %v931 = vld [vmem:[%s325 + $0x14] sm:$0xf]
      %v932 = vld [vmem:[%s325 + $0x18] sm:$0xf]
      %v933 = vld [vmem:[%s325 + $0x1c] sm:$0xf]
      %v934 = vld [vmem:[%s325 + $0x20] sm:$0xf]
      %v935 = vld [vmem:[%s325 + $0x24] sm:$0xf]
      %v936 = vld [vmem:[%s325 + $0x28] sm:$0xf]
      %v937 = vld [vmem:[%s325 + $0x2c] sm:$0xf]
      %v938 = vld [vmem:[%s325 + $0x30] sm:$0xf]
      %v939 = vld [vmem:[%s325 + $0x34] sm:$0xf]
      %v940 = vld [vmem:[%s325 + $0x38] sm:$0xf]
      %v941 = vld [vmem:[%s325 + $0x3c] sm:$0xf]
      %v942 = vld [vmem:[%s325 + $0x40] sm:$0xf]
      %v943 = vld [vmem:[%s325 + $0x44] sm:$0xf]
      %v944 = vld [vmem:[%s325 + $0x48] sm:$0xf]
      %v945 = vld [vmem:[%s325 + $0x4c] sm:$0xf]
      %v946 = vld [vmem:[%s325 + $0x50] sm:$0xf]
      %v947 = vld [vmem:[%s325 + $0x54] sm:$0xf]
      %v948 = vld [vmem:[%s325 + $0x58] sm:$0xf]
      %v949 = vld [vmem:[%s325 + $0x5c] sm:$0xf]
      %s950 = scalar_lea.vmem %s325, 96
      %v951 = vld [vmem:[%s950] sm:$0xf]
      %v952 = vld [vmem:[%s950 + $0x4] sm:$0xf]
      %v953 = vld [vmem:[%s950 + $0x8] sm:$0xf]
      %v954 = vld [vmem:[%s950 + $0xc] sm:$0xf]
      %v955 = vld [vmem:[%s950 + $0x10] sm:$0xf]
      %v956 = vld [vmem:[%s950 + $0x14] sm:$0xf]
      %v957 = vld [vmem:[%s950 + $0x18] sm:$0xf]
      %v958 = vld [vmem:[%s950 + $0x1c] sm:$0xf]
      %v959 = vld [vmem:[%s950 + $0x20] sm:$0xf]
      %v960 = vld [vmem:[%s950 + $0x24] sm:$0xf]
      %v961 = vld [vmem:[%s950 + $0x28] sm:$0xf]
      %v962 = vld [vmem:[%s950 + $0x2c] sm:$0xf]
      %v963 = vld [vmem:[%s950 + $0x30] sm:$0xf]
      %v964 = vld [vmem:[%s950 + $0x34] sm:$0xf]
      %v965 = vld [vmem:[%s950 + $0x38] sm:$0xf]
      %v966 = vld [vmem:[%s950 + $0x3c] sm:$0xf]
      %v967 = vld [vmem:[%s950 + $0x40] sm:$0xf]
      %v968 = vld [vmem:[%s950 + $0x44] sm:$0xf]
      %v969 = vld [vmem:[%s950 + $0x48] sm:$0xf]
      %v970 = vld [vmem:[%s950 + $0x4c] sm:$0xf]
      %v971 = vld [vmem:[%s950 + $0x50] sm:$0xf]
      %v972 = vld [vmem:[%s950 + $0x54] sm:$0xf]
      %v973 = vld [vmem:[%s950 + $0x58] sm:$0xf]
      %v974 = vld [vmem:[%s950 + $0x5c] sm:$0xf]
      %v999 = vunpack.c.l.b16 %v951
      %v1000 = vunpack.c.l.b16 %v952
      %v1001 = vunpack.c.l.b16 %v953
      %v1002 = vunpack.c.l.b16 %v954
      %v1003 = vunpack.c.l.b16 %v955
      %v1004 = vunpack.c.l.b16 %v956
      %v1005 = vunpack.c.l.b16 %v957
      %v1006 = vunpack.c.l.b16 %v958
      %v1007 = vunpack.c.l.b16 %v959
      %v1008 = vunpack.c.l.b16 %v960
      %v1009 = vunpack.c.l.b16 %v961
      %v1010 = vunpack.c.l.b16 %v962
      %v1011 = vunpack.c.l.b16 %v963
      %v1012 = vunpack.c.l.b16 %v964
      %v1013 = vunpack.c.l.b16 %v965
      %v1014 = vunpack.c.l.b16 %v966
      %v1015 = vunpack.c.l.b16 %v967
      %v1016 = vunpack.c.l.b16 %v968
      %v1017 = vunpack.c.l.b16 %v969
      %v1018 = vunpack.c.l.b16 %v970
      %v1019 = vunpack.c.l.b16 %v971
      %v1020 = vunpack.c.l.b16 %v972
      %v1021 = vunpack.c.l.b16 %v973
      %v1022 = vunpack.c.l.b16 %v974
      %v1023 = vpack.c.b16 %v1000, %v999
      %v1024 = vpack.c.b16 %v1002, %v1001
      %v1025 = vpack.c.b16 %v1004, %v1003
      %v1026 = vpack.c.b16 %v1006, %v1005
      %v1027 = vpack.c.b16 %v1008, %v1007
      %v1028 = vpack.c.b16 %v1010, %v1009
      %v1029 = vpack.c.b16 %v1012, %v1011
      %v1030 = vpack.c.b16 %v1014, %v1013
      %v1031 = vpack.c.b16 %v1016, %v1015
      %v1032 = vpack.c.b16 %v1018, %v1017
      %v1033 = vpack.c.b16 %v1020, %v1019
      %v1034 = vpack.c.b16 %v1022, %v1021
      %v1048 = vsel %vm871, %v822, 0
      %v1051 = vsel %vm871, %v825, 0
      %v1054 = vsel %vm871, %v828, 0
      %v1057 = vsel %vm871, %v831, 0
      %v1060 = vsel %vm871, %v834, 0
      %v1063 = vsel %vm871, %v837, 0
      %v1066 = vsel %vm871, %v840, 0
      %v1069 = vsel %vm871, %v843, 0
      %v1072 = vsel %vm871, %v846, 0
      %v1075 = vsel %vm871, %v849, 0
      %v1078 = vsel %vm871, %v852, 0
      %v1081 = vsel %vm871, %v855, 0
      %v1084 = vsel %vm871, %v858, 0
      %v1087 = vsel %vm871, %v861, 0
      %v1090 = vsel %vm871, %v864, 0
      %v1093 = vsel %vm871, %v867, 0
      %1095 = vmatprep.subr.bf16.mxu0 0
      %1096 = vmatpush1.bf16.msra.mxu0 %v1023
      %1097 = vmatprep.subr.bf16.mxu0 0
      %1098 = vmatpush1.bf16.msra.mxu0 %v1024
      %1099 = vmatprep.subr.bf16.mxu0 0
      %1100 = vmatpush1.bf16.msra.mxu0 %v1025
      %1101 = vmatprep.subr.bf16.mxu0 0
      %1102 = vmatpush1.bf16.msra.mxu0 %v1026
      %1103 = vmatprep.subr.bf16.mxu0 0
      %1104 = vmatpush1.bf16.msra.mxu0 %v1027
      %1105 = vmatprep.subr.bf16.mxu0 0
      %1106 = vmatpush1.bf16.msra.mxu0 %v1028
      %1107 = vmatprep.subr.bf16.mxu0 0
      %1108 = vmatpush1.bf16.msra.mxu0 %v1029
      %1109 = vmatprep.subr.bf16.mxu0 0
      %1110 = vmatpush1.bf16.msra.mxu0 %v1030
      %1111 = vmatprep.subr.bf16.mxu0 0
      %1112 = vmatpush1.bf16.msra.mxu0 %v1031
      %1113 = vmatprep.subr.bf16.mxu0 0
      %1114 = vmatpush1.bf16.msra.mxu0 %v1032
      %1115 = vmatprep.subr.bf16.mxu0 0
      %1116 = vmatpush1.bf16.msra.mxu0 %v1033
      %1117 = vmatprep.subr.bf16.mxu0 0
      %1118 = vmatpush1.bf16.msra.mxu0 %v1034
      %1119 = vmatprep.subr.bf16.mxu0 0
      %1120 = vmatpush1.bf16.msra.mxu0 0
      %1121 = vmatprep.subr.bf16.mxu0 0
      %1122 = vmatpush1.bf16.msra.mxu0 0
      %1123 = vmatprep.subr.bf16.mxu0 0
      %1124 = vmatpush1.bf16.msra.mxu0 0
      %1125 = vmatprep.subr.bf16.mxu0 0
      %1126 = vmatpush1.bf16.msra.mxu0 0
      %1127 = vmatprep.mubr.bf16.mxu0 %v1048
      %1128 = vmatmul.mubr.bf16.gmra.mrb[0].mxu0 %v876
      %v1129 = vpop.f32.mrb[0].mxu0
      %v1130 = vadd.f32 0.0, %v1129
      %v1131 = vpop.f32.mrb[0].mxu0
      %v1132 = vpop.f32.mrb[0].mxu0
      %v1133 = vadd.f32 0.0, %v1132
      %v1134 = vpop.f32.mrb[0].mxu0
      %1135 = vmatprep.mubr.bf16.mxu0 %v1051
      %1136 = vmatmul.mubr.bf16.gmra.mrb[0].mxu0 %v879
      %v1137 = vpop.f32.mrb[0].mxu0
      %v1138 = vadd.f32 0.0, %v1137
      %v1139 = vpop.f32.mrb[0].mxu0
      %v1140 = vpop.f32.mrb[0].mxu0
      %v1141 = vadd.f32 0.0, %v1140
      %v1142 = vpop.f32.mrb[0].mxu0
      %1143 = vmatprep.mubr.bf16.mxu0 %v1054
      %1144 = vmatmul.mubr.bf16.gmra.mrb[0].mxu0 %v882
      %v1145 = vpop.f32.mrb[0].mxu0
      %v1146 = vadd.f32 0.0, %v1145
      %v1147 = vpop.f32.mrb[0].mxu0
      %v1148 = vpop.f32.mrb[0].mxu0
      %v1149 = vadd.f32 0.0, %v1148
      %v1150 = vpop.f32.mrb[0].mxu0
      %1151 = vmatprep.mubr.bf16.mxu0 %v1057
      %1152 = vmatmul.mubr.bf16.gmra.mrb[0].mxu0 %v885
      %v1153 = vpop.f32.mrb[0].mxu0
      %v1154 = vadd.f32 0.0, %v1153
      %v1155 = vpop.f32.mrb[0].mxu0
      %v1156 = vpop.f32.mrb[0].mxu0
      %v1157 = vadd.f32 0.0, %v1156
      %v1158 = vpop.f32.mrb[0].mxu0
      %1159 = vmatprep.mubr.bf16.mxu0 %v1060
      %1160 = vmatmul.mubr.bf16.gmra.mrb[0].mxu0 %v888
      %v1161 = vpop.f32.mrb[0].mxu0
      %v1162 = vadd.f32 0.0, %v1161
      %v1163 = vpop.f32.mrb[0].mxu0
      %v1164 = vpop.f32.mrb[0].mxu0
      %v1165 = vadd.f32 0.0, %v1164
      %v1166 = vpop.f32.mrb[0].mxu0
      %1167 = vmatprep.mubr.bf16.mxu0 %v1063
      %1168 = vmatmul.mubr.bf16.gmra.mrb[0].mxu0 %v891
      %v1169 = vpop.f32.mrb[0].mxu0
      %v1170 = vadd.f32 0.0, %v1169
      %v1171 = vpop.f32.mrb[0].mxu0
      %v1172 = vpop.f32.mrb[0].mxu0
      %v1173 = vadd.f32 0.0, %v1172
      %v1174 = vpop.f32.mrb[0].mxu0
      %1175 = vmatprep.mubr.bf16.mxu0 %v1066
      %1176 = vmatmul.mubr.bf16.gmra.mrb[0].mxu0 %v894
      %v1177 = vpop.f32.mrb[0].mxu0
      %v1178 = vadd.f32 0.0, %v1177
      %v1179 = vpop.f32.mrb[0].mxu0
      %v1180 = vpop.f32.mrb[0].mxu0
      %v1181 = vadd.f32 0.0, %v1180
      %v1182 = vpop.f32.mrb[0].mxu0
      %1183 = vmatprep.mubr.bf16.mxu0 %v1069
      %1184 = vmatmul.mubr.bf16.gmra.mrb[0].mxu0 %v897
      %v1185 = vpop.f32.mrb[0].mxu0
      %v1186 = vadd.f32 0.0, %v1185
      %v1187 = vpop.f32.mrb[0].mxu0
      %v1188 = vpop.f32.mrb[0].mxu0
      %v1189 = vadd.f32 0.0, %v1188
      %v1190 = vpop.f32.mrb[0].mxu0
      %1191 = vmatprep.mubr.bf16.mxu0 %v1072
      %1192 = vmatmul.mubr.bf16.gmra.mrb[0].mxu0 %v900
      %v1193 = vpop.f32.mrb[0].mxu0
      %v1194 = vadd.f32 0.0, %v1193
      %v1195 = vpop.f32.mrb[0].mxu0
      %v1196 = vpop.f32.mrb[0].mxu0
      %v1197 = vadd.f32 0.0, %v1196
      %v1198 = vpop.f32.mrb[0].mxu0
      %1199 = vmatprep.mubr.bf16.mxu0 %v1075
      %1200 = vmatmul.mubr.bf16.gmra.mrb[0].mxu0 %v903
      %v1201 = vpop.f32.mrb[0].mxu0
      %v1202 = vadd.f32 0.0, %v1201
      %v1203 = vpop.f32.mrb[0].mxu0
      %v1204 = vpop.f32.mrb[0].mxu0
      %v1205 = vadd.f32 0.0, %v1204
      %v1206 = vpop.f32.mrb[0].mxu0
      %1207 = vmatprep.mubr.bf16.mxu0 %v1078
      %1208 = vmatmul.mubr.bf16.gmra.mrb[0].mxu0 %v906
      %v1209 = vpop.f32.mrb[0].mxu0
      %v1210 = vadd.f32 0.0, %v1209
      %v1211 = vpop.f32.mrb[0].mxu0
      %v1212 = vpop.f32.mrb[0].mxu0
      %v1213 = vadd.f32 0.0, %v1212
      %v1214 = vpop.f32.mrb[0].mxu0
      %1215 = vmatprep.mubr.bf16.mxu0 %v1081
      %1216 = vmatmul.mubr.bf16.gmra.mrb[0].mxu0 %v909
      %v1217 = vpop.f32.mrb[0].mxu0
      %v1218 = vadd.f32 0.0, %v1217
      %v1219 = vpop.f32.mrb[0].mxu0
      %v1220 = vpop.f32.mrb[0].mxu0
      %v1221 = vadd.f32 0.0, %v1220
      %v1222 = vpop.f32.mrb[0].mxu0
      %1223 = vmatprep.mubr.bf16.mxu0 %v1084
      %1224 = vmatmul.mubr.bf16.gmra.mrb[0].mxu0 %v912
      %v1225 = vpop.f32.mrb[0].mxu0
      %v1226 = vadd.f32 0.0, %v1225
      %v1227 = vpop.f32.mrb[0].mxu0
      %v1228 = vpop.f32.mrb[0].mxu0
      %v1229 = vadd.f32 0.0, %v1228
      %v1230 = vpop.f32.mrb[0].mxu0
      %1231 = vmatprep.mubr.bf16.mxu0 %v1087
      %1232 = vmatmul.mubr.bf16.gmra.mrb[0].mxu0 %v915
      %v1233 = vpop.f32.mrb[0].mxu0
      %v1234 = vadd.f32 0.0, %v1233
      %v1235 = vpop.f32.mrb[0].mxu0
      %v1236 = vpop.f32.mrb[0].mxu0
      %v1237 = vadd.f32 0.0, %v1236
      %v1238 = vpop.f32.mrb[0].mxu0
      %1239 = vmatprep.mubr.bf16.mxu0 %v1090
      %1240 = vmatmul.mubr.bf16.gmra.mrb[0].mxu0 %v918
      %v1241 = vpop.f32.mrb[0].mxu0
      %v1242 = vadd.f32 0.0, %v1241
      %v1243 = vpop.f32.mrb[0].mxu0
      %v1244 = vpop.f32.mrb[0].mxu0
      %v1245 = vadd.f32 0.0, %v1244
      %v1246 = vpop.f32.mrb[0].mxu0
      %1247 = vmatprep.mubr.bf16.mxu0 %v1093
      %1248 = vmatmul.mubr.bf16.gmra.mrb[0].mxu0 %v921
      %v1249 = vpop.f32.mrb[0].mxu0
      %v1250 = vadd.f32 0.0, %v1249
      %v1251 = vpop.f32.mrb[0].mxu0
      %v1252 = vpop.f32.mrb[0].mxu0
      %v1253 = vadd.f32 0.0, %v1252
      %v1254 = vpop.f32.mrb[0].mxu0
      %1255 = vdwg.mxu0
      %v1280 = vunpack.c.l.b16 %v926
      %v1281 = vunpack.c.l.b16 %v927
      %v1282 = vunpack.c.l.b16 %v928
      %v1283 = vunpack.c.l.b16 %v929
      %v1284 = vunpack.c.l.b16 %v930
      %v1285 = vunpack.c.l.b16 %v931
      %v1286 = vunpack.c.l.b16 %v932
      %v1287 = vunpack.c.l.b16 %v933
      %v1288 = vunpack.c.l.b16 %v934
      %v1289 = vunpack.c.l.b16 %v935
      %v1290 = vunpack.c.l.b16 %v936
      %v1291 = vunpack.c.l.b16 %v937
      %v1292 = vunpack.c.l.b16 %v938
      %v1293 = vunpack.c.l.b16 %v939
      %v1294 = vunpack.c.l.b16 %v940
      %v1295 = vunpack.c.l.b16 %v941
      %v1296 = vunpack.c.l.b16 %v942
      %v1297 = vunpack.c.l.b16 %v943
      %v1298 = vunpack.c.l.b16 %v944
      %v1299 = vunpack.c.l.b16 %v945
      %v1300 = vunpack.c.l.b16 %v946
      %v1301 = vunpack.c.l.b16 %v947
      %v1302 = vunpack.c.l.b16 %v948
      %v1303 = vunpack.c.l.b16 %v949
      %v1304 = vpack.c.b16 %v1281, %v1280
      %v1305 = vpack.c.b16 %v1283, %v1282
      %v1306 = vpack.c.b16 %v1285, %v1284
      %v1307 = vpack.c.b16 %v1287, %v1286
      %v1308 = vpack.c.b16 %v1289, %v1288
      %v1309 = vpack.c.b16 %v1291, %v1290
      %v1310 = vpack.c.b16 %v1293, %v1292
      %v1311 = vpack.c.b16 %v1295, %v1294
      %v1312 = vpack.c.b16 %v1297, %v1296
      %v1313 = vpack.c.b16 %v1299, %v1298
      %v1314 = vpack.c.b16 %v1301, %v1300
      %v1315 = vpack.c.b16 %v1303, %v1302
      %v1329 = vsel %vm871, %v819, 0
      %1331 = vmatprep.subr.bf16.mxu0 0
      %1332 = vmatpush1.bf16.msra.mxu0 %v1304
      %1333 = vmatprep.subr.bf16.mxu0 0
      %1334 = vmatpush1.bf16.msra.mxu0 %v1305
      %1335 = vmatprep.subr.bf16.mxu0 0
      %1336 = vmatpush1.bf16.msra.mxu0 %v1306
      %1337 = vmatprep.subr.bf16.mxu0 0
      %1338 = vmatpush1.bf16.msra.mxu0 %v1307
      %1339 = vmatprep.subr.bf16.mxu0 0
      %1340 = vmatpush1.bf16.msra.mxu0 %v1308
      %1341 = vmatprep.subr.bf16.mxu0 0
      %1342 = vmatpush1.bf16.msra.mxu0 %v1309
      %1343 = vmatprep.subr.bf16.mxu0 0
      %1344 = vmatpush1.bf16.msra.mxu0 %v1310
      %1345 = vmatprep.subr.bf16.mxu0 0
      %1346 = vmatpush1.bf16.msra.mxu0 %v1311
      %1347 = vmatprep.subr.bf16.mxu0 0
      %1348 = vmatpush1.bf16.msra.mxu0 %v1312
      %1349 = vmatprep.subr.bf16.mxu0 0
      %1350 = vmatpush1.bf16.msra.mxu0 %v1313
      %1351 = vmatprep.subr.bf16.mxu0 0
      %1352 = vmatpush1.bf16.msra.mxu0 %v1314
      %1353 = vmatprep.subr.bf16.mxu0 0
      %1354 = vmatpush1.bf16.msra.mxu0 %v1315
      %1355 = vmatprep.subr.bf16.mxu0 0
      %1356 = vmatpush1.bf16.msra.mxu0 0
      %1357 = vmatprep.subr.bf16.mxu0 0
      %1358 = vmatpush1.bf16.msra.mxu0 0
      %1359 = vmatprep.subr.bf16.mxu0 0
      %1360 = vmatpush1.bf16.msra.mxu0 0
      %1361 = vmatprep.subr.bf16.mxu0 0
      %1362 = vmatpush1.bf16.msra.mxu0 0
      %1363 = vmatprep.mubr.bf16.mxu0 %v1329
      %1364 = vmatmul.mubr.bf16.gmra.mrb[0].mxu0 %v873
      %v1365 = vpop.f32.mrb[0].mxu0
      %v1366 = vadd.f32 %v1130, %v1365
      %v1367 = vpop.f32.mrb[0].mxu0
      %v1368 = vpop.f32.mrb[0].mxu0
      %v1369 = vadd.f32 %v1133, %v1368
      %v1370 = vpop.f32.mrb[0].mxu0
      %1371 = vmatprep.mubr.bf16.mxu0 %v1048
      %1372 = vmatmul.mubr.bf16.gmra.mrb[0].mxu0 %v876
      %v1373 = vpop.f32.mrb[0].mxu0
      %v1374 = vadd.f32 %v1138, %v1373
      %v1375 = vpop.f32.mrb[0].mxu0
      %v1376 = vpop.f32.mrb[0].mxu0
      %v1377 = vadd.f32 %v1141, %v1376
      %v1378 = vpop.f32.mrb[0].mxu0
      %1379 = vmatprep.mubr.bf16.mxu0 %v1051
      %1380 = vmatmul.mubr.bf16.gmra.mrb[0].mxu0 %v879
      %v1381 = vpop.f32.mrb[0].mxu0
      %v1382 = vadd.f32 %v1146, %v1381
      %v1383 = vpop.f32.mrb[0].mxu0
      %v1384 = vpop.f32.mrb[0].mxu0
      %v1385 = vadd.f32 %v1149, %v1384
      %v1386 = vpop.f32.mrb[0].mxu0
      %1387 = vmatprep.mubr.bf16.mxu0 %v1054
      %1388 = vmatmul.mubr.bf16.gmra.mrb[0].mxu0 %v882
      %v1389 = vpop.f32.mrb[0].mxu0
      %v1390 = vadd.f32 %v1154, %v1389
      %v1391 = vpop.f32.mrb[0].mxu0
      %v1392 = vpop.f32.mrb[0].mxu0
      %v1393 = vadd.f32 %v1157, %v1392
      %v1394 = vpop.f32.mrb[0].mxu0
      %1395 = vmatprep.mubr.bf16.mxu0 %v1057
      %1396 = vmatmul.mubr.bf16.gmra.mrb[0].mxu0 %v885
      %v1397 = vpop.f32.mrb[0].mxu0
      %v1398 = vadd.f32 %v1162, %v1397
      %v1399 = vpop.f32.mrb[0].mxu0
      %v1400 = vpop.f32.mrb[0].mxu0
      %v1401 = vadd.f32 %v1165, %v1400
      %v1402 = vpop.f32.mrb[0].mxu0
      %1403 = vmatprep.mubr.bf16.mxu0 %v1060
      %1404 = vmatmul.mubr.bf16.gmra.mrb[0].mxu0 %v888
      %v1405 = vpop.f32.mrb[0].mxu0
      %v1406 = vadd.f32 %v1170, %v1405
      %v1407 = vpop.f32.mrb[0].mxu0
      %v1408 = vpop.f32.mrb[0].mxu0
      %v1409 = vadd.f32 %v1173, %v1408
      %v1410 = vpop.f32.mrb[0].mxu0
      %1411 = vmatprep.mubr.bf16.mxu0 %v1063
      %1412 = vmatmul.mubr.bf16.gmra.mrb[0].mxu0 %v891
      %v1413 = vpop.f32.mrb[0].mxu0
      %v1414 = vadd.f32 %v1178, %v1413
      %v1415 = vpop.f32.mrb[0].mxu0
      %v1416 = vpop.f32.mrb[0].mxu0
      %v1417 = vadd.f32 %v1181, %v1416
      %v1418 = vpop.f32.mrb[0].mxu0
      %1419 = vmatprep.mubr.bf16.mxu0 %v1066
      %1420 = vmatmul.mubr.bf16.gmra.mrb[0].mxu0 %v894
      %v1421 = vpop.f32.mrb[0].mxu0
      %v1422 = vadd.f32 %v1186, %v1421
      %v1423 = vpop.f32.mrb[0].mxu0
      %v1424 = vpop.f32.mrb[0].mxu0
      %v1425 = vadd.f32 %v1189, %v1424
      %v1426 = vpop.f32.mrb[0].mxu0
      %1427 = vmatprep.mubr.bf16.mxu0 %v1069
      %1428 = vmatmul.mubr.bf16.gmra.mrb[0].mxu0 %v897
      %v1429 = vpop.f32.mrb[0].mxu0
      %v1430 = vadd.f32 %v1194, %v1429
      %v1431 = vpop.f32.mrb[0].mxu0
      %v1432 = vpop.f32.mrb[0].mxu0
      %v1433 = vadd.f32 %v1197, %v1432
      %v1434 = vpop.f32.mrb[0].mxu0
      %1435 = vmatprep.mubr.bf16.mxu0 %v1072
      %1436 = vmatmul.mubr.bf16.gmra.mrb[0].mxu0 %v900
      %v1437 = vpop.f32.mrb[0].mxu0
      %v1438 = vadd.f32 %v1202, %v1437
      %v1439 = vpop.f32.mrb[0].mxu0
      %v1440 = vpop.f32.mrb[0].mxu0
      %v1441 = vadd.f32 %v1205, %v1440
      %v1442 = vpop.f32.mrb[0].mxu0
      %1443 = vmatprep.mubr.bf16.mxu0 %v1075
      %1444 = vmatmul.mubr.bf16.gmra.mrb[0].mxu0 %v903
      %v1445 = vpop.f32.mrb[0].mxu0
      %v1446 = vadd.f32 %v1210, %v1445
      %v1447 = vpop.f32.mrb[0].mxu0
      %v1448 = vpop.f32.mrb[0].mxu0
      %v1449 = vadd.f32 %v1213, %v1448
      %v1450 = vpop.f32.mrb[0].mxu0
      %1451 = vmatprep.mubr.bf16.mxu0 %v1078
      %1452 = vmatmul.mubr.bf16.gmra.mrb[0].mxu0 %v906
      %v1453 = vpop.f32.mrb[0].mxu0
      %v1454 = vadd.f32 %v1218, %v1453
      %v1455 = vpop.f32.mrb[0].mxu0
      %v1456 = vpop.f32.mrb[0].mxu0
      %v1457 = vadd.f32 %v1221, %v1456
      %v1458 = vpop.f32.mrb[0].mxu0
      %1459 = vmatprep.mubr.bf16.mxu0 %v1081
      %1460 = vmatmul.mubr.bf16.gmra.mrb[0].mxu0 %v909
      %v1461 = vpop.f32.mrb[0].mxu0
      %v1462 = vadd.f32 %v1226, %v1461
      %v1463 = vpop.f32.mrb[0].mxu0
      %v1464 = vpop.f32.mrb[0].mxu0
      %v1465 = vadd.f32 %v1229, %v1464
      %v1466 = vpop.f32.mrb[0].mxu0
      %1467 = vmatprep.mubr.bf16.mxu0 %v1084
      %1468 = vmatmul.mubr.bf16.gmra.mrb[0].mxu0 %v912
      %v1469 = vpop.f32.mrb[0].mxu0
      %v1470 = vadd.f32 %v1234, %v1469
      %v1471 = vpop.f32.mrb[0].mxu0
      %v1472 = vpop.f32.mrb[0].mxu0
      %v1473 = vadd.f32 %v1237, %v1472
      %v1474 = vpop.f32.mrb[0].mxu0
      %1475 = vmatprep.mubr.bf16.mxu0 %v1087
      %1476 = vmatmul.mubr.bf16.gmra.mrb[0].mxu0 %v915
      %v1477 = vpop.f32.mrb[0].mxu0
      %v1478 = vadd.f32 %v1242, %v1477
      %v1479 = vpop.f32.mrb[0].mxu0
      %v1480 = vpop.f32.mrb[0].mxu0
      %v1481 = vadd.f32 %v1245, %v1480
      %v1482 = vpop.f32.mrb[0].mxu0
      %1483 = vmatprep.mubr.bf16.mxu0 %v1090
      %1484 = vmatmul.mubr.bf16.gmra.mrb[0].mxu0 %v918
      %v1485 = vpop.f32.mrb[0].mxu0
      %v1486 = vadd.f32 %v1250, %v1485
      %v1487 = vpop.f32.mrb[0].mxu0
      %v1488 = vpop.f32.mrb[0].mxu0
      %v1489 = vadd.f32 %v1253, %v1488
      %v1490 = vpop.f32.mrb[0].mxu0
      %1491 = vdwg.mxu0
      %s1492 = scalar_lea.vmem %s325, 192
      %v1493 = vld [vmem:[%s1492] sm:$0xf]
      %v1494 = vld [vmem:[%s1492 + $0x4] sm:$0xf]
      %v1495 = vld [vmem:[%s1492 + $0x8] sm:$0xf]
      %v1496 = vld [vmem:[%s1492 + $0xc] sm:$0xf]
      %v1497 = vld [vmem:[%s1492 + $0x10] sm:$0xf]
      %v1498 = vld [vmem:[%s1492 + $0x14] sm:$0xf]
      %v1499 = vld [vmem:[%s1492 + $0x18] sm:$0xf]
      %v1500 = vld [vmem:[%s1492 + $0x1c] sm:$0xf]
      %v1501 = vld [vmem:[%s1492 + $0x20] sm:$0xf]
      %v1502 = vld [vmem:[%s1492 + $0x24] sm:$0xf]
      %v1503 = vld [vmem:[%s1492 + $0x28] sm:$0xf]
      %v1504 = vld [vmem:[%s1492 + $0x2c] sm:$0xf]
      %v1505 = vld [vmem:[%s1492 + $0x30] sm:$0xf]
      %v1506 = vld [vmem:[%s1492 + $0x34] sm:$0xf]
      %v1507 = vld [vmem:[%s1492 + $0x38] sm:$0xf]
      %v1508 = vld [vmem:[%s1492 + $0x3c] sm:$0xf]
      %v1509 = vld [vmem:[%s1492 + $0x40] sm:$0xf]
      %v1510 = vld [vmem:[%s1492 + $0x44] sm:$0xf]
      %v1511 = vld [vmem:[%s1492 + $0x48] sm:$0xf]
      %v1512 = vld [vmem:[%s1492 + $0x4c] sm:$0xf]
      %v1513 = vld [vmem:[%s1492 + $0x50] sm:$0xf]
      %v1514 = vld [vmem:[%s1492 + $0x54] sm:$0xf]
      %v1515 = vld [vmem:[%s1492 + $0x58] sm:$0xf]
      %v1516 = vld [vmem:[%s1492 + $0x5c] sm:$0xf]
      %v1541 = vunpack.c.l.b16 %v1493
      %v1542 = vunpack.c.l.b16 %v1494
      %v1543 = vunpack.c.l.b16 %v1495
      %v1544 = vunpack.c.l.b16 %v1496
      %v1545 = vunpack.c.l.b16 %v1497
      %v1546 = vunpack.c.l.b16 %v1498
      %v1547 = vunpack.c.l.b16 %v1499
      %v1548 = vunpack.c.l.b16 %v1500
      %v1549 = vunpack.c.l.b16 %v1501
      %v1550 = vunpack.c.l.b16 %v1502
      %v1551 = vunpack.c.l.b16 %v1503
      %v1552 = vunpack.c.l.b16 %v1504
      %v1553 = vunpack.c.l.b16 %v1505
      %v1554 = vunpack.c.l.b16 %v1506
      %v1555 = vunpack.c.l.b16 %v1507
      %v1556 = vunpack.c.l.b16 %v1508
      %v1557 = vunpack.c.l.b16 %v1509
      %v1558 = vunpack.c.l.b16 %v1510
      %v1559 = vunpack.c.l.b16 %v1511
      %v1560 = vunpack.c.l.b16 %v1512
      %v1561 = vunpack.c.l.b16 %v1513
      %v1562 = vunpack.c.l.b16 %v1514
      %v1563 = vunpack.c.l.b16 %v1515
      %v1564 = vunpack.c.l.b16 %v1516
      %v1565 = vpack.c.b16 %v1542, %v1541
      %v1566 = vpack.c.b16 %v1544, %v1543
      %v1567 = vpack.c.b16 %v1546, %v1545
      %v1568 = vpack.c.b16 %v1548, %v1547
      %v1569 = vpack.c.b16 %v1550, %v1549
      %v1570 = vpack.c.b16 %v1552, %v1551
      %v1571 = vpack.c.b16 %v1554, %v1553
      %v1572 = vpack.c.b16 %v1556, %v1555
      %v1573 = vpack.c.b16 %v1558, %v1557
      %v1574 = vpack.c.b16 %v1560, %v1559
      %v1575 = vpack.c.b16 %v1562, %v1561
      %v1576 = vpack.c.b16 %v1564, %v1563
      %v1590 = vsel %vm871, %v870, 0
      %1592 = vmatprep.subr.bf16.mxu0 0
      %1593 = vmatpush1.bf16.msra.mxu0 %v1565
      %1594 = vmatprep.subr.bf16.mxu0 0
      %1595 = vmatpush1.bf16.msra.mxu0 %v1566
      %1596 = vmatprep.subr.bf16.mxu0 0
      %1597 = vmatpush1.bf16.msra.mxu0 %v1567
      %1598 = vmatprep.subr.bf16.mxu0 0
      %1599 = vmatpush1.bf16.msra.mxu0 %v1568
      %1600 = vmatprep.subr.bf16.mxu0 0
      %1601 = vmatpush1.bf16.msra.mxu0 %v1569
      %1602 = vmatprep.subr.bf16.mxu0 0
      %1603 = vmatpush1.bf16.msra.mxu0 %v1570
      %1604 = vmatprep.subr.bf16.mxu0 0
      %1605 = vmatpush1.bf16.msra.mxu0 %v1571
      %1606 = vmatprep.subr.bf16.mxu0 0
      %1607 = vmatpush1.bf16.msra.mxu0 %v1572
      %1608 = vmatprep.subr.bf16.mxu0 0
      %1609 = vmatpush1.bf16.msra.mxu0 %v1573
      %1610 = vmatprep.subr.bf16.mxu0 0
      %1611 = vmatpush1.bf16.msra.mxu0 %v1574
      %1612 = vmatprep.subr.bf16.mxu0 0
      %1613 = vmatpush1.bf16.msra.mxu0 %v1575
      %1614 = vmatprep.subr.bf16.mxu0 0
      %1615 = vmatpush1.bf16.msra.mxu0 %v1576
      %1616 = vmatprep.subr.bf16.mxu0 0
      %1617 = vmatpush1.bf16.msra.mxu0 0
      %1618 = vmatprep.subr.bf16.mxu0 0
      %1619 = vmatpush1.bf16.msra.mxu0 0
      %1620 = vmatprep.subr.bf16.mxu0 0
      %1621 = vmatpush1.bf16.msra.mxu0 0
      %1622 = vmatprep.subr.bf16.mxu0 0
      %1623 = vmatpush1.bf16.msra.mxu0 0
      %1624 = vmatprep.mubr.bf16.mxu0 %v1051
      %1625 = vmatmul.mubr.bf16.gmra.mrb[0].mxu0 %v879
      %v1626 = vpop.f32.mrb[0].mxu0
      %v1627 = vadd.f32 0.0, %v1626
      %v1628 = vpop.f32.mrb[0].mxu0
      %v1629 = vpop.f32.mrb[0].mxu0
      %v1630 = vadd.f32 0.0, %v1629
      %v1631 = vpop.f32.mrb[0].mxu0
      %1632 = vmatprep.mubr.bf16.mxu0 %v1054
      %1633 = vmatmul.mubr.bf16.gmra.mrb[0].mxu0 %v882
      %v1634 = vpop.f32.mrb[0].mxu0
      %v1635 = vadd.f32 0.0, %v1634
      %v1636 = vpop.f32.mrb[0].mxu0
      %v1637 = vpop.f32.mrb[0].mxu0
      %v1638 = vadd.f32 0.0, %v1637
      %v1639 = vpop.f32.mrb[0].mxu0
      %1640 = vmatprep.mubr.bf16.mxu0 %v1057
      %1641 = vmatmul.mubr.bf16.gmra.mrb[0].mxu0 %v885
      %v1642 = vpop.f32.mrb[0].mxu0
      %v1643 = vadd.f32 0.0, %v1642
      %v1644 = vpop.f32.mrb[0].mxu0
      %v1645 = vpop.f32.mrb[0].mxu0
      %v1646 = vadd.f32 0.0, %v1645
      %v1647 = vpop.f32.mrb[0].mxu0
      %1648 = vmatprep.mubr.bf16.mxu0 %v1060
      %1649 = vmatmul.mubr.bf16.gmra.mrb[0].mxu0 %v888
      %v1650 = vpop.f32.mrb[0].mxu0
      %v1651 = vadd.f32 0.0, %v1650
      %v1652 = vpop.f32.mrb[0].mxu0
      %v1653 = vpop.f32.mrb[0].mxu0
      %v1654 = vadd.f32 0.0, %v1653
      %v1655 = vpop.f32.mrb[0].mxu0
      %1656 = vmatprep.mubr.bf16.mxu0 %v1063
      %1657 = vmatmul.mubr.bf16.gmra.mrb[0].mxu0 %v891
      %v1658 = vpop.f32.mrb[0].mxu0
      %v1659 = vadd.f32 0.0, %v1658
      %v1660 = vpop.f32.mrb[0].mxu0
      %v1661 = vpop.f32.mrb[0].mxu0
      %v1662 = vadd.f32 0.0, %v1661
      %v1663 = vpop.f32.mrb[0].mxu0
      %1664 = vmatprep.mubr.bf16.mxu0 %v1066
      %1665 = vmatmul.mubr.bf16.gmra.mrb[0].mxu0 %v894
      %v1666 = vpop.f32.mrb[0].mxu0
      %v1667 = vadd.f32 0.0, %v1666
      %v1668 = vpop.f32.mrb[0].mxu0
      %v1669 = vpop.f32.mrb[0].mxu0
      %v1670 = vadd.f32 0.0, %v1669
      %v1671 = vpop.f32.mrb[0].mxu0
      %1672 = vmatprep.mubr.bf16.mxu0 %v1069
      %1673 = vmatmul.mubr.bf16.gmra.mrb[0].mxu0 %v897
      %v1674 = vpop.f32.mrb[0].mxu0
      %v1675 = vadd.f32 0.0, %v1674
      %v1676 = vpop.f32.mrb[0].mxu0
      %v1677 = vpop.f32.mrb[0].mxu0
      %v1678 = vadd.f32 0.0, %v1677
      %v1679 = vpop.f32.mrb[0].mxu0
      %1680 = vmatprep.mubr.bf16.mxu0 %v1072
      %1681 = vmatmul.mubr.bf16.gmra.mrb[0].mxu0 %v900
      %v1682 = vpop.f32.mrb[0].mxu0
      %v1683 = vadd.f32 0.0, %v1682
      %v1684 = vpop.f32.mrb[0].mxu0
      %v1685 = vpop.f32.mrb[0].mxu0
      %v1686 = vadd.f32 0.0, %v1685
      %v1687 = vpop.f32.mrb[0].mxu0
      %1688 = vmatprep.mubr.bf16.mxu0 %v1075
      %1689 = vmatmul.mubr.bf16.gmra.mrb[0].mxu0 %v903
      %v1690 = vpop.f32.mrb[0].mxu0
      %v1691 = vadd.f32 0.0, %v1690
      %v1692 = vpop.f32.mrb[0].mxu0
      %v1693 = vpop.f32.mrb[0].mxu0
      %v1694 = vadd.f32 0.0, %v1693
      %v1695 = vpop.f32.mrb[0].mxu0
      %1696 = vmatprep.mubr.bf16.mxu0 %v1078
      %1697 = vmatmul.mubr.bf16.gmra.mrb[0].mxu0 %v906
      %v1698 = vpop.f32.mrb[0].mxu0
      %v1699 = vadd.f32 0.0, %v1698
      %v1700 = vpop.f32.mrb[0].mxu0
      %v1701 = vpop.f32.mrb[0].mxu0
      %v1702 = vadd.f32 0.0, %v1701
      %v1703 = vpop.f32.mrb[0].mxu0
      %1704 = vmatprep.mubr.bf16.mxu0 %v1081
      %1705 = vmatmul.mubr.bf16.gmra.mrb[0].mxu0 %v909
      %v1706 = vpop.f32.mrb[0].mxu0
      %v1707 = vadd.f32 0.0, %v1706
      %v1708 = vpop.f32.mrb[0].mxu0
      %v1709 = vpop.f32.mrb[0].mxu0
      %v1710 = vadd.f32 0.0, %v1709
      %v1711 = vpop.f32.mrb[0].mxu0
      %1712 = vmatprep.mubr.bf16.mxu0 %v1084
      %1713 = vmatmul.mubr.bf16.gmra.mrb[0].mxu0 %v912
      %v1714 = vpop.f32.mrb[0].mxu0
      %v1715 = vadd.f32 0.0, %v1714
      %v1716 = vpop.f32.mrb[0].mxu0
      %v1717 = vpop.f32.mrb[0].mxu0
      %v1718 = vadd.f32 0.0, %v1717
      %v1719 = vpop.f32.mrb[0].mxu0
      %1720 = vmatprep.mubr.bf16.mxu0 %v1087
      %1721 = vmatmul.mubr.bf16.gmra.mrb[0].mxu0 %v915
      %v1722 = vpop.f32.mrb[0].mxu0
      %v1723 = vadd.f32 0.0, %v1722
      %v1724 = vpop.f32.mrb[0].mxu0
      %v1725 = vpop.f32.mrb[0].mxu0
      %v1726 = vadd.f32 0.0, %v1725
      %v1727 = vpop.f32.mrb[0].mxu0
      %1728 = vmatprep.mubr.bf16.mxu0 %v1090
      %1729 = vmatmul.mubr.bf16.gmra.mrb[0].mxu0 %v918
      %v1730 = vpop.f32.mrb[0].mxu0
      %v1731 = vadd.f32 0.0, %v1730
      %v1732 = vpop.f32.mrb[0].mxu0
      %v1733 = vpop.f32.mrb[0].mxu0
      %v1734 = vadd.f32 0.0, %v1733
      %v1735 = vpop.f32.mrb[0].mxu0
      %1736 = vmatprep.mubr.bf16.mxu0 %v1093
      %1737 = vmatmul.mubr.bf16.gmra.mrb[0].mxu0 %v921
      %v1738 = vpop.f32.mrb[0].mxu0
      %v1739 = vadd.f32 0.0, %v1738
      %v1740 = vpop.f32.mrb[0].mxu0
      %v1741 = vpop.f32.mrb[0].mxu0
      %v1742 = vadd.f32 0.0, %v1741
      %v1743 = vpop.f32.mrb[0].mxu0
      %1744 = vmatprep.mubr.bf16.mxu0 %v1590
      %1745 = vmatmul.mubr.bf16.gmra.mrb[0].mxu0 %v924
      %v1746 = vpop.f32.mrb[0].mxu0
      %v1747 = vadd.f32 0.0, %v1746
      %v1748 = vpop.f32.mrb[0].mxu0
      %v1749 = vpop.f32.mrb[0].mxu0
      %v1750 = vadd.f32 0.0, %v1749
      %v1751 = vpop.f32.mrb[0].mxu0
      %1752 = vdwg.mxu0
      %v1753 = vadd.f32 %v1366, %v1627
      %v1754 = vadd.f32 %v1369, %v1630
      %v1755 = vadd.f32 %v1374, %v1635
      %v1756 = vadd.f32 %v1377, %v1638
      %v1757 = vadd.f32 %v1382, %v1643
      %v1758 = vadd.f32 %v1385, %v1646
      %v1759 = vadd.f32 %v1390, %v1651
      %v1760 = vadd.f32 %v1393, %v1654
      %v1761 = vadd.f32 %v1398, %v1659
      %v1762 = vadd.f32 %v1401, %v1662
      %v1763 = vadd.f32 %v1406, %v1667
      %v1764 = vadd.f32 %v1409, %v1670
      %v1765 = vadd.f32 %v1414, %v1675
      %v1766 = vadd.f32 %v1417, %v1678
      %v1767 = vadd.f32 %v1422, %v1683
      %v1768 = vadd.f32 %v1425, %v1686
      %v1769 = vadd.f32 %v1430, %v1691
      %v1770 = vadd.f32 %v1433, %v1694
      %v1771 = vadd.f32 %v1438, %v1699
      %v1772 = vadd.f32 %v1441, %v1702
      %v1773 = vadd.f32 %v1446, %v1707
      %v1774 = vadd.f32 %v1449, %v1710
      %v1775 = vadd.f32 %v1454, %v1715
      %v1776 = vadd.f32 %v1457, %v1718
      %v1777 = vadd.f32 %v1462, %v1723
      %v1778 = vadd.f32 %v1465, %v1726
      %v1779 = vadd.f32 %v1470, %v1731
      %v1780 = vadd.f32 %v1473, %v1734
      %v1781 = vadd.f32 %v1478, %v1739
      %v1782 = vadd.f32 %v1481, %v1742
      %v1783 = vadd.f32 %v1486, %v1747
      %v1784 = vadd.f32 %v1489, %v1750
      %v1785 = vld [vmem:[%s328] sm:$0x1]
      %v1787 = vlaneseq
      %v1788 = vshrl.u32 %v1787, 7
      %v1789 = vsub.s32 0, %v1788
      %v1790 = vrot.slane %v1785, %v1789
      %v1792 = vmul.f32 %v1753, %v1790
      %v1793 = vmul.f32 %v1754, %v1790
      %v1794 = vmul.f32 %v1755, %v1790
      %v1795 = vmul.f32 %v1756, %v1790
      %v1796 = vmul.f32 %v1757, %v1790
      %v1797 = vmul.f32 %v1758, %v1790
      %v1798 = vmul.f32 %v1759, %v1790
      %v1799 = vmul.f32 %v1760, %v1790
      %v1800 = vmul.f32 %v1761, %v1790
      %v1801 = vmul.f32 %v1762, %v1790
      %v1802 = vmul.f32 %v1763, %v1790
      %v1803 = vmul.f32 %v1764, %v1790
      %v1804 = vmul.f32 %v1765, %v1790
      %v1805 = vmul.f32 %v1766, %v1790
      %v1806 = vmul.f32 %v1767, %v1790
      %v1807 = vmul.f32 %v1768, %v1790
      %v1808 = vmul.f32 %v1769, %v1790
      %v1809 = vmul.f32 %v1770, %v1790
      %v1810 = vmul.f32 %v1771, %v1790
      %v1811 = vmul.f32 %v1772, %v1790
      %v1812 = vmul.f32 %v1773, %v1790
      %v1813 = vmul.f32 %v1774, %v1790
      %v1814 = vmul.f32 %v1775, %v1790
      %v1815 = vmul.f32 %v1776, %v1790
      %v1816 = vmul.f32 %v1777, %v1790
      %v1817 = vmul.f32 %v1778, %v1790
      %v1818 = vmul.f32 %v1779, %v1790
      %v1819 = vmul.f32 %v1780, %v1790
      %v1820 = vmul.f32 %v1781, %v1790
      %v1821 = vmul.f32 %v1782, %v1790
      %v1822 = vmul.f32 %v1783, %v1790
      %v1823 = vmul.f32 %v1784, %v1790
      %v1824 = vld [vmem:[%s331] sm:$0x1]
      %v1826 = vlaneseq
      %v1827 = vshrl.u32 %v1826, 7
      %v1828 = vsub.s32 0, %v1827
      %v1829 = vrot.slane %v1824, %v1828
      %v1831 = vadd.f32 %v1792, %v1829
      %v1832 = vadd.f32 %v1793, %v1829
      %v1833 = vadd.f32 %v1794, %v1829
      %v1834 = vadd.f32 %v1795, %v1829
      %v1835 = vadd.f32 %v1796, %v1829
      %v1836 = vadd.f32 %v1797, %v1829
      %v1837 = vadd.f32 %v1798, %v1829
      %v1838 = vadd.f32 %v1799, %v1829
      %v1839 = vadd.f32 %v1800, %v1829
      %v1840 = vadd.f32 %v1801, %v1829
      %v1841 = vadd.f32 %v1802, %v1829
      %v1842 = vadd.f32 %v1803, %v1829
      %v1843 = vadd.f32 %v1804, %v1829
      %v1844 = vadd.f32 %v1805, %v1829
      %v1845 = vadd.f32 %v1806, %v1829
      %v1846 = vadd.f32 %v1807, %v1829
      %v1847 = vadd.f32 %v1808, %v1829
      %v1848 = vadd.f32 %v1809, %v1829
      %v1849 = vadd.f32 %v1810, %v1829
      %v1850 = vadd.f32 %v1811, %v1829
      %v1851 = vadd.f32 %v1812, %v1829
      %v1852 = vadd.f32 %v1813, %v1829
      %v1853 = vadd.f32 %v1814, %v1829
      %v1854 = vadd.f32 %v1815, %v1829
      %v1855 = vadd.f32 %v1816, %v1829
      %v1856 = vadd.f32 %v1817, %v1829
      %v1857 = vadd.f32 %v1818, %v1829
      %v1858 = vadd.f32 %v1819, %v1829
      %v1859 = vadd.f32 %v1820, %v1829
      %v1860 = vadd.f32 %v1821, %v1829
      %v1861 = vadd.f32 %v1822, %v1829
      %v1862 = vadd.f32 %v1823, %v1829
      %v1863 = vld [vmem:[%s344] sm:$0xf]
      %v1864 = vld [vmem:[%s344 + $0x4] sm:$0xf]
      %v1865 = vld [vmem:[%s344 + $0x8] sm:$0xf]
      %v1866 = vld [vmem:[%s344 + $0xc] sm:$0xf]
      %v1867 = vld [vmem:[%s344 + $0x10] sm:$0xf]
      %v1868 = vld [vmem:[%s344 + $0x14] sm:$0xf]
      %v1869 = vld [vmem:[%s344 + $0x18] sm:$0xf]
      %v1870 = vld [vmem:[%s344 + $0x1c] sm:$0xf]
      %v1871 = vld [vmem:[%s344 + $0x20] sm:$0xf]
      %v1872 = vld [vmem:[%s344 + $0x24] sm:$0xf]
      %v1873 = vld [vmem:[%s344 + $0x28] sm:$0xf]
      %v1874 = vld [vmem:[%s344 + $0x2c] sm:$0xf]
      %v1875 = vld [vmem:[%s344 + $0x30] sm:$0xf]
      %v1876 = vld [vmem:[%s344 + $0x34] sm:$0xf]
      %v1877 = vld [vmem:[%s344 + $0x38] sm:$0xf]
      %v1878 = vld [vmem:[%s344 + $0x3c] sm:$0xf]
      %v1879 = vld [vmem:[%s344 + $0x40] sm:$0xf]
      %v1880 = vld [vmem:[%s344 + $0x44] sm:$0xf]
      %v1881 = vld [vmem:[%s344 + $0x48] sm:$0xf]
      %v1882 = vld [vmem:[%s344 + $0x4c] sm:$0xf]
      %v1883 = vld [vmem:[%s344 + $0x50] sm:$0xf]
      %v1884 = vld [vmem:[%s344 + $0x54] sm:$0xf]
      %v1885 = vld [vmem:[%s344 + $0x58] sm:$0xf]
      %v1886 = vld [vmem:[%s344 + $0x5c] sm:$0xf]
      %v1887 = vld [vmem:[%s344 + $0x60] sm:$0xf]
      %v1888 = vld [vmem:[%s344 + $0x64] sm:$0xf]
      %v1889 = vld [vmem:[%s344 + $0x68] sm:$0xf]
      %v1890 = vld [vmem:[%s344 + $0x6c] sm:$0xf]
      %v1891 = vld [vmem:[%s344 + $0x70] sm:$0xf]
      %v1892 = vld [vmem:[%s344 + $0x74] sm:$0xf]
      %v1893 = vld [vmem:[%s344 + $0x78] sm:$0xf]
      %v1894 = vld [vmem:[%s344 + $0x7c] sm:$0xf]
      %v1895 = vunpack.c.l.bf16 %v1863
      %v1896 = vunpack.c.l.bf16 %v1864
      %v1897 = vunpack.c.l.bf16 %v1865
      %v1898 = vunpack.c.l.bf16 %v1866
      %v1899 = vunpack.c.l.bf16 %v1867
      %v1900 = vunpack.c.l.bf16 %v1868
      %v1901 = vunpack.c.l.bf16 %v1869
      %v1902 = vunpack.c.l.bf16 %v1870
      %v1903 = vunpack.c.l.bf16 %v1871
      %v1904 = vunpack.c.l.bf16 %v1872
      %v1905 = vunpack.c.l.bf16 %v1873
      %v1906 = vunpack.c.l.bf16 %v1874
      %v1907 = vunpack.c.l.bf16 %v1875
      %v1908 = vunpack.c.l.bf16 %v1876
      %v1909 = vunpack.c.l.bf16 %v1877
      %v1910 = vunpack.c.l.bf16 %v1878
      %v1911 = vunpack.c.l.bf16 %v1879
      %v1912 = vunpack.c.l.bf16 %v1880
      %v1913 = vunpack.c.l.bf16 %v1881
      %v1914 = vunpack.c.l.bf16 %v1882
      %v1915 = vunpack.c.l.bf16 %v1883
      %v1916 = vunpack.c.l.bf16 %v1884
      %v1917 = vunpack.c.l.bf16 %v1885
      %v1918 = vunpack.c.l.bf16 %v1886
      %v1919 = vunpack.c.l.bf16 %v1887
      %v1920 = vunpack.c.l.bf16 %v1888
      %v1921 = vunpack.c.l.bf16 %v1889
      %v1922 = vunpack.c.l.bf16 %v1890
      %v1923 = vunpack.c.l.bf16 %v1891
      %v1924 = vunpack.c.l.bf16 %v1892
      %v1925 = vunpack.c.l.bf16 %v1893
      %v1926 = vunpack.c.l.bf16 %v1894
      %v1927 = vadd.f32 %v1831, %v1895
      %v1928 = vadd.f32 %v1832, %v1896
      %v1929 = vadd.f32 %v1833, %v1897
      %v1930 = vadd.f32 %v1834, %v1898
      %v1931 = vadd.f32 %v1835, %v1899
      %v1932 = vadd.f32 %v1836, %v1900
      %v1933 = vadd.f32 %v1837, %v1901
      %v1934 = vadd.f32 %v1838, %v1902
      %v1935 = vadd.f32 %v1839, %v1903
      %v1936 = vadd.f32 %v1840, %v1904
      %v1937 = vadd.f32 %v1841, %v1905
      %v1938 = vadd.f32 %v1842, %v1906
      %v1939 = vadd.f32 %v1843, %v1907
      %v1940 = vadd.f32 %v1844, %v1908
      %v1941 = vadd.f32 %v1845, %v1909
      %v1942 = vadd.f32 %v1846, %v1910
      %v1943 = vadd.f32 %v1847, %v1911
      %v1944 = vadd.f32 %v1848, %v1912
      %v1945 = vadd.f32 %v1849, %v1913
      %v1946 = vadd.f32 %v1850, %v1914
      %v1947 = vadd.f32 %v1851, %v1915
      %v1948 = vadd.f32 %v1852, %v1916
      %v1949 = vadd.f32 %v1853, %v1917
      %v1950 = vadd.f32 %v1854, %v1918
      %v1951 = vadd.f32 %v1855, %v1919
      %v1952 = vadd.f32 %v1856, %v1920
      %v1953 = vadd.f32 %v1857, %v1921
      %v1954 = vadd.f32 %v1858, %v1922
      %v1955 = vadd.f32 %v1859, %v1923
      %v1956 = vadd.f32 %v1860, %v1924
      %v1957 = vadd.f32 %v1861, %v1925
      %v1958 = vadd.f32 %v1862, %v1926
      %v1959 = vmax.f32 %v1927, 0.0
      %v1960 = vmax.f32 %v1928, 0.0
      %v1961 = vmax.f32 %v1929, 0.0
      %v1962 = vmax.f32 %v1930, 0.0
      %v1963 = vmax.f32 %v1931, 0.0
      %v1964 = vmax.f32 %v1932, 0.0
      %v1965 = vmax.f32 %v1933, 0.0
      %v1966 = vmax.f32 %v1934, 0.0
      %v1967 = vmax.f32 %v1935, 0.0
      %v1968 = vmax.f32 %v1936, 0.0
      %v1969 = vmax.f32 %v1937, 0.0
      %v1970 = vmax.f32 %v1938, 0.0
      %v1971 = vmax.f32 %v1939, 0.0
      %v1972 = vmax.f32 %v1940, 0.0
      %v1973 = vmax.f32 %v1941, 0.0
      %v1974 = vmax.f32 %v1942, 0.0
      %v1975 = vmax.f32 %v1943, 0.0
      %v1976 = vmax.f32 %v1944, 0.0
      %v1977 = vmax.f32 %v1945, 0.0
      %v1978 = vmax.f32 %v1946, 0.0
      %v1979 = vmax.f32 %v1947, 0.0
      %v1980 = vmax.f32 %v1948, 0.0
      %v1981 = vmax.f32 %v1949, 0.0
      %v1982 = vmax.f32 %v1950, 0.0
      %v1983 = vmax.f32 %v1951, 0.0
      %v1984 = vmax.f32 %v1952, 0.0
      %v1985 = vmax.f32 %v1953, 0.0
      %v1986 = vmax.f32 %v1954, 0.0
      %v1987 = vmax.f32 %v1955, 0.0
      %v1988 = vmax.f32 %v1956, 0.0
      %v1989 = vmax.f32 %v1957, 0.0
      %v1990 = vmax.f32 %v1958, 0.0
      %v1991 = vpack.c.bf16 %v1960, %v1959
      %v1992 = vpack.c.bf16 %v1962, %v1961
      %v1993 = vpack.c.bf16 %v1964, %v1963
      %v1994 = vpack.c.bf16 %v1966, %v1965
      %v1995 = vpack.c.bf16 %v1968, %v1967
      %v1996 = vpack.c.bf16 %v1970, %v1969
      %v1997 = vpack.c.bf16 %v1972, %v1971
      %v1998 = vpack.c.bf16 %v1974, %v1973
      %v1999 = vpack.c.bf16 %v1976, %v1975
      %v2000 = vpack.c.bf16 %v1978, %v1977
      %v2001 = vpack.c.bf16 %v1980, %v1979
      %v2002 = vpack.c.bf16 %v1982, %v1981
      %v2003 = vpack.c.bf16 %v1984, %v1983
      %v2004 = vpack.c.bf16 %v1986, %v1985
      %v2005 = vpack.c.bf16 %v1988, %v1987
      %v2006 = vpack.c.bf16 %v1990, %v1989
      %v2023 = vunpack.c.l.b16 %v1991
      %v2024 = vunpack.c.h.b16 %v1991
      %v2025 = vunpack.c.l.b16 %v1992
      %v2026 = vunpack.c.h.b16 %v1992
      %v2027 = vunpack.c.l.b16 %v1993
      %v2028 = vunpack.c.h.b16 %v1993
      %v2029 = vunpack.c.l.b16 %v1994
      %v2030 = vunpack.c.h.b16 %v1994
      %v2031 = vunpack.c.l.b16 %v1995
      %v2032 = vunpack.c.h.b16 %v1995
      %v2033 = vunpack.c.l.b16 %v1996
      %v2034 = vunpack.c.h.b16 %v1996
      %v2035 = vunpack.c.l.b16 %v1997
      %v2036 = vunpack.c.h.b16 %v1997
      %v2037 = vunpack.c.l.b16 %v1998
      %v2038 = vunpack.c.h.b16 %v1998
      %v2039 = vunpack.c.l.b16 %v1999
      %v2040 = vunpack.c.h.b16 %v1999
      %v2041 = vunpack.c.l.b16 %v2000
      %v2042 = vunpack.c.h.b16 %v2000
      %v2043 = vunpack.c.l.b16 %v2001
      %v2044 = vunpack.c.h.b16 %v2001
      %v2045 = vunpack.c.l.b16 %v2002
      %v2046 = vunpack.c.h.b16 %v2002
      %v2047 = vunpack.c.l.b16 %v2003
      %v2048 = vunpack.c.h.b16 %v2003
      %v2049 = vunpack.c.l.b16 %v2004
      %v2050 = vunpack.c.h.b16 %v2004
      %v2051 = vunpack.c.l.b16 %v2005
      %v2052 = vunpack.c.h.b16 %v2005
      %v2053 = vunpack.c.l.b16 %v2006
      %v2054 = vunpack.c.h.b16 %v2006
      %v2055 = vpack.c.b16 %v2023, %v2023
      %v2056 = vpack.c.b16 %v2024, %v2024
      %v2057 = vpack.c.b16 %v2025, %v2025
      %v2058 = vpack.c.b16 %v2026, %v2026
      %v2059 = vpack.c.b16 %v2027, %v2027
      %v2060 = vpack.c.b16 %v2028, %v2028
      %v2061 = vpack.c.b16 %v2029, %v2029
      %v2062 = vpack.c.b16 %v2030, %v2030
      %v2063 = vpack.c.b16 %v2031, %v2031
      %v2064 = vpack.c.b16 %v2032, %v2032
      %v2065 = vpack.c.b16 %v2033, %v2033
      %v2066 = vpack.c.b16 %v2034, %v2034
      %v2067 = vpack.c.b16 %v2035, %v2035
      %v2068 = vpack.c.b16 %v2036, %v2036
      %v2069 = vpack.c.b16 %v2037, %v2037
      %v2070 = vpack.c.b16 %v2038, %v2038
      %v2071 = vpack.c.b16 %v2039, %v2039
      %v2072 = vpack.c.b16 %v2040, %v2040
      %v2073 = vpack.c.b16 %v2041, %v2041
      %v2074 = vpack.c.b16 %v2042, %v2042
      %v2075 = vpack.c.b16 %v2043, %v2043
      %v2076 = vpack.c.b16 %v2044, %v2044
      %v2077 = vpack.c.b16 %v2045, %v2045
      %v2078 = vpack.c.b16 %v2046, %v2046
      %v2079 = vpack.c.b16 %v2047, %v2047
      %v2080 = vpack.c.b16 %v2048, %v2048
      %v2081 = vpack.c.b16 %v2049, %v2049
      %v2082 = vpack.c.b16 %v2050, %v2050
      %v2083 = vpack.c.b16 %v2051, %v2051
      %v2084 = vpack.c.b16 %v2052, %v2052
      %v2085 = vpack.c.b16 %v2053, %v2053
      %v2086 = vpack.c.b16 %v2054, %v2054
      %2119 = vst [vmem:[%s358] sm:$0xf] %v2055
      %2120 = vst [vmem:[%s358 + $0x4] sm:$0xf] %v2056
      %2121 = vst [vmem:[%s358 + $0x8] sm:$0xf] %v2057
      %2122 = vst [vmem:[%s358 + $0xc] sm:$0xf] %v2058
      %2123 = vst [vmem:[%s358 + $0x10] sm:$0xf] %v2059
      %2124 = vst [vmem:[%s358 + $0x14] sm:$0xf] %v2060
      %2125 = vst [vmem:[%s358 + $0x18] sm:$0xf] %v2061
      %2126 = vst [vmem:[%s358 + $0x1c] sm:$0xf] %v2062
      %2127 = vst [vmem:[%s358 + $0x20] sm:$0xf] %v2063
      %2128 = vst [vmem:[%s358 + $0x24] sm:$0xf] %v2064
      %2129 = vst [vmem:[%s358 + $0x28] sm:$0xf] %v2065
      %2130 = vst [vmem:[%s358 + $0x2c] sm:$0xf] %v2066
      %2131 = vst [vmem:[%s358 + $0x30] sm:$0xf] %v2067
      %2132 = vst [vmem:[%s358 + $0x34] sm:$0xf] %v2068
      %2133 = vst [vmem:[%s358 + $0x38] sm:$0xf] %v2069
      %2134 = vst [vmem:[%s358 + $0x3c] sm:$0xf] %v2070
      %2135 = vst [vmem:[%s358 + $0x40] sm:$0xf] %v2071
      %2136 = vst [vmem:[%s358 + $0x44] sm:$0xf] %v2072
      %2137 = vst [vmem:[%s358 + $0x48] sm:$0xf] %v2073
      %2138 = vst [vmem:[%s358 + $0x4c] sm:$0xf] %v2074
      %2139 = vst [vmem:[%s358 + $0x50] sm:$0xf] %v2075
      %2140 = vst [vmem:[%s358 + $0x54] sm:$0xf] %v2076
      %2141 = vst [vmem:[%s358 + $0x58] sm:$0xf] %v2077
      %2142 = vst [vmem:[%s358 + $0x5c] sm:$0xf] %v2078
      %2143 = vst [vmem:[%s358 + $0x60] sm:$0xf] %v2079
      %2144 = vst [vmem:[%s358 + $0x64] sm:$0xf] %v2080
      %2145 = vst [vmem:[%s358 + $0x68] sm:$0xf] %v2081
      %2146 = vst [vmem:[%s358 + $0x6c] sm:$0xf] %v2082
      %2147 = vst [vmem:[%s358 + $0x70] sm:$0xf] %v2083
      %2148 = vst [vmem:[%s358 + $0x74] sm:$0xf] %v2084
      %2149 = vst [vmem:[%s358 + $0x78] sm:$0xf] %v2085
      %2150 = vst [vmem:[%s358 + $0x7c] sm:$0xf] %v2086
      %s2151 = smul.u32 16, %s22
      %p2152 = scmp.lt.s32.totalorder %s21, 1
      %s2153 = scalar_select %p2152, %s21, 1
      %p2154 = scmp.lt.s32.totalorder %s2151, 15
      %s2155 = scalar_select %p2154, %s2151, 15
      %p2156 = scmp.lt.s32.totalorder %s23, 0
      %s2157 = scalar_select %p2156, %s23, 0
      %s2158 = smul.addr %s2155, 2
      %s2159 = sadd.s32 %s2157, %s2158
      %s2160 = smul.addr %s2153, 32
      %s2161 = sadd.s32 %s2159, %s2160
      %s2162 = smul.addr %s2161, 4
      %s2163 = scalar_lea.vmem %s5, %s2162
      // Predicated region
      $region41: #{_lambda_.3} parent=39 // pred_check
        %p2164 = pneg %p191
      $region42: #{_lambda_.3} parent=39 // pred_check_branch
        %2166 = sbr.rel (%p2164) target = $region44
      $region43: #{_lambda_.3} parent=39 // pred_region
        %s2167 = smul.u32 16, %s22
      $region44: #{_lambda_.3} parent=39 // pred_fallthru
        _
    $region40: #{_lambda_.3} parent=5 // pred_fallthru
      _
    %p2168 = scmp.le.s32.totalorder 2, %s11
    // Predicated region
    $region45: #{_lambda_.3} parent=5 // pred_check
      %p2169 = pneg %p2168
    $region46: #{_lambda_.3} parent=5 // pred_check_branch
      %2171 = sbr.rel (%p2169) target = $region48
    $region47: #{_lambda_.3} parent=5 // pred_region
      %s2172 = ssub.s32 %s11, 2
      // Predicated region
      $region49: #{_lambda_.3} parent=47 // pred_check
        %p2173 = pneg %p197
      $region50: #{_lambda_.3} parent=47 // pred_check_branch
        %2175 = sbr.rel (%p2173) target = $region52
      $region51: #{_lambda_.3} parent=47 // pred_region
        %s2176 = smul.u32 16, %s25
        %p2177 = scmp.lt.s32.totalorder %s24, 1
        %s2178 = scalar_select %p2177, %s24, 1
        %p2179 = scmp.lt.s32.totalorder %s2176, 15
        %s2180 = scalar_select %p2179, %s2176, 15
        %p2181 = scmp.lt.s32.totalorder %s26, 0
        %s2182 = scalar_select %p2181, %s26, 0
        %s2183 = smul.addr %s2180, 2
        %s2184 = sadd.s32 %s2182, %s2183
        %s2185 = smul.addr %s2178, 32
        %s2186 = sadd.s32 %s2184, %s2185
        %s2187 = smul.addr %s2186, 4
        %s2188 = scalar_lea.vmem %s5, %s2187
      $region52: #{_lambda_.3} parent=47 // pred_fallthru
        _
    $region48: #{_lambda_.3} parent=5 // pred_fallthru
      _
  $region6: #{_lambda_.3} parent=0 // loop_footer
    %s15 = sadd.s32 1, %s11
  $region7: #{_lambda_.3} parent=0 // loop_footer_branch
    %10 = sbr.rel target = $region3
  $region8: #{_lambda_.3} parent=0 // loop_exit
    _

</llo_original>
